<compile_context>
chip_gen: v7x
topology: tpu7x:2x2x1
jax: 0.10.0
libtpu: 0.0.40
codegen_flags: <defaults>
</compile_context>

<pallas_src>
import jax
import jax.numpy as jnp
from jax.experimental import pallas as pl
from jax.experimental.pallas import tpu as pltpu

LANE = 128    # TPU lane width; all channel/feature dims are padded to this.
TILE_B = 8    # images per grid step.


# ---------------------------------------------------------------------------
# Fused kernel: TILE_B images per grid step, everything resident in VMEM.
# ---------------------------------------------------------------------------
def _lenet_kernel(x_ref, w1_ref, b1_ref, w2_ref, b2_ref,
                  wf1_ref, bf1_ref, wf2_ref, bf2_ref, wf3_ref, bf3_ref,
                  o_ref, z1_scr, y1_scr, z2_scr, y2_scr):
    f32 = jnp.float32
    bf16 = jnp.bfloat16

    # ---- stage 1: conv1 row-Toeplitz dots, batched over the tile (M=256) ---
    xp = x_ref[...].reshape(TILE_B * 32, LANE)              # bf16 (256, 128)
    for j in range(5):
        z1_scr[j] = jnp.dot(xp, w1_ref[j], preferred_element_type=f32)

    # Row 7 of each per-image y1 block is padding for the batched conv2 dot.
    y1_scr[...] = jnp.zeros_like(y1_scr)

    # ---- stage 2: per-image conv1 bias + ReLU + 2x2 max pool ---------------
    b1 = b1_ref[...]                                        # (1, 256) f32
    def pool1(b, carry):
        base = pl.multiple_of(b * 32, 32)
        accs = [jnp.zeros((7, 2 * LANE), f32) for _ in range(4)]
        for j in range(5):
            z = z1_scr[j, pl.ds(base, 32), :]               # (32, 256)
            for s in range(4):
                off = 8 * ((s + j) % 4) + (s + j) // 4
                accs[s] = accs[s] + z[off:off + 7, :]
        r = [jnp.maximum(a + b1, 0.0) for a in accs]
        rows_e = jnp.maximum(r[0], r[1])                    # pooled rows 0,2,..,12
        rows_o = jnp.maximum(r[2], r[3])                    # pooled rows 1,3,..,13
        y1_scr[0, b, 0:7, :] = jnp.maximum(rows_e[:, :LANE], rows_e[:, LANE:])
        y1_scr[1, b, 0:7, :] = jnp.maximum(rows_o[:, :LANE], rows_o[:, LANE:])
        return carry
    jax.lax.fori_loop(0, TILE_B, pool1, 0)

    # ---- stage 3: conv2 row-Toeplitz dots, batched over the tile (M=64) ----
    y1e = y1_scr[0].reshape(TILE_B * 8, LANE).astype(bf16)  # (64, 128)
    y1o = y1_scr[1].reshape(TILE_B * 8, LANE).astype(bf16)
    for j in range(5):
        z2_scr[j, 0] = jnp.dot(y1e, w2_ref[j], preferred_element_type=f32)
        z2_scr[j, 1] = jnp.dot(y1o, w2_ref[j], preferred_element_type=f32)

    # ---- stage 4: per-image conv2 bias + ReLU + 2x2 max pool ---------------
    b2 = b2_ref[...]                                        # (1, 256) f32
    def pool2(b, carry):
        base = pl.multiple_of(b * 8, 8)
        s2e = jnp.zeros((5, 2 * LANE), f32)                 # conv2 rows 0,2,..,8
        s2o = jnp.zeros((5, 2 * LANE), f32)                 # conv2 rows 1,3,..,9
        for j in range(5):
            c = z2_scr[j, 0, pl.ds(base, 8), :]             # (8, 256)
            d = z2_scr[j, 1, pl.ds(base, 8), :]
            if j % 2 == 0:
                a = j // 2
                s2e = s2e + c[a:a + 5, :]
                s2o = s2o + d[a:a + 5, :]
            else:
                a = (j - 1) // 2
                s2e = s2e + d[a:a + 5, :]
                s2o = s2o + c[a + 1:a + 6, :]
        r2e = jnp.maximum(s2e + b2, 0.0)
        r2o = jnp.maximum(s2o + b2, 0.0)
        rows2 = jnp.maximum(r2e, r2o)                       # (5, 256)
        y2_scr[b, 0:5, :] = jnp.maximum(rows2[:, :LANE], rows2[:, LANE:])
        return carry
    jax.lax.fori_loop(0, TILE_B, pool2, 0)

    # ---- stage 5: fc1 -> ReLU -> fc2 -> ReLU -> fc3, batched (M=TILE_B) ----
    y2 = y2_scr[...]                                        # (TILE_B, 8, 128) f32
    h = jnp.zeros((TILE_B, LANE), f32)
    for t in range(5):
        h = h + jnp.dot(y2[:, t, :].astype(bf16), wf1_ref[t],
                        preferred_element_type=f32)
    h = jnp.maximum(h + bf1_ref[...], 0.0)
    h = jnp.maximum(
        jnp.dot(h.astype(bf16), wf2_ref[...], preferred_element_type=f32)
        + bf2_ref[...], 0.0)
    o_ref[...] = (jnp.dot(h.astype(bf16), wf3_ref[...],
                          preferred_element_type=f32) + bf3_ref[...])


# ---------------------------------------------------------------------------
# Weight packing (pure index plumbing, done once outside the per-call path).
# ---------------------------------------------------------------------------
def _conv_toeplitz(wt, w_in, pad_k):
    """Per-kh row-Toeplitz conv matrices with the W-direction pool folded in.

    wt: (k, k, cin, cout) HWIO conv weight.
    Returns (k, pad_k, 256): row = w*cin + ci (input row layout), column =
    parity*128 + q*cout + co, where conv output column w_out = 2*q + parity.
    Built with take/where/pad only (no arithmetic), so entries are exact.
    """
    k, _, cin, cout = wt.shape
    wo = w_in - k + 1                   # conv output width
    wh = wo // 2                        # pooled width (per parity)
    w = jnp.arange(w_in)[:, None, None]
    p = jnp.arange(2)[None, :, None]
    q = jnp.arange(wh)[None, None, :]
    kw = w - (2 * q + p)                                   # (w_in, 2, wh)
    valid = (kw >= 0) & (kw < k)
    g = jnp.take(wt, jnp.clip(kw, 0, k - 1), axis=1)       # (k,w_in,2,wh,cin,cout)
    g = jnp.where(valid[None, :, :, :, None, None], g, 0.0)
    g = g.transpose(0, 1, 4, 2, 3, 5)                      # (k,w_in,cin,2,wh,cout)
    g = g.reshape(k, w_in * cin, 2, wh * cout)
    g = jnp.pad(g, ((0, 0), (0, pad_k - w_in * cin),
                    (0, 0), (0, LANE - wh * cout)))
    return g.reshape(k, pad_k, 2 * LANE)


def _conv_bias_row(b, wh):
    blk = jnp.pad(jnp.tile(b, wh), (0, LANE - wh * b.shape[0]))
    return jnp.concatenate([blk, blk]).reshape(1, 2 * LANE)


def pack_params(params):
    bf16 = jnp.bfloat16
    w1 = _conv_toeplitz(params["conv1_w"], 32, LANE).astype(bf16)   # (5,128,256)
    b1 = _conv_bias_row(params["conv1_b"], 14)                      # (1,256) f32
    w2 = _conv_toeplitz(params["conv2_w"], 14, LANE).astype(bf16)   # (5,128,256)
    b2 = _conv_bias_row(params["conv2_b"], 5)                       # (1,256) f32

    # fc1: PyTorch flattens (C=16, H=5, W=5); the kernel's y2 rows are H with
    # (W, C) interleaved on lanes -> permute weight rows to (H, W, C) and pad.
    wf1 = params["fc1_w"].reshape(16, 5, 5, 120)            # (c, h, w, n)
    wf1 = wf1.transpose(1, 2, 0, 3).reshape(5, 80, 120)     # (h, w*16+c, n)
    wf1 = jnp.pad(wf1, ((0, 0), (0, LANE - 80), (0, LANE - 120))).astype(bf16)
    bf1 = jnp.pad(params["fc1_b"], (0, LANE - 120)).reshape(1, LANE)
    wf2 = jnp.pad(params["fc2_w"],
                  ((0, LANE - 120), (0, LANE - 84))).astype(bf16)
    bf2 = jnp.pad(params["fc2_b"], (0, LANE - 84)).reshape(1, LANE)
    wf3 = jnp.pad(params["fc3_w"],
                  ((0, LANE - 84), (0, LANE - 10))).astype(bf16)
    bf3 = jnp.pad(params["fc3_b"], (0, LANE - 10)).reshape(1, LANE)
    return (w1, b1, w2, b2, wf1, bf1, wf2, bf2, wf3, bf3)


# ---------------------------------------------------------------------------
# Public forward wrapper (takes pre-packed weights).
# ---------------------------------------------------------------------------
def net_forward(x_nchw, packed):
    B = x_nchw.shape[0]
    B_pad = ((B + TILE_B - 1) // TILE_B) * TILE_B
    grid = (B_pad // TILE_B,)

    # NCHW -> NHWC -> rows of W*C = 96 lanes, permute rows by h mod 4
    # ("4-phase") so both 2x2 H-poolings become elementwise maxes in-kernel,
    # pad rows to 128 lanes + batch to a multiple of TILE_B, cast to bf16.
    x = jnp.transpose(x_nchw, (0, 2, 3, 1)).astype(jnp.float32)
    x = x.reshape(B, 32, 96)
    x = x.reshape(B, 8, 4, 96).transpose(0, 2, 1, 3).reshape(B, 32, 96)
    x = jnp.pad(x, ((0, B_pad - B), (0, 0), (0, LANE - 96)))
    x = x.astype(jnp.bfloat16)

    def const(shape):
        return pl.BlockSpec(shape, lambda b: (0,) * len(shape))

    out = pl.pallas_call(
        _lenet_kernel,
        out_shape=jax.ShapeDtypeStruct((B_pad, LANE), jnp.float32),
        grid=grid,
        in_specs=[
            pl.BlockSpec((TILE_B, 32, LANE), lambda b: (b, 0, 0)),  # images
            const((5, LANE, 2 * LANE)),                             # conv1 toeplitz
            const((1, 2 * LANE)),                                   # conv1 bias row
            const((5, LANE, 2 * LANE)),                             # conv2 toeplitz
            const((1, 2 * LANE)),                                   # conv2 bias row
            const((5, LANE, LANE)),                                 # fc1 (per y2 row)
            const((1, LANE)),                                       # fc1 bias
            const((LANE, LANE)),                                    # fc2
            const((1, LANE)),                                       # fc2 bias
            const((LANE, LANE)),                                    # fc3
            const((1, LANE)),                                       # fc3 bias
        ],
        out_specs=pl.BlockSpec((TILE_B, LANE), lambda b: (b, 0)),
        scratch_shapes=[
            pltpu.VMEM((5, TILE_B * 32, 2 * LANE), jnp.float32),    # conv1 partials
            pltpu.VMEM((2, TILE_B, 8, LANE), jnp.float32),          # pooled conv1
            pltpu.VMEM((5, 2, TILE_B * 8, 2 * LANE), jnp.float32),  # conv2 partials
            pltpu.VMEM((TILE_B, 8, LANE), jnp.float32),             # pooled conv2
        ],
        compiler_params=pltpu.CompilerParams(
            dimension_semantics=("parallel",)),
    )(x, *packed)
    return out[:B, :10]


# Pure-JAX reference using the same bf16-operand / f32-accumulate convention
# as the kernel (the MXU is bf16-native), for the correctness check.
def net_forward_ref(x_nchw, params):
    bf16 = jnp.bfloat16
    x = jnp.transpose(x_nchw, (0, 2, 3, 1)).astype(jnp.float32).astype(bf16)

    def conv(v, w, b):
        y = jax.lax.conv_general_dilated(
            v, w.astype(bf16), window_strides=(1, 1), padding="VALID",
            dimension_numbers=("NHWC", "HWIO", "NHWC"),
            preferred_element_type=jnp.float32)
        return y + b.reshape(1, 1, 1, -1)

    def pool(v):
        return jax.lax.reduce_window(v, -jnp.inf, jax.lax.max,
                                     (1, 2, 2, 1), (1, 2, 2, 1), "VALID")

    def fc(v, w, b):
        return jnp.dot(v.astype(bf16), w.astype(bf16),
                       preferred_element_type=jnp.float32) + b

    y = pool(jax.nn.relu(conv(x, params["conv1_w"], params["conv1_b"])))
    y = pool(jax.nn.relu(conv(y.astype(bf16),
                              params["conv2_w"], params["conv2_b"])))
    feat = jnp.transpose(y, (0, 3, 1, 2)).reshape(x.shape[0], -1)
    h = jax.nn.relu(fc(feat, params["fc1_w"], params["fc1_b"]))
    h = jax.nn.relu(fc(h, params["fc2_w"], params["fc2_b"]))
    return fc(h, params["fc3_w"], params["fc3_b"])


def init_params(key):
    ks = jax.random.split(key, 10)

    def w(k, shape, fan_in):
        return jax.random.normal(k, shape, jnp.float32) / jnp.sqrt(fan_in)

    return {
        # conv weights stored HWIO (kh, kw, cin, cout); equals PyTorch
        # (cout, cin, kh, kw).transpose(2, 3, 1, 0)
        "conv1_w": w(ks[0], (5, 5, 3, 6), 5 * 5 * 3),
        "conv1_b": w(ks[1], (6,), 5 * 5 * 3),
        "conv2_w": w(ks[2], (5, 5, 6, 16), 5 * 5 * 6),
        "conv2_b": w(ks[3], (16,), 5 * 5 * 6),
        # fc weights stored (in, out); equals PyTorch (out, in).T
        "fc1_w": w(ks[4], (400, 120), 400),
        "fc1_b": w(ks[5], (120,), 400),
        "fc2_w": w(ks[6], (120, 84), 120),
        "fc2_b": w(ks[7], (84,), 120),
        "fc3_w": w(ks[8], (84, 10), 84),
        "fc3_b": w(ks[9], (10,), 84),
    }


if __name__ == "__main__":
    root = jax.random.PRNGKey(0)
    k_params, k_x = jax.random.split(root)
    params = init_params(k_params)
    # Net's fc1 (16*5*5) implies 32x32 spatial input, 3 channels (CIFAR-10).
    # B=16 -> two grid steps of TILE_B=8 (keeps both v7x TensorCores busy).
    x = jax.random.normal(k_x, (16, 3, 32, 32), jnp.float32)

    packed = pack_params(params)          # packed once, outside the jit path
    fwd = jax.jit(net_forward)
    out = jax.block_until_ready(fwd(x, packed))
    assert out.shape == (16, 10) and out.dtype == jnp.float32

    ref = jax.block_until_ready(net_forward_ref(x, params))
    err = float(jnp.max(jnp.abs(out - ref)))
    assert jnp.allclose(out, ref, rtol=1e-2, atol=1e-2), (
        f"mismatch vs reference (max abs err {err})")

    print("KERNEL_OK")
</pallas_src>

<mosaic_0001>
module attributes {stable_mosaic.version = 11 : i64} {
  func.func @_lenet_kernel(%arg0: i32, %arg1: memref<8x32x128xbf16, #tpu.memory_space<vmem>>, %arg2: memref<5x128x256xbf16, #tpu.memory_space<vmem>>, %arg3: memref<1x256xf32, #tpu.memory_space<vmem>>, %arg4: memref<5x128x256xbf16, #tpu.memory_space<vmem>>, %arg5: memref<1x256xf32, #tpu.memory_space<vmem>>, %arg6: memref<5x128x128xbf16, #tpu.memory_space<vmem>>, %arg7: memref<1x128xf32, #tpu.memory_space<vmem>>, %arg8: memref<128x128xbf16, #tpu.memory_space<vmem>>, %arg9: memref<1x128xf32, #tpu.memory_space<vmem>>, %arg10: memref<128x128xbf16, #tpu.memory_space<vmem>>, %arg11: memref<1x128xf32, #tpu.memory_space<vmem>>, %arg12: memref<8x128xf32, #tpu.memory_space<vmem>>, %arg13: memref<5x256x256xf32, #tpu.memory_space<vmem>>, %arg14: memref<2x8x8x128xf32, #tpu.memory_space<vmem>>, %arg15: memref<5x2x64x256xf32, #tpu.memory_space<vmem>>, %arg16: memref<8x8x128xf32, #tpu.memory_space<vmem>>) attributes {dimension_semantics = [#tpu.dimension_semantics<parallel>], iteration_bounds = array<i64: 2>, scalar_prefetch = 0 : i64, scratch_operands = 4 : i64, tpu.core_type = #tpu.core_type<tc>, window_params = [{transform_indices = @transform_0, window_bounds = array<i64: 8, 32, 128>}, {pipeline_mode = #tpu.pipeline_mode<synchronous>, transform_indices = @transform_1, window_bounds = array<i64: 5, 128, 256>}, {pipeline_mode = #tpu.pipeline_mode<synchronous>, transform_indices = @transform_2, window_bounds = array<i64: 1, 256>}, {pipeline_mode = #tpu.pipeline_mode<synchronous>, transform_indices = @transform_3, window_bounds = array<i64: 5, 128, 256>}, {pipeline_mode = #tpu.pipeline_mode<synchronous>, transform_indices = @transform_4, window_bounds = array<i64: 1, 256>}, {pipeline_mode = #tpu.pipeline_mode<synchronous>, transform_indices = @transform_5, window_bounds = array<i64: 5, 128, 128>}, {pipeline_mode = #tpu.pipeline_mode<synchronous>, transform_indices = @transform_6, window_bounds = array<i64: 1, 128>}, {pipeline_mode = #tpu.pipeline_mode<synchronous>, transform_indices = @transform_7, window_bounds = array<i64: 128, 128>}, {pipeline_mode = #tpu.pipeline_mode<synchronous>, transform_indices = @transform_8, window_bounds = array<i64: 1, 128>}, {pipeline_mode = #tpu.pipeline_mode<synchronous>, transform_indices = @transform_9, window_bounds = array<i64: 128, 128>}, {pipeline_mode = #tpu.pipeline_mode<synchronous>, transform_indices = @transform_10, window_bounds = array<i64: 1, 128>}, {transform_indices = @transform_11, window_bounds = array<i64: 8, 128>}]} {
    %c0 = arith.constant 0 : index
    %c0_0 = arith.constant 0 : index
    %c0_1 = arith.constant 0 : index
    %0 = vector.load %arg1[%c0, %c0_0, %c0_1] : memref<8x32x128xbf16, #tpu.memory_space<vmem>>, vector<8x32x128xbf16>
    %1 = vector.shape_cast %0 : vector<8x32x128xbf16> to vector<256x128xbf16>
    %c0_2 = arith.constant 0 : index
    %c0_3 = arith.constant 0 : index
    %c0_4 = arith.constant 0 : index
    %2 = vector.load %arg2[%c0_2, %c0_3, %c0_4] : memref<5x128x256xbf16, #tpu.memory_space<vmem>>, vector<1x128x256xbf16>
    %3 = vector.shape_cast %2 : vector<1x128x256xbf16> to vector<128x256xbf16>
    %cst = arith.constant dense<0.000000e+00> : vector<256x256xf32>
    %4 = tpu.matmul %1, %3, %cst {dimension_numbers = #tpu.dot_dimension_numbers<[1], [0], [0], [1], [0, 0, 1, 1], [], []>} : vector<256x128xbf16>, vector<128x256xbf16>, vector<256x256xf32> -> vector<256x256xf32>
    %c0_5 = arith.constant 0 : index
    %c0_6 = arith.constant 0 : index
    %c0_7 = arith.constant 0 : index
    %5 = vector.load %arg13[%c0_5, %c0_6, %c0_7] : memref<5x256x256xf32, #tpu.memory_space<vmem>>, vector<1x256x256xf32>
    %6 = vector.shape_cast %5 : vector<1x256x256xf32> to vector<256x256xf32>
    %7 = vector.shape_cast %4 : vector<256x256xf32> to vector<1x256x256xf32>
    tpu.vector_store %arg13[%c0_5, %c0_6, %c0_7], %7 {strides = array<i32>} : memref<5x256x256xf32, #tpu.memory_space<vmem>>, vector<1x256x256xf32>,
    %c1 = arith.constant 1 : index
    %c0_8 = arith.constant 0 : index
    %c0_9 = arith.constant 0 : index
    %8 = vector.load %arg2[%c1, %c0_8, %c0_9] : memref<5x128x256xbf16, #tpu.memory_space<vmem>>, vector<1x128x256xbf16>
    %9 = vector.shape_cast %8 : vector<1x128x256xbf16> to vector<128x256xbf16>
    %cst_10 = arith.constant dense<0.000000e+00> : vector<256x256xf32>
    %10 = tpu.matmul %1, %9, %cst_10 {dimension_numbers = #tpu.dot_dimension_numbers<[1], [0], [0], [1], [0, 0, 1, 1], [], []>} : vector<256x128xbf16>, vector<128x256xbf16>, vector<256x256xf32> -> vector<256x256xf32>
    %c1_11 = arith.constant 1 : index
    %c0_12 = arith.constant 0 : index
    %c0_13 = arith.constant 0 : index
    %11 = vector.load %arg13[%c1_11, %c0_12, %c0_13] : memref<5x256x256xf32, #tpu.memory_space<vmem>>, vector<1x256x256xf32>
    %12 = vector.shape_cast %11 : vector<1x256x256xf32> to vector<256x256xf32>
    %13 = vector.shape_cast %10 : vector<256x256xf32> to vector<1x256x256xf32>
    tpu.vector_store %arg13[%c1_11, %c0_12, %c0_13], %13 {strides = array<i32>} : memref<5x256x256xf32, #tpu.memory_space<vmem>>, vector<1x256x256xf32>,
    %c2 = arith.constant 2 : index
    %c0_14 = arith.constant 0 : index
    %c0_15 = arith.constant 0 : index
    %14 = vector.load %arg2[%c2, %c0_14, %c0_15] : memref<5x128x256xbf16, #tpu.memory_space<vmem>>, vector<1x128x256xbf16>
    %15 = vector.shape_cast %14 : vector<1x128x256xbf16> to vector<128x256xbf16>
    %cst_16 = arith.constant dense<0.000000e+00> : vector<256x256xf32>
    %16 = tpu.matmul %1, %15, %cst_16 {dimension_numbers = #tpu.dot_dimension_numbers<[1], [0], [0], [1], [0, 0, 1, 1], [], []>} : vector<256x128xbf16>, vector<128x256xbf16>, vector<256x256xf32> -> vector<256x256xf32>
    %c2_17 = arith.constant 2 : index
    %c0_18 = arith.constant 0 : index
    %c0_19 = arith.constant 0 : index
    %17 = vector.load %arg13[%c2_17, %c0_18, %c0_19] : memref<5x256x256xf32, #tpu.memory_space<vmem>>, vector<1x256x256xf32>
    %18 = vector.shape_cast %17 : vector<1x256x256xf32> to vector<256x256xf32>
    %19 = vector.shape_cast %16 : vector<256x256xf32> to vector<1x256x256xf32>
    tpu.vector_store %arg13[%c2_17, %c0_18, %c0_19], %19 {strides = array<i32>} : memref<5x256x256xf32, #tpu.memory_space<vmem>>, vector<1x256x256xf32>,
    %c3 = arith.constant 3 : index
    %c0_20 = arith.constant 0 : index
    %c0_21 = arith.constant 0 : index
    %20 = vector.load %arg2[%c3, %c0_20, %c0_21] : memref<5x128x256xbf16, #tpu.memory_space<vmem>>, vector<1x128x256xbf16>
    %21 = vector.shape_cast %20 : vector<1x128x256xbf16> to vector<128x256xbf16>
    %cst_22 = arith.constant dense<0.000000e+00> : vector<256x256xf32>
    %22 = tpu.matmul %1, %21, %cst_22 {dimension_numbers = #tpu.dot_dimension_numbers<[1], [0], [0], [1], [0, 0, 1, 1], [], []>} : vector<256x128xbf16>, vector<128x256xbf16>, vector<256x256xf32> -> vector<256x256xf32>
    %c3_23 = arith.constant 3 : index
    %c0_24 = arith.constant 0 : index
    %c0_25 = arith.constant 0 : index
    %23 = vector.load %arg13[%c3_23, %c0_24, %c0_25] : memref<5x256x256xf32, #tpu.memory_space<vmem>>, vector<1x256x256xf32>
    %24 = vector.shape_cast %23 : vector<1x256x256xf32> to vector<256x256xf32>
    %25 = vector.shape_cast %22 : vector<256x256xf32> to vector<1x256x256xf32>
    tpu.vector_store %arg13[%c3_23, %c0_24, %c0_25], %25 {strides = array<i32>} : memref<5x256x256xf32, #tpu.memory_space<vmem>>, vector<1x256x256xf32>,
    %c4 = arith.constant 4 : index
    %c0_26 = arith.constant 0 : index
    %c0_27 = arith.constant 0 : index
    %26 = vector.load %arg2[%c4, %c0_26, %c0_27] : memref<5x128x256xbf16, #tpu.memory_space<vmem>>, vector<1x128x256xbf16>
    %27 = vector.shape_cast %26 : vector<1x128x256xbf16> to vector<128x256xbf16>
    %cst_28 = arith.constant dense<0.000000e+00> : vector<256x256xf32>
    %28 = tpu.matmul %1, %27, %cst_28 {dimension_numbers = #tpu.dot_dimension_numbers<[1], [0], [0], [1], [0, 0, 1, 1], [], []>} : vector<256x128xbf16>, vector<128x256xbf16>, vector<256x256xf32> -> vector<256x256xf32>
    %c4_29 = arith.constant 4 : index
    %c0_30 = arith.constant 0 : index
    %c0_31 = arith.constant 0 : index
    %29 = vector.load %arg13[%c4_29, %c0_30, %c0_31] : memref<5x256x256xf32, #tpu.memory_space<vmem>>, vector<1x256x256xf32>
    %30 = vector.shape_cast %29 : vector<1x256x256xf32> to vector<256x256xf32>
    %31 = vector.shape_cast %28 : vector<256x256xf32> to vector<1x256x256xf32>
    tpu.vector_store %arg13[%c4_29, %c0_30, %c0_31], %31 {strides = array<i32>} : memref<5x256x256xf32, #tpu.memory_space<vmem>>, vector<1x256x256xf32>,
    %cst_32 = arith.constant 0.000000e+00 : f32
    %32 = vector.broadcast %cst_32 : f32 to vector<2x8x8x128xf32>
    %c0_33 = arith.constant 0 : index
    %c0_34 = arith.constant 0 : index
    %c0_35 = arith.constant 0 : index
    %c0_36 = arith.constant 0 : index
    %33 = vector.load %arg14[%c0_33, %c0_34, %c0_35, %c0_36] : memref<2x8x8x128xf32, #tpu.memory_space<vmem>>, vector<2x8x8x128xf32>
    tpu.vector_store %arg14[%c0_33, %c0_34, %c0_35, %c0_36], %32 {strides = array<i32>} : memref<2x8x8x128xf32, #tpu.memory_space<vmem>>, vector<2x8x8x128xf32>,
    %c0_37 = arith.constant 0 : index
    %c0_38 = arith.constant 0 : index
    %34 = vector.load %arg3[%c0_37, %c0_38] : memref<1x256xf32, #tpu.memory_space<vmem>>, vector<1x256xf32>
    %c0_i32 = arith.constant 0 : i32
    %c8_i32 = arith.constant 8 : i32
    %35 = arith.addi %c0_i32, %c8_i32 : i32
    %c1_i32 = arith.constant 1 : i32
    scf.for %arg17 = %c0_i32 to %35 step %c1_i32  : i32 {
      %c32_i32 = arith.constant 32 : i32
      %163 = arith.muli %arg17, %c32_i32 : i32
      %164 = tpu.assume_multiple %163, 32 : i32
      %cst_174 = arith.constant 0.000000e+00 : f32
      %165 = vector.broadcast %cst_174 : f32 to vector<7x256xf32>
      %cst_175 = arith.constant 0.000000e+00 : f32
      %166 = vector.broadcast %cst_175 : f32 to vector<7x256xf32>
      %cst_176 = arith.constant 0.000000e+00 : f32
      %167 = vector.broadcast %cst_176 : f32 to vector<7x256xf32>
      %cst_177 = arith.constant 0.000000e+00 : f32
      %168 = vector.broadcast %cst_177 : f32 to vector<7x256xf32>
      %c0_178 = arith.constant 0 : index
      %169 = arith.index_cast %164 : i32 to index
      %c0_179 = arith.constant 0 : index
      %170 = vector.load %arg13[%c0_178, %169, %c0_179] : memref<5x256x256xf32, #tpu.memory_space<vmem>>, vector<1x32x256xf32>
      %171 = vector.shape_cast %170 : vector<1x32x256xf32> to vector<32x256xf32>
      %172 = vector.extract_strided_slice %171 {offsets = [0, 0], sizes = [7, 256], strides = [1, 1]} : vector<32x256xf32> to vector<7x256xf32>
      %173 = arith.addf %165, %172 : vector<7x256xf32>
      %174 = vector.extract_strided_slice %171 {offsets = [8, 0], sizes = [7, 256], strides = [1, 1]} : vector<32x256xf32> to vector<7x256xf32>
      %175 = arith.addf %166, %174 : vector<7x256xf32>
      %176 = vector.extract_strided_slice %171 {offsets = [16, 0], sizes = [7, 256], strides = [1, 1]} : vector<32x256xf32> to vector<7x256xf32>
      %177 = arith.addf %167, %176 : vector<7x256xf32>
      %178 = vector.extract_strided_slice %171 {offsets = [24, 0], sizes = [7, 256], strides = [1, 1]} : vector<32x256xf32> to vector<7x256xf32>
      %179 = arith.addf %168, %178 : vector<7x256xf32>
      %c1_180 = arith.constant 1 : index
      %180 = arith.index_cast %164 : i32 to index
      %c0_181 = arith.constant 0 : index
      %181 = vector.load %arg13[%c1_180, %180, %c0_181] : memref<5x256x256xf32, #tpu.memory_space<vmem>>, vector<1x32x256xf32>
      %182 = vector.shape_cast %181 : vector<1x32x256xf32> to vector<32x256xf32>
      %183 = vector.extract_strided_slice %182 {offsets = [8, 0], sizes = [7, 256], strides = [1, 1]} : vector<32x256xf32> to vector<7x256xf32>
      %184 = arith.addf %173, %183 : vector<7x256xf32>
      %185 = vector.extract_strided_slice %182 {offsets = [16, 0], sizes = [7, 256], strides = [1, 1]} : vector<32x256xf32> to vector<7x256xf32>
      %186 = arith.addf %175, %185 : vector<7x256xf32>
      %187 = vector.extract_strided_slice %182 {offsets = [24, 0], sizes = [7, 256], strides = [1, 1]} : vector<32x256xf32> to vector<7x256xf32>
      %188 = arith.addf %177, %187 : vector<7x256xf32>
      %189 = vector.extract_strided_slice %182 {offsets = [1, 0], sizes = [7, 256], strides = [1, 1]} : vector<32x256xf32> to vector<7x256xf32>
      %190 = arith.addf %179, %189 : vector<7x256xf32>
      %c2_182 = arith.constant 2 : index
      %191 = arith.index_cast %164 : i32 to index
      %c0_183 = arith.constant 0 : index
      %192 = vector.load %arg13[%c2_182, %191, %c0_183] : memref<5x256x256xf32, #tpu.memory_space<vmem>>, vector<1x32x256xf32>
      %193 = vector.shape_cast %192 : vector<1x32x256xf32> to vector<32x256xf32>
      %194 = vector.extract_strided_slice %193 {offsets = [16, 0], sizes = [7, 256], strides = [1, 1]} : vector<32x256xf32> to vector<7x256xf32>
      %195 = arith.addf %184, %194 : vector<7x256xf32>
      %196 = vector.extract_strided_slice %193 {offsets = [24, 0], sizes = [7, 256], strides = [1, 1]} : vector<32x256xf32> to vector<7x256xf32>
      %197 = arith.addf %186, %196 : vector<7x256xf32>
      %198 = vector.extract_strided_slice %193 {offsets = [1, 0], sizes = [7, 256], strides = [1, 1]} : vector<32x256xf32> to vector<7x256xf32>
      %199 = arith.addf %188, %198 : vector<7x256xf32>
      %200 = vector.extract_strided_slice %193 {offsets = [9, 0], sizes = [7, 256], strides = [1, 1]} : vector<32x256xf32> to vector<7x256xf32>
      %201 = arith.addf %190, %200 : vector<7x256xf32>
      %c3_184 = arith.constant 3 : index
      %202 = arith.index_cast %164 : i32 to index
      %c0_185 = arith.constant 0 : index
      %203 = vector.load %arg13[%c3_184, %202, %c0_185] : memref<5x256x256xf32, #tpu.memory_space<vmem>>, vector<1x32x256xf32>
      %204 = vector.shape_cast %203 : vector<1x32x256xf32> to vector<32x256xf32>
      %205 = vector.extract_strided_slice %204 {offsets = [24, 0], sizes = [7, 256], strides = [1, 1]} : vector<32x256xf32> to vector<7x256xf32>
      %206 = arith.addf %195, %205 : vector<7x256xf32>
      %207 = vector.extract_strided_slice %204 {offsets = [1, 0], sizes = [7, 256], strides = [1, 1]} : vector<32x256xf32> to vector<7x256xf32>
      %208 = arith.addf %197, %207 : vector<7x256xf32>
      %209 = vector.extract_strided_slice %204 {offsets = [9, 0], sizes = [7, 256], strides = [1, 1]} : vector<32x256xf32> to vector<7x256xf32>
      %210 = arith.addf %199, %209 : vector<7x256xf32>
      %211 = vector.extract_strided_slice %204 {offsets = [17, 0], sizes = [7, 256], strides = [1, 1]} : vector<32x256xf32> to vector<7x256xf32>
      %212 = arith.addf %201, %211 : vector<7x256xf32>
      %c4_186 = arith.constant 4 : index
      %213 = arith.index_cast %164 : i32 to index
      %c0_187 = arith.constant 0 : index
      %214 = vector.load %arg13[%c4_186, %213, %c0_187] : memref<5x256x256xf32, #tpu.memory_space<vmem>>, vector<1x32x256xf32>
      %215 = vector.shape_cast %214 : vector<1x32x256xf32> to vector<32x256xf32>
      %216 = vector.extract_strided_slice %215 {offsets = [1, 0], sizes = [7, 256], strides = [1, 1]} : vector<32x256xf32> to vector<7x256xf32>
      %217 = arith.addf %206, %216 : vector<7x256xf32>
      %218 = vector.extract_strided_slice %215 {offsets = [9, 0], sizes = [7, 256], strides = [1, 1]} : vector<32x256xf32> to vector<7x256xf32>
      %219 = arith.addf %208, %218 : vector<7x256xf32>
      %220 = vector.extract_strided_slice %215 {offsets = [17, 0], sizes = [7, 256], strides = [1, 1]} : vector<32x256xf32> to vector<7x256xf32>
      %221 = arith.addf %210, %220 : vector<7x256xf32>
      %222 = vector.extract_strided_slice %215 {offsets = [25, 0], sizes = [7, 256], strides = [1, 1]} : vector<32x256xf32> to vector<7x256xf32>
      %223 = arith.addf %212, %222 : vector<7x256xf32>
      %224 = vector.broadcast %34 : vector<1x256xf32> to vector<7x256xf32>
      %225 = arith.addf %217, %224 : vector<7x256xf32>
      %cst_188 = arith.constant 0.000000e+00 : f32
      %226 = vector.broadcast %cst_188 : f32 to vector<7x256xf32>
      %227 = arith.maximumf %225, %226 : vector<7x256xf32>
      %228 = vector.broadcast %34 : vector<1x256xf32> to vector<7x256xf32>
      %229 = arith.addf %219, %228 : vector<7x256xf32>
      %cst_189 = arith.constant 0.000000e+00 : f32
      %230 = vector.broadcast %cst_189 : f32 to vector<7x256xf32>
      %231 = arith.maximumf %229, %230 : vector<7x256xf32>
      %232 = vector.broadcast %34 : vector<1x256xf32> to vector<7x256xf32>
      %233 = arith.addf %221, %232 : vector<7x256xf32>
      %cst_190 = arith.constant 0.000000e+00 : f32
      %234 = vector.broadcast %cst_190 : f32 to vector<7x256xf32>
      %235 = arith.maximumf %233, %234 : vector<7x256xf32>
      %236 = vector.broadcast %34 : vector<1x256xf32> to vector<7x256xf32>
      %237 = arith.addf %223, %236 : vector<7x256xf32>
      %cst_191 = arith.constant 0.000000e+00 : f32
      %238 = vector.broadcast %cst_191 : f32 to vector<7x256xf32>
      %239 = arith.maximumf %237, %238 : vector<7x256xf32>
      %240 = arith.maximumf %227, %231 : vector<7x256xf32>
      %241 = arith.maximumf %235, %239 : vector<7x256xf32>
      %242 = vector.extract_strided_slice %240 {offsets = [0, 0], sizes = [7, 128], strides = [1, 1]} : vector<7x256xf32> to vector<7x128xf32>
      %243 = vector.extract_strided_slice %240 {offsets = [0, 128], sizes = [7, 128], strides = [1, 1]} : vector<7x256xf32> to vector<7x128xf32>
      %244 = arith.maximumf %242, %243 : vector<7x128xf32>
      %c0_192 = arith.constant 0 : index
      %245 = arith.index_cast %arg17 : i32 to index
      %c0_193 = arith.constant 0 : index
      %c0_194 = arith.constant 0 : index
      %246 = vector.load %arg14[%c0_192, %245, %c0_193, %c0_194] : memref<2x8x8x128xf32, #tpu.memory_space<vmem>>, vector<1x1x7x128xf32>
      %247 = vector.shape_cast %246 : vector<1x1x7x128xf32> to vector<7x128xf32>
      %248 = vector.shape_cast %244 : vector<7x128xf32> to vector<1x1x7x128xf32>
      tpu.vector_store %arg14[%c0_192, %245, %c0_193, %c0_194], %248 {strides = array<i32>} : memref<2x8x8x128xf32, #tpu.memory_space<vmem>>, vector<1x1x7x128xf32>,
      %249 = vector.extract_strided_slice %241 {offsets = [0, 0], sizes = [7, 128], strides = [1, 1]} : vector<7x256xf32> to vector<7x128xf32>
      %250 = vector.extract_strided_slice %241 {offsets = [0, 128], sizes = [7, 128], strides = [1, 1]} : vector<7x256xf32> to vector<7x128xf32>
      %251 = arith.maximumf %249, %250 : vector<7x128xf32>
      %c1_195 = arith.constant 1 : index
      %252 = arith.index_cast %arg17 : i32 to index
      %c0_196 = arith.constant 0 : index
      %c0_197 = arith.constant 0 : index
      %253 = vector.load %arg14[%c1_195, %252, %c0_196, %c0_197] : memref<2x8x8x128xf32, #tpu.memory_space<vmem>>, vector<1x1x7x128xf32>
      %254 = vector.shape_cast %253 : vector<1x1x7x128xf32> to vector<7x128xf32>
      %255 = vector.shape_cast %251 : vector<7x128xf32> to vector<1x1x7x128xf32>
      tpu.vector_store %arg14[%c1_195, %252, %c0_196, %c0_197], %255 {strides = array<i32>} : memref<2x8x8x128xf32, #tpu.memory_space<vmem>>, vector<1x1x7x128xf32>,
    }
    %c8_i32_39 = arith.constant 8 : i32
    %c0_40 = arith.constant 0 : index
    %c0_41 = arith.constant 0 : index
    %c0_42 = arith.constant 0 : index
    %c0_43 = arith.constant 0 : index
    %36 = vector.load %arg14[%c0_40, %c0_41, %c0_42, %c0_43] : memref<2x8x8x128xf32, #tpu.memory_space<vmem>>, vector<1x8x8x128xf32>
    %37 = vector.shape_cast %36 : vector<1x8x8x128xf32> to vector<8x8x128xf32>
    %38 = vector.shape_cast %37 : vector<8x8x128xf32> to vector<64x128xf32>
    %39 = arith.truncf %38 : vector<64x128xf32> to vector<64x128xbf16>
    %c1_44 = arith.constant 1 : index
    %c0_45 = arith.constant 0 : index
    %c0_46 = arith.constant 0 : index
    %c0_47 = arith.constant 0 : index
    %40 = vector.load %arg14[%c1_44, %c0_45, %c0_46, %c0_47] : memref<2x8x8x128xf32, #tpu.memory_space<vmem>>, vector<1x8x8x128xf32>
    %41 = vector.shape_cast %40 : vector<1x8x8x128xf32> to vector<8x8x128xf32>
    %42 = vector.shape_cast %41 : vector<8x8x128xf32> to vector<64x128xf32>
    %43 = arith.truncf %42 : vector<64x128xf32> to vector<64x128xbf16>
    %c0_48 = arith.constant 0 : index
    %c0_49 = arith.constant 0 : index
    %c0_50 = arith.constant 0 : index
    %44 = vector.load %arg4[%c0_48, %c0_49, %c0_50] : memref<5x128x256xbf16, #tpu.memory_space<vmem>>, vector<1x128x256xbf16>
    %45 = vector.shape_cast %44 : vector<1x128x256xbf16> to vector<128x256xbf16>
    %cst_51 = arith.constant dense<0.000000e+00> : vector<64x256xf32>
    %46 = tpu.matmul %39, %45, %cst_51 {dimension_numbers = #tpu.dot_dimension_numbers<[1], [0], [0], [1], [0, 0, 1, 1], [], []>} : vector<64x128xbf16>, vector<128x256xbf16>, vector<64x256xf32> -> vector<64x256xf32>
    %c0_52 = arith.constant 0 : index
    %c0_53 = arith.constant 0 : index
    %c0_54 = arith.constant 0 : index
    %c0_55 = arith.constant 0 : index
    %47 = vector.load %arg15[%c0_52, %c0_53, %c0_54, %c0_55] : memref<5x2x64x256xf32, #tpu.memory_space<vmem>>, vector<1x1x64x256xf32>
    %48 = vector.shape_cast %47 : vector<1x1x64x256xf32> to vector<64x256xf32>
    %49 = vector.shape_cast %46 : vector<64x256xf32> to vector<1x1x64x256xf32>
    tpu.vector_store %arg15[%c0_52, %c0_53, %c0_54, %c0_55], %49 {strides = array<i32>} : memref<5x2x64x256xf32, #tpu.memory_space<vmem>>, vector<1x1x64x256xf32>,
    %c0_56 = arith.constant 0 : index
    %c0_57 = arith.constant 0 : index
    %c0_58 = arith.constant 0 : index
    %50 = vector.load %arg4[%c0_56, %c0_57, %c0_58] : memref<5x128x256xbf16, #tpu.memory_space<vmem>>, vector<1x128x256xbf16>
    %51 = vector.shape_cast %50 : vector<1x128x256xbf16> to vector<128x256xbf16>
    %cst_59 = arith.constant dense<0.000000e+00> : vector<64x256xf32>
    %52 = tpu.matmul %43, %51, %cst_59 {dimension_numbers = #tpu.dot_dimension_numbers<[1], [0], [0], [1], [0, 0, 1, 1], [], []>} : vector<64x128xbf16>, vector<128x256xbf16>, vector<64x256xf32> -> vector<64x256xf32>
    %c0_60 = arith.constant 0 : index
    %c1_61 = arith.constant 1 : index
    %c0_62 = arith.constant 0 : index
    %c0_63 = arith.constant 0 : index
    %53 = vector.load %arg15[%c0_60, %c1_61, %c0_62, %c0_63] : memref<5x2x64x256xf32, #tpu.memory_space<vmem>>, vector<1x1x64x256xf32>
    %54 = vector.shape_cast %53 : vector<1x1x64x256xf32> to vector<64x256xf32>
    %55 = vector.shape_cast %52 : vector<64x256xf32> to vector<1x1x64x256xf32>
    tpu.vector_store %arg15[%c0_60, %c1_61, %c0_62, %c0_63], %55 {strides = array<i32>} : memref<5x2x64x256xf32, #tpu.memory_space<vmem>>, vector<1x1x64x256xf32>,
    %c1_64 = arith.constant 1 : index
    %c0_65 = arith.constant 0 : index
    %c0_66 = arith.constant 0 : index
    %56 = vector.load %arg4[%c1_64, %c0_65, %c0_66] : memref<5x128x256xbf16, #tpu.memory_space<vmem>>, vector<1x128x256xbf16>
    %57 = vector.shape_cast %56 : vector<1x128x256xbf16> to vector<128x256xbf16>
    %cst_67 = arith.constant dense<0.000000e+00> : vector<64x256xf32>
    %58 = tpu.matmul %39, %57, %cst_67 {dimension_numbers = #tpu.dot_dimension_numbers<[1], [0], [0], [1], [0, 0, 1, 1], [], []>} : vector<64x128xbf16>, vector<128x256xbf16>, vector<64x256xf32> -> vector<64x256xf32>
    %c1_68 = arith.constant 1 : index
    %c0_69 = arith.constant 0 : index
    %c0_70 = arith.constant 0 : index
    %c0_71 = arith.constant 0 : index
    %59 = vector.load %arg15[%c1_68, %c0_69, %c0_70, %c0_71] : memref<5x2x64x256xf32, #tpu.memory_space<vmem>>, vector<1x1x64x256xf32>
    %60 = vector.shape_cast %59 : vector<1x1x64x256xf32> to vector<64x256xf32>
    %61 = vector.shape_cast %58 : vector<64x256xf32> to vector<1x1x64x256xf32>
    tpu.vector_store %arg15[%c1_68, %c0_69, %c0_70, %c0_71], %61 {strides = array<i32>} : memref<5x2x64x256xf32, #tpu.memory_space<vmem>>, vector<1x1x64x256xf32>,
    %c1_72 = arith.constant 1 : index
    %c0_73 = arith.constant 0 : index
    %c0_74 = arith.constant 0 : index
    %62 = vector.load %arg4[%c1_72, %c0_73, %c0_74] : memref<5x128x256xbf16, #tpu.memory_space<vmem>>, vector<1x128x256xbf16>
    %63 = vector.shape_cast %62 : vector<1x128x256xbf16> to vector<128x256xbf16>
    %cst_75 = arith.constant dense<0.000000e+00> : vector<64x256xf32>
    %64 = tpu.matmul %43, %63, %cst_75 {dimension_numbers = #tpu.dot_dimension_numbers<[1], [0], [0], [1], [0, 0, 1, 1], [], []>} : vector<64x128xbf16>, vector<128x256xbf16>, vector<64x256xf32> -> vector<64x256xf32>
    %c1_76 = arith.constant 1 : index
    %c1_77 = arith.constant 1 : index
    %c0_78 = arith.constant 0 : index
    %c0_79 = arith.constant 0 : index
    %65 = vector.load %arg15[%c1_76, %c1_77, %c0_78, %c0_79] : memref<5x2x64x256xf32, #tpu.memory_space<vmem>>, vector<1x1x64x256xf32>
    %66 = vector.shape_cast %65 : vector<1x1x64x256xf32> to vector<64x256xf32>
    %67 = vector.shape_cast %64 : vector<64x256xf32> to vector<1x1x64x256xf32>
    tpu.vector_store %arg15[%c1_76, %c1_77, %c0_78, %c0_79], %67 {strides = array<i32>} : memref<5x2x64x256xf32, #tpu.memory_space<vmem>>, vector<1x1x64x256xf32>,
    %c2_80 = arith.constant 2 : index
    %c0_81 = arith.constant 0 : index
    %c0_82 = arith.constant 0 : index
    %68 = vector.load %arg4[%c2_80, %c0_81, %c0_82] : memref<5x128x256xbf16, #tpu.memory_space<vmem>>, vector<1x128x256xbf16>
    %69 = vector.shape_cast %68 : vector<1x128x256xbf16> to vector<128x256xbf16>
    %cst_83 = arith.constant dense<0.000000e+00> : vector<64x256xf32>
    %70 = tpu.matmul %39, %69, %cst_83 {dimension_numbers = #tpu.dot_dimension_numbers<[1], [0], [0], [1], [0, 0, 1, 1], [], []>} : vector<64x128xbf16>, vector<128x256xbf16>, vector<64x256xf32> -> vector<64x256xf32>
    %c2_84 = arith.constant 2 : index
    %c0_85 = arith.constant 0 : index
    %c0_86 = arith.constant 0 : index
    %c0_87 = arith.constant 0 : index
    %71 = vector.load %arg15[%c2_84, %c0_85, %c0_86, %c0_87] : memref<5x2x64x256xf32, #tpu.memory_space<vmem>>, vector<1x1x64x256xf32>
    %72 = vector.shape_cast %71 : vector<1x1x64x256xf32> to vector<64x256xf32>
    %73 = vector.shape_cast %70 : vector<64x256xf32> to vector<1x1x64x256xf32>
    tpu.vector_store %arg15[%c2_84, %c0_85, %c0_86, %c0_87], %73 {strides = array<i32>} : memref<5x2x64x256xf32, #tpu.memory_space<vmem>>, vector<1x1x64x256xf32>,
    %c2_88 = arith.constant 2 : index
    %c0_89 = arith.constant 0 : index
    %c0_90 = arith.constant 0 : index
    %74 = vector.load %arg4[%c2_88, %c0_89, %c0_90] : memref<5x128x256xbf16, #tpu.memory_space<vmem>>, vector<1x128x256xbf16>
    %75 = vector.shape_cast %74 : vector<1x128x256xbf16> to vector<128x256xbf16>
    %cst_91 = arith.constant dense<0.000000e+00> : vector<64x256xf32>
    %76 = tpu.matmul %43, %75, %cst_91 {dimension_numbers = #tpu.dot_dimension_numbers<[1], [0], [0], [1], [0, 0, 1, 1], [], []>} : vector<64x128xbf16>, vector<128x256xbf16>, vector<64x256xf32> -> vector<64x256xf32>
    %c2_92 = arith.constant 2 : index
    %c1_93 = arith.constant 1 : index
    %c0_94 = arith.constant 0 : index
    %c0_95 = arith.constant 0 : index
    %77 = vector.load %arg15[%c2_92, %c1_93, %c0_94, %c0_95] : memref<5x2x64x256xf32, #tpu.memory_space<vmem>>, vector<1x1x64x256xf32>
    %78 = vector.shape_cast %77 : vector<1x1x64x256xf32> to vector<64x256xf32>
    %79 = vector.shape_cast %76 : vector<64x256xf32> to vector<1x1x64x256xf32>
    tpu.vector_store %arg15[%c2_92, %c1_93, %c0_94, %c0_95], %79 {strides = array<i32>} : memref<5x2x64x256xf32, #tpu.memory_space<vmem>>, vector<1x1x64x256xf32>,
    %c3_96 = arith.constant 3 : index
    %c0_97 = arith.constant 0 : index
    %c0_98 = arith.constant 0 : index
    %80 = vector.load %arg4[%c3_96, %c0_97, %c0_98] : memref<5x128x256xbf16, #tpu.memory_space<vmem>>, vector<1x128x256xbf16>
    %81 = vector.shape_cast %80 : vector<1x128x256xbf16> to vector<128x256xbf16>
    %cst_99 = arith.constant dense<0.000000e+00> : vector<64x256xf32>
    %82 = tpu.matmul %39, %81, %cst_99 {dimension_numbers = #tpu.dot_dimension_numbers<[1], [0], [0], [1], [0, 0, 1, 1], [], []>} : vector<64x128xbf16>, vector<128x256xbf16>, vector<64x256xf32> -> vector<64x256xf32>
    %c3_100 = arith.constant 3 : index
    %c0_101 = arith.constant 0 : index
    %c0_102 = arith.constant 0 : index
    %c0_103 = arith.constant 0 : index
    %83 = vector.load %arg15[%c3_100, %c0_101, %c0_102, %c0_103] : memref<5x2x64x256xf32, #tpu.memory_space<vmem>>, vector<1x1x64x256xf32>
    %84 = vector.shape_cast %83 : vector<1x1x64x256xf32> to vector<64x256xf32>
    %85 = vector.shape_cast %82 : vector<64x256xf32> to vector<1x1x64x256xf32>
    tpu.vector_store %arg15[%c3_100, %c0_101, %c0_102, %c0_103], %85 {strides = array<i32>} : memref<5x2x64x256xf32, #tpu.memory_space<vmem>>, vector<1x1x64x256xf32>,
    %c3_104 = arith.constant 3 : index
    %c0_105 = arith.constant 0 : index
    %c0_106 = arith.constant 0 : index
    %86 = vector.load %arg4[%c3_104, %c0_105, %c0_106] : memref<5x128x256xbf16, #tpu.memory_space<vmem>>, vector<1x128x256xbf16>
    %87 = vector.shape_cast %86 : vector<1x128x256xbf16> to vector<128x256xbf16>
    %cst_107 = arith.constant dense<0.000000e+00> : vector<64x256xf32>
    %88 = tpu.matmul %43, %87, %cst_107 {dimension_numbers = #tpu.dot_dimension_numbers<[1], [0], [0], [1], [0, 0, 1, 1], [], []>} : vector<64x128xbf16>, vector<128x256xbf16>, vector<64x256xf32> -> vector<64x256xf32>
    %c3_108 = arith.constant 3 : index
    %c1_109 = arith.constant 1 : index
    %c0_110 = arith.constant 0 : index
    %c0_111 = arith.constant 0 : index
    %89 = vector.load %arg15[%c3_108, %c1_109, %c0_110, %c0_111] : memref<5x2x64x256xf32, #tpu.memory_space<vmem>>, vector<1x1x64x256xf32>
    %90 = vector.shape_cast %89 : vector<1x1x64x256xf32> to vector<64x256xf32>
    %91 = vector.shape_cast %88 : vector<64x256xf32> to vector<1x1x64x256xf32>
    tpu.vector_store %arg15[%c3_108, %c1_109, %c0_110, %c0_111], %91 {strides = array<i32>} : memref<5x2x64x256xf32, #tpu.memory_space<vmem>>, vector<1x1x64x256xf32>,
    %c4_112 = arith.constant 4 : index
    %c0_113 = arith.constant 0 : index
    %c0_114 = arith.constant 0 : index
    %92 = vector.load %arg4[%c4_112, %c0_113, %c0_114] : memref<5x128x256xbf16, #tpu.memory_space<vmem>>, vector<1x128x256xbf16>
    %93 = vector.shape_cast %92 : vector<1x128x256xbf16> to vector<128x256xbf16>
    %cst_115 = arith.constant dense<0.000000e+00> : vector<64x256xf32>
    %94 = tpu.matmul %39, %93, %cst_115 {dimension_numbers = #tpu.dot_dimension_numbers<[1], [0], [0], [1], [0, 0, 1, 1], [], []>} : vector<64x128xbf16>, vector<128x256xbf16>, vector<64x256xf32> -> vector<64x256xf32>
    %c4_116 = arith.constant 4 : index
    %c0_117 = arith.constant 0 : index
    %c0_118 = arith.constant 0 : index
    %c0_119 = arith.constant 0 : index
    %95 = vector.load %arg15[%c4_116, %c0_117, %c0_118, %c0_119] : memref<5x2x64x256xf32, #tpu.memory_space<vmem>>, vector<1x1x64x256xf32>
    %96 = vector.shape_cast %95 : vector<1x1x64x256xf32> to vector<64x256xf32>
    %97 = vector.shape_cast %94 : vector<64x256xf32> to vector<1x1x64x256xf32>
    tpu.vector_store %arg15[%c4_116, %c0_117, %c0_118, %c0_119], %97 {strides = array<i32>} : memref<5x2x64x256xf32, #tpu.memory_space<vmem>>, vector<1x1x64x256xf32>,
    %c4_120 = arith.constant 4 : index
    %c0_121 = arith.constant 0 : index
    %c0_122 = arith.constant 0 : index
    %98 = vector.load %arg4[%c4_120, %c0_121, %c0_122] : memref<5x128x256xbf16, #tpu.memory_space<vmem>>, vector<1x128x256xbf16>
    %99 = vector.shape_cast %98 : vector<1x128x256xbf16> to vector<128x256xbf16>
    %cst_123 = arith.constant dense<0.000000e+00> : vector<64x256xf32>
    %100 = tpu.matmul %43, %99, %cst_123 {dimension_numbers = #tpu.dot_dimension_numbers<[1], [0], [0], [1], [0, 0, 1, 1], [], []>} : vector<64x128xbf16>, vector<128x256xbf16>, vector<64x256xf32> -> vector<64x256xf32>
    %c4_124 = arith.constant 4 : index
    %c1_125 = arith.constant 1 : index
    %c0_126 = arith.constant 0 : index
    %c0_127 = arith.constant 0 : index
    %101 = vector.load %arg15[%c4_124, %c1_125, %c0_126, %c0_127] : memref<5x2x64x256xf32, #tpu.memory_space<vmem>>, vector<1x1x64x256xf32>
    %102 = vector.shape_cast %101 : vector<1x1x64x256xf32> to vector<64x256xf32>
    %103 = vector.shape_cast %100 : vector<64x256xf32> to vector<1x1x64x256xf32>
    tpu.vector_store %arg15[%c4_124, %c1_125, %c0_126, %c0_127], %103 {strides = array<i32>} : memref<5x2x64x256xf32, #tpu.memory_space<vmem>>, vector<1x1x64x256xf32>,
    %c0_128 = arith.constant 0 : index
    %c0_129 = arith.constant 0 : index
    %104 = vector.load %arg5[%c0_128, %c0_129] : memref<1x256xf32, #tpu.memory_space<vmem>>, vector<1x256xf32>
    %c0_i32_130 = arith.constant 0 : i32
    %c8_i32_131 = arith.constant 8 : i32
    %105 = arith.addi %c0_i32_130, %c8_i32_131 : i32
    %c1_i32_132 = arith.constant 1 : i32
    scf.for %arg17 = %c0_i32_130 to %105 step %c1_i32_132  : i32 {
      %c8_i32_174 = arith.constant 8 : i32
      %163 = arith.muli %arg17, %c8_i32_174 : i32
      %164 = tpu.assume_multiple %163, 8 : i32
      %cst_175 = arith.constant 0.000000e+00 : f32
      %165 = vector.broadcast %cst_175 : f32 to vector<5x256xf32>
      %cst_176 = arith.constant 0.000000e+00 : f32
      %166 = vector.broadcast %cst_176 : f32 to vector<5x256xf32>
      %c0_177 = arith.constant 0 : index
      %c0_178 = arith.constant 0 : index
      %167 = arith.index_cast %164 : i32 to index
      %c0_179 = arith.constant 0 : index
      %168 = vector.load %arg15[%c0_177, %c0_178, %167, %c0_179] : memref<5x2x64x256xf32, #tpu.memory_space<vmem>>, vector<1x1x8x256xf32>
      %169 = vector.shape_cast %168 : vector<1x1x8x256xf32> to vector<8x256xf32>
      %c0_180 = arith.constant 0 : index
      %c1_181 = arith.constant 1 : index
      %170 = arith.index_cast %164 : i32 to index
      %c0_182 = arith.constant 0 : index
      %171 = vector.load %arg15[%c0_180, %c1_181, %170, %c0_182] : memref<5x2x64x256xf32, #tpu.memory_space<vmem>>, vector<1x1x8x256xf32>
      %172 = vector.shape_cast %171 : vector<1x1x8x256xf32> to vector<8x256xf32>
      %173 = vector.extract_strided_slice %169 {offsets = [0, 0], sizes = [5, 256], strides = [1, 1]} : vector<8x256xf32> to vector<5x256xf32>
      %174 = arith.addf %165, %173 : vector<5x256xf32>
      %175 = vector.extract_strided_slice %172 {offsets = [0, 0], sizes = [5, 256], strides = [1, 1]} : vector<8x256xf32> to vector<5x256xf32>
      %176 = arith.addf %166, %175 : vector<5x256xf32>
      %c1_183 = arith.constant 1 : index
      %c0_184 = arith.constant 0 : index
      %177 = arith.index_cast %164 : i32 to index
      %c0_185 = arith.constant 0 : index
      %178 = vector.load %arg15[%c1_183, %c0_184, %177, %c0_185] : memref<5x2x64x256xf32, #tpu.memory_space<vmem>>, vector<1x1x8x256xf32>
      %179 = vector.shape_cast %178 : vector<1x1x8x256xf32> to vector<8x256xf32>
      %c1_186 = arith.constant 1 : index
      %c1_187 = arith.constant 1 : index
      %180 = arith.index_cast %164 : i32 to index
      %c0_188 = arith.constant 0 : index
      %181 = vector.load %arg15[%c1_186, %c1_187, %180, %c0_188] : memref<5x2x64x256xf32, #tpu.memory_space<vmem>>, vector<1x1x8x256xf32>
      %182 = vector.shape_cast %181 : vector<1x1x8x256xf32> to vector<8x256xf32>
      %183 = vector.extract_strided_slice %182 {offsets = [0, 0], sizes = [5, 256], strides = [1, 1]} : vector<8x256xf32> to vector<5x256xf32>
      %184 = arith.addf %174, %183 : vector<5x256xf32>
      %185 = vector.extract_strided_slice %179 {offsets = [1, 0], sizes = [5, 256], strides = [1, 1]} : vector<8x256xf32> to vector<5x256xf32>
      %186 = arith.addf %176, %185 : vector<5x256xf32>
      %c2_189 = arith.constant 2 : index
      %c0_190 = arith.constant 0 : index
      %187 = arith.index_cast %164 : i32 to index
      %c0_191 = arith.constant 0 : index
      %188 = vector.load %arg15[%c2_189, %c0_190, %187, %c0_191] : memref<5x2x64x256xf32, #tpu.memory_space<vmem>>, vector<1x1x8x256xf32>
      %189 = vector.shape_cast %188 : vector<1x1x8x256xf32> to vector<8x256xf32>
      %c2_192 = arith.constant 2 : index
      %c1_193 = arith.constant 1 : index
      %190 = arith.index_cast %164 : i32 to index
      %c0_194 = arith.constant 0 : index
      %191 = vector.load %arg15[%c2_192, %c1_193, %190, %c0_194] : memref<5x2x64x256xf32, #tpu.memory_space<vmem>>, vector<1x1x8x256xf32>
      %192 = vector.shape_cast %191 : vector<1x1x8x256xf32> to vector<8x256xf32>
      %193 = vector.extract_strided_slice %189 {offsets = [1, 0], sizes = [5, 256], strides = [1, 1]} : vector<8x256xf32> to vector<5x256xf32>
      %194 = arith.addf %184, %193 : vector<5x256xf32>
      %195 = vector.extract_strided_slice %192 {offsets = [1, 0], sizes = [5, 256], strides = [1, 1]} : vector<8x256xf32> to vector<5x256xf32>
      %196 = arith.addf %186, %195 : vector<5x256xf32>
      %c3_195 = arith.constant 3 : index
      %c0_196 = arith.constant 0 : index
      %197 = arith.index_cast %164 : i32 to index
      %c0_197 = arith.constant 0 : index
      %198 = vector.load %arg15[%c3_195, %c0_196, %197, %c0_197] : memref<5x2x64x256xf32, #tpu.memory_space<vmem>>, vector<1x1x8x256xf32>
      %199 = vector.shape_cast %198 : vector<1x1x8x256xf32> to vector<8x256xf32>
      %c3_198 = arith.constant 3 : index
      %c1_199 = arith.constant 1 : index
      %200 = arith.index_cast %164 : i32 to index
      %c0_200 = arith.constant 0 : index
      %201 = vector.load %arg15[%c3_198, %c1_199, %200, %c0_200] : memref<5x2x64x256xf32, #tpu.memory_space<vmem>>, vector<1x1x8x256xf32>
      %202 = vector.shape_cast %201 : vector<1x1x8x256xf32> to vector<8x256xf32>
      %203 = vector.extract_strided_slice %202 {offsets = [1, 0], sizes = [5, 256], strides = [1, 1]} : vector<8x256xf32> to vector<5x256xf32>
      %204 = arith.addf %194, %203 : vector<5x256xf32>
      %205 = vector.extract_strided_slice %199 {offsets = [2, 0], sizes = [5, 256], strides = [1, 1]} : vector<8x256xf32> to vector<5x256xf32>
      %206 = arith.addf %196, %205 : vector<5x256xf32>
      %c4_201 = arith.constant 4 : index
      %c0_202 = arith.constant 0 : index
      %207 = arith.index_cast %164 : i32 to index
      %c0_203 = arith.constant 0 : index
      %208 = vector.load %arg15[%c4_201, %c0_202, %207, %c0_203] : memref<5x2x64x256xf32, #tpu.memory_space<vmem>>, vector<1x1x8x256xf32>
      %209 = vector.shape_cast %208 : vector<1x1x8x256xf32> to vector<8x256xf32>
      %c4_204 = arith.constant 4 : index
      %c1_205 = arith.constant 1 : index
      %210 = arith.index_cast %164 : i32 to index
      %c0_206 = arith.constant 0 : index
      %211 = vector.load %arg15[%c4_204, %c1_205, %210, %c0_206] : memref<5x2x64x256xf32, #tpu.memory_space<vmem>>, vector<1x1x8x256xf32>
      %212 = vector.shape_cast %211 : vector<1x1x8x256xf32> to vector<8x256xf32>
      %213 = vector.extract_strided_slice %209 {offsets = [2, 0], sizes = [5, 256], strides = [1, 1]} : vector<8x256xf32> to vector<5x256xf32>
      %214 = arith.addf %204, %213 : vector<5x256xf32>
      %215 = vector.extract_strided_slice %212 {offsets = [2, 0], sizes = [5, 256], strides = [1, 1]} : vector<8x256xf32> to vector<5x256xf32>
      %216 = arith.addf %206, %215 : vector<5x256xf32>
      %217 = vector.broadcast %104 : vector<1x256xf32> to vector<5x256xf32>
      %218 = arith.addf %214, %217 : vector<5x256xf32>
      %cst_207 = arith.constant 0.000000e+00 : f32
      %219 = vector.broadcast %cst_207 : f32 to vector<5x256xf32>
      %220 = arith.maximumf %218, %219 : vector<5x256xf32>
      %221 = vector.broadcast %104 : vector<1x256xf32> to vector<5x256xf32>
      %222 = arith.addf %216, %221 : vector<5x256xf32>
      %cst_208 = arith.constant 0.000000e+00 : f32
      %223 = vector.broadcast %cst_208 : f32 to vector<5x256xf32>
      %224 = arith.maximumf %222, %223 : vector<5x256xf32>
      %225 = arith.maximumf %220, %224 : vector<5x256xf32>
      %226 = vector.extract_strided_slice %225 {offsets = [0, 0], sizes = [5, 128], strides = [1, 1]} : vector<5x256xf32> to vector<5x128xf32>
      %227 = vector.extract_strided_slice %225 {offsets = [0, 128], sizes = [5, 128], strides = [1, 1]} : vector<5x256xf32> to vector<5x128xf32>
      %228 = arith.maximumf %226, %227 : vector<5x128xf32>
      %229 = arith.index_cast %arg17 : i32 to index
      %c0_209 = arith.constant 0 : index
      %c0_210 = arith.constant 0 : index
      %230 = vector.load %arg16[%229, %c0_209, %c0_210] : memref<8x8x128xf32, #tpu.memory_space<vmem>>, vector<1x5x128xf32>
      %231 = vector.shape_cast %230 : vector<1x5x128xf32> to vector<5x128xf32>
      %232 = vector.shape_cast %228 : vector<5x128xf32> to vector<1x5x128xf32>
      tpu.vector_store %arg16[%229, %c0_209, %c0_210], %232 {strides = array<i32>} : memref<8x8x128xf32, #tpu.memory_space<vmem>>, vector<1x5x128xf32>,
    }
    %c8_i32_133 = arith.constant 8 : i32
    %c0_134 = arith.constant 0 : index
    %c0_135 = arith.constant 0 : index
    %c0_136 = arith.constant 0 : index
    %106 = vector.load %arg16[%c0_134, %c0_135, %c0_136] : memref<8x8x128xf32, #tpu.memory_space<vmem>>, vector<8x8x128xf32>
    %cst_137 = arith.constant 0.000000e+00 : f32
    %107 = vector.broadcast %cst_137 : f32 to vector<8x128xf32>
    %108 = vector.extract_strided_slice %106 {offsets = [0, 0, 0], sizes = [8, 1, 128], strides = [1, 1, 1]} : vector<8x8x128xf32> to vector<8x1x128xf32>
    %109 = vector.shape_cast %108 : vector<8x1x128xf32> to vector<8x128xf32>
    %110 = arith.truncf %109 : vector<8x128xf32> to vector<8x128xbf16>
    %c0_138 = arith.constant 0 : index
    %c0_139 = arith.constant 0 : index
    %c0_140 = arith.constant 0 : index
    %111 = vector.load %arg6[%c0_138, %c0_139, %c0_140] : memref<5x128x128xbf16, #tpu.memory_space<vmem>>, vector<1x128x128xbf16>
    %112 = vector.shape_cast %111 : vector<1x128x128xbf16> to vector<128x128xbf16>
    %cst_141 = arith.constant dense<0.000000e+00> : vector<8x128xf32>
    %113 = tpu.matmul %110, %112, %cst_141 {dimension_numbers = #tpu.dot_dimension_numbers<[1], [0], [0], [1], [0, 0, 1, 1], [], []>} : vector<8x128xbf16>, vector<128x128xbf16>, vector<8x128xf32> -> vector<8x128xf32>
    %114 = arith.addf %107, %113 : vector<8x128xf32>
    %115 = vector.extract_strided_slice %106 {offsets = [0, 1, 0], sizes = [8, 1, 128], strides = [1, 1, 1]} : vector<8x8x128xf32> to vector<8x1x128xf32>
    %116 = vector.shape_cast %115 : vector<8x1x128xf32> to vector<8x128xf32>
    %117 = arith.truncf %116 : vector<8x128xf32> to vector<8x128xbf16>
    %c1_142 = arith.constant 1 : index
    %c0_143 = arith.constant 0 : index
    %c0_144 = arith.constant 0 : index
    %118 = vector.load %arg6[%c1_142, %c0_143, %c0_144] : memref<5x128x128xbf16, #tpu.memory_space<vmem>>, vector<1x128x128xbf16>
    %119 = vector.shape_cast %118 : vector<1x128x128xbf16> to vector<128x128xbf16>
    %cst_145 = arith.constant dense<0.000000e+00> : vector<8x128xf32>
    %120 = tpu.matmul %117, %119, %cst_145 {dimension_numbers = #tpu.dot_dimension_numbers<[1], [0], [0], [1], [0, 0, 1, 1], [], []>} : vector<8x128xbf16>, vector<128x128xbf16>, vector<8x128xf32> -> vector<8x128xf32>
    %121 = arith.addf %114, %120 : vector<8x128xf32>
    %122 = vector.extract_strided_slice %106 {offsets = [0, 2, 0], sizes = [8, 1, 128], strides = [1, 1, 1]} : vector<8x8x128xf32> to vector<8x1x128xf32>
    %123 = vector.shape_cast %122 : vector<8x1x128xf32> to vector<8x128xf32>
    %124 = arith.truncf %123 : vector<8x128xf32> to vector<8x128xbf16>
    %c2_146 = arith.constant 2 : index
    %c0_147 = arith.constant 0 : index
    %c0_148 = arith.constant 0 : index
    %125 = vector.load %arg6[%c2_146, %c0_147, %c0_148] : memref<5x128x128xbf16, #tpu.memory_space<vmem>>, vector<1x128x128xbf16>
    %126 = vector.shape_cast %125 : vector<1x128x128xbf16> to vector<128x128xbf16>
    %cst_149 = arith.constant dense<0.000000e+00> : vector<8x128xf32>
    %127 = tpu.matmul %124, %126, %cst_149 {dimension_numbers = #tpu.dot_dimension_numbers<[1], [0], [0], [1], [0, 0, 1, 1], [], []>} : vector<8x128xbf16>, vector<128x128xbf16>, vector<8x128xf32> -> vector<8x128xf32>
    %128 = arith.addf %121, %127 : vector<8x128xf32>
    %129 = vector.extract_strided_slice %106 {offsets = [0, 3, 0], sizes = [8, 1, 128], strides = [1, 1, 1]} : vector<8x8x128xf32> to vector<8x1x128xf32>
    %130 = vector.shape_cast %129 : vector<8x1x128xf32> to vector<8x128xf32>
    %131 = arith.truncf %130 : vector<8x128xf32> to vector<8x128xbf16>
    %c3_150 = arith.constant 3 : index
    %c0_151 = arith.constant 0 : index
    %c0_152 = arith.constant 0 : index
    %132 = vector.load %arg6[%c3_150, %c0_151, %c0_152] : memref<5x128x128xbf16, #tpu.memory_space<vmem>>, vector<1x128x128xbf16>
    %133 = vector.shape_cast %132 : vector<1x128x128xbf16> to vector<128x128xbf16>
    %cst_153 = arith.constant dense<0.000000e+00> : vector<8x128xf32>
    %134 = tpu.matmul %131, %133, %cst_153 {dimension_numbers = #tpu.dot_dimension_numbers<[1], [0], [0], [1], [0, 0, 1, 1], [], []>} : vector<8x128xbf16>, vector<128x128xbf16>, vector<8x128xf32> -> vector<8x128xf32>
    %135 = arith.addf %128, %134 : vector<8x128xf32>
    %136 = vector.extract_strided_slice %106 {offsets = [0, 4, 0], sizes = [8, 1, 128], strides = [1, 1, 1]} : vector<8x8x128xf32> to vector<8x1x128xf32>
    %137 = vector.shape_cast %136 : vector<8x1x128xf32> to vector<8x128xf32>
    %138 = arith.truncf %137 : vector<8x128xf32> to vector<8x128xbf16>
    %c4_154 = arith.constant 4 : index
    %c0_155 = arith.constant 0 : index
    %c0_156 = arith.constant 0 : index
    %139 = vector.load %arg6[%c4_154, %c0_155, %c0_156] : memref<5x128x128xbf16, #tpu.memory_space<vmem>>, vector<1x128x128xbf16>
    %140 = vector.shape_cast %139 : vector<1x128x128xbf16> to vector<128x128xbf16>
    %cst_157 = arith.constant dense<0.000000e+00> : vector<8x128xf32>
    %141 = tpu.matmul %138, %140, %cst_157 {dimension_numbers = #tpu.dot_dimension_numbers<[1], [0], [0], [1], [0, 0, 1, 1], [], []>} : vector<8x128xbf16>, vector<128x128xbf16>, vector<8x128xf32> -> vector<8x128xf32>
    %142 = arith.addf %135, %141 : vector<8x128xf32>
    %c0_158 = arith.constant 0 : index
    %c0_159 = arith.constant 0 : index
    %143 = vector.load %arg7[%c0_158, %c0_159] : memref<1x128xf32, #tpu.memory_space<vmem>>, vector<1x128xf32>
    %144 = vector.broadcast %143 : vector<1x128xf32> to vector<8x128xf32>
    %145 = arith.addf %142, %144 : vector<8x128xf32>
    %cst_160 = arith.constant 0.000000e+00 : f32
    %146 = vector.broadcast %cst_160 : f32 to vector<8x128xf32>
    %147 = arith.maximumf %145, %146 : vector<8x128xf32>
    %148 = arith.truncf %147 : vector<8x128xf32> to vector<8x128xbf16>
    %c0_161 = arith.constant 0 : index
    %c0_162 = arith.constant 0 : index
    %149 = vector.load %arg8[%c0_161, %c0_162] : memref<128x128xbf16, #tpu.memory_space<vmem>>, vector<128x128xbf16>
    %cst_163 = arith.constant dense<0.000000e+00> : vector<8x128xf32>
    %150 = tpu.matmul %148, %149, %cst_163 {dimension_numbers = #tpu.dot_dimension_numbers<[1], [0], [0], [1], [0, 0, 1, 1], [], []>} : vector<8x128xbf16>, vector<128x128xbf16>, vector<8x128xf32> -> vector<8x128xf32>
    %c0_164 = arith.constant 0 : index
    %c0_165 = arith.constant 0 : index
    %151 = vector.load %arg9[%c0_164, %c0_165] : memref<1x128xf32, #tpu.memory_space<vmem>>, vector<1x128xf32>
    %152 = vector.broadcast %151 : vector<1x128xf32> to vector<8x128xf32>
    %153 = arith.addf %150, %152 : vector<8x128xf32>
    %cst_166 = arith.constant 0.000000e+00 : f32
    %154 = vector.broadcast %cst_166 : f32 to vector<8x128xf32>
    %155 = arith.maximumf %153, %154 : vector<8x128xf32>
    %156 = arith.truncf %155 : vector<8x128xf32> to vector<8x128xbf16>
    %c0_167 = arith.constant 0 : index
    %c0_168 = arith.constant 0 : index
    %157 = vector.load %arg10[%c0_167, %c0_168] : memref<128x128xbf16, #tpu.memory_space<vmem>>, vector<128x128xbf16>
    %cst_169 = arith.constant dense<0.000000e+00> : vector<8x128xf32>
    %158 = tpu.matmul %156, %157, %cst_169 {dimension_numbers = #tpu.dot_dimension_numbers<[1], [0], [0], [1], [0, 0, 1, 1], [], []>} : vector<8x128xbf16>, vector<128x128xbf16>, vector<8x128xf32> -> vector<8x128xf32>
    %c0_170 = arith.constant 0 : index
    %c0_171 = arith.constant 0 : index
    %159 = vector.load %arg11[%c0_170, %c0_171] : memref<1x128xf32, #tpu.memory_space<vmem>>, vector<1x128xf32>
    %160 = vector.broadcast %159 : vector<1x128xf32> to vector<8x128xf32>
    %161 = arith.addf %158, %160 : vector<8x128xf32>
    %c0_172 = arith.constant 0 : index
    %c0_173 = arith.constant 0 : index
    %162 = vector.load %arg12[%c0_172, %c0_173] : memref<8x128xf32, #tpu.memory_space<vmem>>, vector<8x128xf32>
    tpu.vector_store %arg12[%c0_172, %c0_173], %161 {strides = array<i32>} : memref<8x128xf32, #tpu.memory_space<vmem>>, vector<8x128xf32>,
    return
  }
  func.func @transform_0(%arg0: i32) -> (i32, i32, i32) {
    %c0_i32 = arith.constant 0 : i32
    %c0_i32_0 = arith.constant 0 : i32
    %c0_i32_1 = arith.constant 0 : i32
    return %arg0, %c0_i32, %c0_i32_0 : i32, i32, i32
  }
  func.func @transform_1(%arg0: i32) -> (i32, i32, i32) {
    %c0_i32 = arith.constant 0 : i32
    %c0_i32_0 = arith.constant 0 : i32
    %c0_i32_1 = arith.constant 0 : i32
    %c0_i32_2 = arith.constant 0 : i32
    return %c0_i32, %c0_i32_0, %c0_i32_1 : i32, i32, i32
  }
  func.func @transform_2(%arg0: i32) -> (i32, i32) {
    %c0_i32 = arith.constant 0 : i32
    %c0_i32_0 = arith.constant 0 : i32
    %c0_i32_1 = arith.constant 0 : i32
    return %c0_i32, %c0_i32_0 : i32, i32
  }
  func.func @transform_3(%arg0: i32) -> (i32, i32, i32) {
    %c0_i32 = arith.constant 0 : i32
    %c0_i32_0 = arith.constant 0 : i32
    %c0_i32_1 = arith.constant 0 : i32
    %c0_i32_2 = arith.constant 0 : i32
    return %c0_i32, %c0_i32_0, %c0_i32_1 : i32, i32, i32
  }
  func.func @transform_4(%arg0: i32) -> (i32, i32) {
    %c0_i32 = arith.constant 0 : i32
    %c0_i32_0 = arith.constant 0 : i32
    %c0_i32_1 = arith.constant 0 : i32
    return %c0_i32, %c0_i32_0 : i32, i32
  }
  func.func @transform_5(%arg0: i32) -> (i32, i32, i32) {
    %c0_i32 = arith.constant 0 : i32
    %c0_i32_0 = arith.constant 0 : i32
    %c0_i32_1 = arith.constant 0 : i32
    %c0_i32_2 = arith.constant 0 : i32
    return %c0_i32, %c0_i32_0, %c0_i32_1 : i32, i32, i32
  }
  func.func @transform_6(%arg0: i32) -> (i32, i32) {
    %c0_i32 = arith.constant 0 : i32
    %c0_i32_0 = arith.constant 0 : i32
    %c0_i32_1 = arith.constant 0 : i32
    return %c0_i32, %c0_i32_0 : i32, i32
  }
  func.func @transform_7(%arg0: i32) -> (i32, i32) {
    %c0_i32 = arith.constant 0 : i32
    %c0_i32_0 = arith.constant 0 : i32
    %c0_i32_1 = arith.constant 0 : i32
    return %c0_i32, %c0_i32_0 : i32, i32
  }
  func.func @transform_8(%arg0: i32) -> (i32, i32) {
    %c0_i32 = arith.constant 0 : i32
    %c0_i32_0 = arith.constant 0 : i32
    %c0_i32_1 = arith.constant 0 : i32
    return %c0_i32, %c0_i32_0 : i32, i32
  }
  func.func @transform_9(%arg0: i32) -> (i32, i32) {
    %c0_i32 = arith.constant 0 : i32
    %c0_i32_0 = arith.constant 0 : i32
    %c0_i32_1 = arith.constant 0 : i32
    return %c0_i32, %c0_i32_0 : i32, i32
  }
  func.func @transform_10(%arg0: i32) -> (i32, i32) {
    %c0_i32 = arith.constant 0 : i32
    %c0_i32_0 = arith.constant 0 : i32
    %c0_i32_1 = arith.constant 0 : i32
    return %c0_i32, %c0_i32_0 : i32, i32
  }
  func.func @transform_11(%arg0: i32) -> (i32, i32) {
    %c0_i32 = arith.constant 0 : i32
    %c0_i32_0 = arith.constant 0 : i32
    return %arg0, %c0_i32 : i32, i32
  }
}

</mosaic_0001>

<llo_original>
// kernel: net_forward.1
$region0: #{net_forward.1}
  #allocation0 [shape = 'u32[]', space=smem, size = 0x4, offset = 0x4, fixed_abs, tag = 'smem constant byte address 0x4 - core index']
  #allocation1 [shape = 'u32[144,128]{1,0:T(1,128)}', space=vmem, size = 0x12000, scoped, tag = 'internal scratch']
  #allocation2 [shape = 'f32[5,256,256]{2,1,0:T(8,128)}', space=vmem, size = 0x140000, scoped, tag = 'scratch operand']
  #allocation3 [shape = 'f32[2,8,8,128]{3,2,1,0:T(8,128)}', space=vmem, size = 0x10000, scoped, tag = 'scratch operand']
  #allocation4 [shape = 'f32[5,2,64,256]{3,2,1,0:T(8,128)}', space=vmem, size = 0xa0000, scoped, tag = 'scratch operand']
  #allocation5 [shape = 'f32[8,8,128]{2,1,0:T(8,128)}', space=vmem, size = 0x8000, scoped, tag = 'scratch operand']
  %s0 = inlined_call_operand.vmem [shape: bf16[16,32,128], index: 0, kind: input, shape index: {}]
  %s1 = inlined_call_operand.vmem [shape: bf16[5,128,256], index: 1, kind: input, shape index: {}]
  %s2 = inlined_call_operand.vmem [shape: f32[1,256], index: 2, kind: input, shape index: {}]
  %s3 = inlined_call_operand.vmem [shape: bf16[5,128,256], index: 3, kind: input, shape index: {}]
  %s4 = inlined_call_operand.vmem [shape: f32[1,256], index: 4, kind: input, shape index: {}]
  %s5 = inlined_call_operand.vmem [shape: bf16[5,128,128], index: 5, kind: input, shape index: {}]
  %s6 = inlined_call_operand.vmem [shape: f32[1,128], index: 6, kind: input, shape index: {}]
  %s7 = inlined_call_operand.vmem [shape: bf16[128,128], index: 7, kind: input, shape index: {}]
  %s8 = inlined_call_operand.vmem [shape: f32[1,128], index: 8, kind: input, shape index: {}]
  %s9 = inlined_call_operand.vmem [shape: bf16[128,128], index: 9, kind: input, shape index: {}]
  %s10 = inlined_call_operand.vmem [shape: f32[1,128], index: 10, kind: input, shape index: {}]
  %s11 = inlined_call_operand.hbm [shape: f32[16,128], index: 11, kind: output, shape index: {}]
  %s12 = sld [smem:[#allocation0]]
  $region91: #{net_forward.1} parent=0
    _
  %s14 = ssub.s32 1, %s12
  %s15 = scalar_select 0, %s14, %s12
  $region1: #{net_forward.1} parent=0
    #allocation6 [shape = 'u8[8192]{0}', space=vmem, size = 0x2000, scoped, tag = 'output window, operand 0']
    #allocation7 [shape = 's32[2]{0}', space=sflag, size = 0x8, scoped, tag = 'scoped memory for net_forward.1']
    %16 = vsyncpa [#allocation7], 0
    %s17 = scalar_lea.sflag [#allocation7], 1
    %18 = vsyncpa %s17, 0
    loop: start=0, step=1, limit=4
    $region2: #{net_forward.1} parent=1 // loop_pre_header
      _
    $region3: #{net_forward.1} parent=1 // loop_header
      %s20 = sphi 0, %s24
      %p21 = scmp.ge.s32.totalorder %s20, 4
      %s30 = sphi 0, %s32
      %s33 = sphi 0, %s30
      %s34 = sphi 0, %s33
      %s50 = sphi 0, %s34
      %s54 = sphi 0, %s54
      %s56 = sphi 0, %s54
      %s57 = sphi 0, %s56
      %s71 = sphi 0, %s57
      %s75 = sphi 0, %s75
      %s77 = sphi 0, %s75
      %s78 = sphi 0, %s77
      %s92 = sphi 0, %s78
      %s96 = sphi 0, %s96
      %s98 = sphi 0, %s96
      %s99 = sphi 0, %s98
      %s113 = sphi 0, %s99
      %s117 = sphi 0, %s117
      %s119 = sphi 0, %s117
      %s120 = sphi 0, %s119
      %s134 = sphi 0, %s120
      %s138 = sphi 0, %s138
      %s140 = sphi 0, %s138
      %s141 = sphi 0, %s140
      %s155 = sphi 0, %s141
      %s159 = sphi 0, %s159
      %s161 = sphi 0, %s159
      %s162 = sphi 0, %s161
      %s176 = sphi 0, %s162
      %s180 = sphi 0, %s180
      %s182 = sphi 0, %s180
      %s183 = sphi 0, %s182
      %s197 = sphi 0, %s183
      %s201 = sphi 0, %s201
      %s203 = sphi 0, %s201
      %s204 = sphi 0, %s203
      %s218 = sphi 0, %s204
      %s222 = sphi 0, %s222
      %s224 = sphi 0, %s222
      %s225 = sphi 0, %s224
      %s239 = sphi 0, %s225
      %s243 = sphi 0, %s243
      %s245 = sphi 0, %s243
      %s246 = sphi 0, %s245
      %s260 = sphi 0, %s246
      %s266 = sphi 0, %s268
      %s269 = sphi 0, %s266
      %s270 = sphi 0, %s269
      %s286 = sphi 0, %s270
    $region4: #{net_forward.1} parent=1 // loop_header_branch
      %23 = sbr.rel (%p21) target = $region8
    $region5: #{net_forward.1} parent=1 // loop_body
      %s25 = ssub.s32 %s20, 1
      %s26 = ssub.s32 %s20, 2
      %s27 = sadd.s32 %s20, 1
      %s28 = ssub.s32 %s20, %s27
      %p29 = scmp.eq.s32.totalorder %s28, 0
      %s31 = sadd.s32 %s30, 1
      %s32 = scalar_select %p29, %s30, %s31
      %p35 = pneg %p29
      %p36 = scmp.eq.s32.totalorder %s20, 1
      %p37 = por %p35, %p36
      %p38 = scmp.ne.s32.totalorder %s30, %s33
      %p39 = scmp.eq.s32.totalorder %s20, 0
      %p40 = por %p38, %p39
      %p41 = scmp.ne.s32.totalorder %s30, %s33
      %p42 = scmp.eq.s32.totalorder %s25, 1
      %p43 = por %p41, %p42
      %p44 = scmp.ne.s32.totalorder %s33, %s34
      %p45 = scmp.eq.s32.totalorder %s25, 0
      %p46 = por %p44, %p45
      %p47 = scmp.ne.s32.totalorder %s33, %s34
      %p48 = scmp.eq.s32.totalorder %s26, 1
      %p49 = por %p47, %p48
      %p51 = scmp.ne.s32.totalorder %s34, %s50
      %p52 = scmp.eq.s32.totalorder %s26, 0
      %p53 = por %p51, %p52
      %s55 = sadd.s32 %s54, 1
      %p58 = scmp.eq.s32.totalorder %s20, 1
      %p59 = scmp.ne.s32.totalorder %s54, %s56
      %p60 = scmp.eq.s32.totalorder %s20, 0
      %p61 = por %p59, %p60
      %p62 = scmp.ne.s32.totalorder %s54, %s56
      %p63 = scmp.eq.s32.totalorder %s25, 1
      %p64 = por %p62, %p63
      %p65 = scmp.ne.s32.totalorder %s56, %s57
      %p66 = scmp.eq.s32.totalorder %s25, 0
      %p67 = por %p65, %p66
      %p68 = scmp.ne.s32.totalorder %s56, %s57
      %p69 = scmp.eq.s32.totalorder %s26, 1
      %p70 = por %p68, %p69
      %p72 = scmp.ne.s32.totalorder %s57, %s71
      %p73 = scmp.eq.s32.totalorder %s26, 0
      %p74 = por %p72, %p73
      %s76 = sadd.s32 %s75, 1
      %p79 = scmp.eq.s32.totalorder %s20, 1
      %p80 = scmp.ne.s32.totalorder %s75, %s77
      %p81 = scmp.eq.s32.totalorder %s20, 0
      %p82 = por %p80, %p81
      %p83 = scmp.ne.s32.totalorder %s75, %s77
      %p84 = scmp.eq.s32.totalorder %s25, 1
      %p85 = por %p83, %p84
      %p86 = scmp.ne.s32.totalorder %s77, %s78
      %p87 = scmp.eq.s32.totalorder %s25, 0
      %p88 = por %p86, %p87
      %p89 = scmp.ne.s32.totalorder %s77, %s78
      %p90 = scmp.eq.s32.totalorder %s26, 1
      %p91 = por %p89, %p90
      %p93 = scmp.ne.s32.totalorder %s78, %s92
      %p94 = scmp.eq.s32.totalorder %s26, 0
      %p95 = por %p93, %p94
      %s97 = sadd.s32 %s96, 1
      %p100 = scmp.eq.s32.totalorder %s20, 1
      %p101 = scmp.ne.s32.totalorder %s96, %s98
      %p102 = scmp.eq.s32.totalorder %s20, 0
      %p103 = por %p101, %p102
      %p104 = scmp.ne.s32.totalorder %s96, %s98
      %p105 = scmp.eq.s32.totalorder %s25, 1
      %p106 = por %p104, %p105
      %p107 = scmp.ne.s32.totalorder %s98, %s99
      %p108 = scmp.eq.s32.totalorder %s25, 0
      %p109 = por %p107, %p108
      %p110 = scmp.ne.s32.totalorder %s98, %s99
      %p111 = scmp.eq.s32.totalorder %s26, 1
      %p112 = por %p110, %p111
      %p114 = scmp.ne.s32.totalorder %s99, %s113
      %p115 = scmp.eq.s32.totalorder %s26, 0
      %p116 = por %p114, %p115
      %s118 = sadd.s32 %s117, 1
      %p121 = scmp.eq.s32.totalorder %s20, 1
      %p122 = scmp.ne.s32.totalorder %s117, %s119
      %p123 = scmp.eq.s32.totalorder %s20, 0
      %p124 = por %p122, %p123
      %p125 = scmp.ne.s32.totalorder %s117, %s119
      %p126 = scmp.eq.s32.totalorder %s25, 1
      %p127 = por %p125, %p126
      %p128 = scmp.ne.s32.totalorder %s119, %s120
      %p129 = scmp.eq.s32.totalorder %s25, 0
      %p130 = por %p128, %p129
      %p131 = scmp.ne.s32.totalorder %s119, %s120
      %p132 = scmp.eq.s32.totalorder %s26, 1
      %p133 = por %p131, %p132
      %p135 = scmp.ne.s32.totalorder %s120, %s134
      %p136 = scmp.eq.s32.totalorder %s26, 0
      %p137 = por %p135, %p136
      %s139 = sadd.s32 %s138, 1
      %p142 = scmp.eq.s32.totalorder %s20, 1
      %p143 = scmp.ne.s32.totalorder %s138, %s140
      %p144 = scmp.eq.s32.totalorder %s20, 0
      %p145 = por %p143, %p144
      %p146 = scmp.ne.s32.totalorder %s138, %s140
      %p147 = scmp.eq.s32.totalorder %s25, 1
      %p148 = por %p146, %p147
      %p149 = scmp.ne.s32.totalorder %s140, %s141
      %p150 = scmp.eq.s32.totalorder %s25, 0
      %p151 = por %p149, %p150
      %p152 = scmp.ne.s32.totalorder %s140, %s141
      %p153 = scmp.eq.s32.totalorder %s26, 1
      %p154 = por %p152, %p153
      %p156 = scmp.ne.s32.totalorder %s141, %s155
      %p157 = scmp.eq.s32.totalorder %s26, 0
      %p158 = por %p156, %p157
      %s160 = sadd.s32 %s159, 1
      %p163 = scmp.eq.s32.totalorder %s20, 1
      %p164 = scmp.ne.s32.totalorder %s159, %s161
      %p165 = scmp.eq.s32.totalorder %s20, 0
      %p166 = por %p164, %p165
      %p167 = scmp.ne.s32.totalorder %s159, %s161
      %p168 = scmp.eq.s32.totalorder %s25, 1
      %p169 = por %p167, %p168
      %p170 = scmp.ne.s32.totalorder %s161, %s162
      %p171 = scmp.eq.s32.totalorder %s25, 0
      %p172 = por %p170, %p171
      %p173 = scmp.ne.s32.totalorder %s161, %s162
      %p174 = scmp.eq.s32.totalorder %s26, 1
      %p175 = por %p173, %p174
      %p177 = scmp.ne.s32.totalorder %s162, %s176
      %p178 = scmp.eq.s32.totalorder %s26, 0
      %p179 = por %p177, %p178
      %s181 = sadd.s32 %s180, 1
      %p184 = scmp.eq.s32.totalorder %s20, 1
      %p185 = scmp.ne.s32.totalorder %s180, %s182
      %p186 = scmp.eq.s32.totalorder %s20, 0
      %p187 = por %p185, %p186
      %p188 = scmp.ne.s32.totalorder %s180, %s182
      %p189 = scmp.eq.s32.totalorder %s25, 1
      %p190 = por %p188, %p189
      %p191 = scmp.ne.s32.totalorder %s182, %s183
      %p192 = scmp.eq.s32.totalorder %s25, 0
      %p193 = por %p191, %p192
      %p194 = scmp.ne.s32.totalorder %s182, %s183
      %p195 = scmp.eq.s32.totalorder %s26, 1
      %p196 = por %p194, %p195
      %p198 = scmp.ne.s32.totalorder %s183, %s197
      %p199 = scmp.eq.s32.totalorder %s26, 0
      %p200 = por %p198, %p199
      %s202 = sadd.s32 %s201, 1
      %p205 = scmp.eq.s32.totalorder %s20, 1
      %p206 = scmp.ne.s32.totalorder %s201, %s203
      %p207 = scmp.eq.s32.totalorder %s20, 0
      %p208 = por %p206, %p207
      %p209 = scmp.ne.s32.totalorder %s201, %s203
      %p210 = scmp.eq.s32.totalorder %s25, 1
      %p211 = por %p209, %p210
      %p212 = scmp.ne.s32.totalorder %s203, %s204
      %p213 = scmp.eq.s32.totalorder %s25, 0
      %p214 = por %p212, %p213
      %p215 = scmp.ne.s32.totalorder %s203, %s204
      %p216 = scmp.eq.s32.totalorder %s26, 1
      %p217 = por %p215, %p216
      %p219 = scmp.ne.s32.totalorder %s204, %s218
      %p220 = scmp.eq.s32.totalorder %s26, 0
      %p221 = por %p219, %p220
      %s223 = sadd.s32 %s222, 1
      %p226 = scmp.eq.s32.totalorder %s20, 1
      %p227 = scmp.ne.s32.totalorder %s222, %s224
      %p228 = scmp.eq.s32.totalorder %s20, 0
      %p229 = por %p227, %p228
      %p230 = scmp.ne.s32.totalorder %s222, %s224
      %p231 = scmp.eq.s32.totalorder %s25, 1
      %p232 = por %p230, %p231
      %p233 = scmp.ne.s32.totalorder %s224, %s225
      %p234 = scmp.eq.s32.totalorder %s25, 0
      %p235 = por %p233, %p234
      %p236 = scmp.ne.s32.totalorder %s224, %s225
      %p237 = scmp.eq.s32.totalorder %s26, 1
      %p238 = por %p236, %p237
      %p240 = scmp.ne.s32.totalorder %s225, %s239
      %p241 = scmp.eq.s32.totalorder %s26, 0
      %p242 = por %p240, %p241
      %s244 = sadd.s32 %s243, 1
      %p247 = scmp.eq.s32.totalorder %s20, 1
      %p248 = scmp.ne.s32.totalorder %s243, %s245
      %p249 = scmp.eq.s32.totalorder %s20, 0
      %p250 = por %p248, %p249
      %p251 = scmp.ne.s32.totalorder %s243, %s245
      %p252 = scmp.eq.s32.totalorder %s25, 1
      %p253 = por %p251, %p252
      %p254 = scmp.ne.s32.totalorder %s245, %s246
      %p255 = scmp.eq.s32.totalorder %s25, 0
      %p256 = por %p254, %p255
      %p257 = scmp.ne.s32.totalorder %s245, %s246
      %p258 = scmp.eq.s32.totalorder %s26, 1
      %p259 = por %p257, %p258
      %p261 = scmp.ne.s32.totalorder %s246, %s260
      %p262 = scmp.eq.s32.totalorder %s26, 0
      %p263 = por %p261, %p262
      %s264 = ssub.s32 %s20, %s27
      %p265 = scmp.eq.s32.totalorder %s264, 0
      %s267 = sadd.s32 %s266, 1
      %s268 = scalar_select %p265, %s266, %s267
      %p271 = pneg %p265
      %p272 = scmp.eq.s32.totalorder %s20, 1
      %p273 = por %p271, %p272
      %p274 = scmp.ne.s32.totalorder %s266, %s269
      %p275 = scmp.eq.s32.totalorder %s20, 0
      %p276 = por %p274, %p275
      %p277 = scmp.ne.s32.totalorder %s266, %s269
      %p278 = scmp.eq.s32.totalorder %s25, 1
      %p279 = por %p277, %p278
      %p280 = scmp.ne.s32.totalorder %s269, %s270
      %p281 = scmp.eq.s32.totalorder %s25, 0
      %p282 = por %p280, %p281
      %p283 = scmp.ne.s32.totalorder %s269, %s270
      %p284 = scmp.eq.s32.totalorder %s26, 1
      %p285 = por %p283, %p284
      %p287 = scmp.ne.s32.totalorder %s270, %s286
      %p288 = scmp.eq.s32.totalorder %s26, 0
      %p289 = por %p287, %p288
      %p290 = scmp.le.s32.totalorder 1, %s20
      %p291 = scmp.lt.s32.totalorder %s20, 3
      %p292 = pnand %p290, %p291
      %p293 = pneg %p292
      // Predicated region
      $region9: #{net_forward.1} parent=5 // pred_check
        _
      $region10: #{net_forward.1} parent=5 // pred_check_branch
        %295 = sbr.rel (%p292) target = $region12
      $region11: #{net_forward.1} parent=5 // pred_region
        %s296 = ssub.s32 %s20, 1
        // Predicated region
        $region13: #{net_forward.1} parent=11 // pred_check
          %p297 = pneg %p67
        $region14: #{net_forward.1} parent=11 // pred_check_branch
          %299 = sbr.rel (%p297) target = $region16
        $region15: #{net_forward.1} parent=11 // pred_region
          _
        $region16: #{net_forward.1} parent=11 // pred_fallthru
          _
        // Predicated region
        $region17: #{net_forward.1} parent=11 // pred_check
          %p300 = pneg %p88
        $region18: #{net_forward.1} parent=11 // pred_check_branch
          %302 = sbr.rel (%p300) target = $region20
        $region19: #{net_forward.1} parent=11 // pred_region
          _
        $region20: #{net_forward.1} parent=11 // pred_fallthru
          _
        // Predicated region
        $region21: #{net_forward.1} parent=11 // pred_check
          %p303 = pneg %p109
        $region22: #{net_forward.1} parent=11 // pred_check_branch
          %305 = sbr.rel (%p303) target = $region24
        $region23: #{net_forward.1} parent=11 // pred_region
          _
        $region24: #{net_forward.1} parent=11 // pred_fallthru
          _
        // Predicated region
        $region25: #{net_forward.1} parent=11 // pred_check
          %p306 = pneg %p130
        $region26: #{net_forward.1} parent=11 // pred_check_branch
          %308 = sbr.rel (%p306) target = $region28
        $region27: #{net_forward.1} parent=11 // pred_region
          _
        $region28: #{net_forward.1} parent=11 // pred_fallthru
          _
        // Predicated region
        $region29: #{net_forward.1} parent=11 // pred_check
          %p309 = pneg %p151
        $region30: #{net_forward.1} parent=11 // pred_check_branch
          %311 = sbr.rel (%p309) target = $region32
        $region31: #{net_forward.1} parent=11 // pred_region
          _
        $region32: #{net_forward.1} parent=11 // pred_fallthru
          _
        // Predicated region
        $region33: #{net_forward.1} parent=11 // pred_check
          %p312 = pneg %p172
        $region34: #{net_forward.1} parent=11 // pred_check_branch
          %314 = sbr.rel (%p312) target = $region36
        $region35: #{net_forward.1} parent=11 // pred_region
          _
        $region36: #{net_forward.1} parent=11 // pred_fallthru
          _
        // Predicated region
        $region37: #{net_forward.1} parent=11 // pred_check
          %p315 = pneg %p193
        $region38: #{net_forward.1} parent=11 // pred_check_branch
          %317 = sbr.rel (%p315) target = $region40
        $region39: #{net_forward.1} parent=11 // pred_region
          _
        $region40: #{net_forward.1} parent=11 // pred_fallthru
          _
        // Predicated region
        $region41: #{net_forward.1} parent=11 // pred_check
          %p318 = pneg %p214
        $region42: #{net_forward.1} parent=11 // pred_check_branch
          %320 = sbr.rel (%p318) target = $region44
        $region43: #{net_forward.1} parent=11 // pred_region
          _
        $region44: #{net_forward.1} parent=11 // pred_fallthru
          _
        // Predicated region
        $region45: #{net_forward.1} parent=11 // pred_check
          %p321 = pneg %p235
        $region46: #{net_forward.1} parent=11 // pred_check_branch
          %323 = sbr.rel (%p321) target = $region48
        $region47: #{net_forward.1} parent=11 // pred_region
          _
        $region48: #{net_forward.1} parent=11 // pred_fallthru
          _
        // Predicated region
        $region49: #{net_forward.1} parent=11 // pred_check
          %p324 = pneg %p256
        $region50: #{net_forward.1} parent=11 // pred_check_branch
          %326 = sbr.rel (%p324) target = $region52
        $region51: #{net_forward.1} parent=11 // pred_region
          _
        $region52: #{net_forward.1} parent=11 // pred_fallthru
          _
      $region12: #{net_forward.1} parent=5 // pred_fallthru
        _
      %p327 = scmp.lt.s32.totalorder %s20, 2
      // Predicated region
      $region53: #{net_forward.1} parent=5 // pred_check
        %p328 = pneg %p327
      $region54: #{net_forward.1} parent=5 // pred_check_branch
        %330 = sbr.rel (%p328) target = $region56
      $region55: #{net_forward.1} parent=5 // pred_region
        // Predicated region
        $region57: #{net_forward.1} parent=55 // pred_check
          %p331 = pneg %p40
        $region58: #{net_forward.1} parent=55 // pred_check_branch
          %333 = sbr.rel (%p331) target = $region60
        $region59: #{net_forward.1} parent=55 // pred_region
          %s334 = smul.u32 8, %s20
          %p335 = scmp.lt.s32.totalorder %s334, 15
          %s336 = scalar_select %p335, %s334, 15
          %s337 = smul.addr %s336, 4
          %s338 = smul.addr %s337, 4
          %s339 = scalar_lea.vmem %s0, %s338
          %s340 = smul.u32 8, %s20
        $region60: #{net_forward.1} parent=55 // pred_fallthru
          _
      $region56: #{net_forward.1} parent=5 // pred_fallthru
        _
      %p341 = scmp.le.s32.totalorder 1, %s20
      %p342 = scmp.lt.s32.totalorder %s20, 3
      %p343 = pnand %p341, %p342
      %p344 = pneg %p343
      // Predicated region
      $region61: #{net_forward.1} parent=5 // pred_check
        _
      $region62: #{net_forward.1} parent=5 // pred_check_branch
        %346 = sbr.rel (%p343) target = $region64
      $region63: #{net_forward.1} parent=5 // pred_region
        %s347 = ssub.s32 %s20, 1
        %s348 = smul.u32 8, %s25
        %p349 = scmp.lt.s32.totalorder %s348, 15
        %s350 = scalar_select %p349, %s348, 15
        %s351 = smul.addr %s350, 4
        %s352 = smul.addr %s351, 4
        %s353 = scalar_lea.vmem %s0, %s352
        %p354 = pneg %p46
        %p355 = pneg %p43
        %p356 = pneg %p67
        %p357 = pneg %p64
        %p358 = pneg %p88
        %p359 = pneg %p85
        %p360 = pneg %p109
        %p361 = pneg %p106
        %p362 = pneg %p130
        %p363 = pneg %p127
        %p364 = pneg %p151
        %p365 = pneg %p148
        %p366 = pneg %p172
        %p367 = pneg %p169
        %p368 = pneg %p193
        %p369 = pneg %p190
        %p370 = pneg %p214
        %p371 = pneg %p211
        %p372 = pneg %p235
        %p373 = pneg %p232
        %p374 = pneg %p256
        %p375 = pneg %p253
        %p376 = pneg %p282
        %p377 = pneg %p279
        %s378 = sand.u32 %s269, 1
        %s379 = scalar_lea.sflag [#allocation7], %s378
        %s380 = sand.u32 %s269, 1
        %s381 = smul.addr %s380, 8
        %s382 = scalar_lea.vmem [#allocation6], %s381
        %s383 = smul.u32 8, %s25
        %p384 = scmp.lt.s32.totalorder %s383, 15
        %s385 = scalar_select %p384, %s383, 15
        %s386 = smul.addr %s385, 4
        %s387 = smul.addr %s386, 4
        %s388 = scalar_lea.vmem %s0, %s387
        %s389 = smul.u32 8, %s25
        %v391 = vld [vmem:[%s388] sm:$0xf]
        %v392 = vld [vmem:[%s388 + $0x4] sm:$0xf]
        %v393 = vld [vmem:[%s388 + $0x8] sm:$0xf]
        %v394 = vld [vmem:[%s388 + $0xc] sm:$0xf]
        %v395 = vld [vmem:[%s388 + $0x10] sm:$0xf]
        %v396 = vld [vmem:[%s388 + $0x14] sm:$0xf]
        %v397 = vld [vmem:[%s388 + $0x18] sm:$0xf]
        %v398 = vld [vmem:[%s388 + $0x1c] sm:$0xf]
        %v399 = vld [vmem:[%s388 + $0x20] sm:$0xf]
        %v400 = vld [vmem:[%s388 + $0x24] sm:$0xf]
        %v401 = vld [vmem:[%s388 + $0x28] sm:$0xf]
        %v402 = vld [vmem:[%s388 + $0x2c] sm:$0xf]
        %v403 = vld [vmem:[%s388 + $0x30] sm:$0xf]
        %v404 = vld [vmem:[%s388 + $0x34] sm:$0xf]
        %v405 = vld [vmem:[%s388 + $0x38] sm:$0xf]
        %v406 = vld [vmem:[%s388 + $0x3c] sm:$0xf]
        %v407 = vld [vmem:[%s388 + $0x40] sm:$0xf]
        %v408 = vld [vmem:[%s388 + $0x44] sm:$0xf]
        %v409 = vld [vmem:[%s388 + $0x48] sm:$0xf]
        %v410 = vld [vmem:[%s388 + $0x4c] sm:$0xf]
        %v411 = vld [vmem:[%s388 + $0x50] sm:$0xf]
        %v412 = vld [vmem:[%s388 + $0x54] sm:$0xf]
        %v413 = vld [vmem:[%s388 + $0x58] sm:$0xf]
        %v414 = vld [vmem:[%s388 + $0x5c] sm:$0xf]
        %v415 = vld [vmem:[%s388 + $0x60] sm:$0xf]
        %v416 = vld [vmem:[%s388 + $0x64] sm:$0xf]
        %v417 = vld [vmem:[%s388 + $0x68] sm:$0xf]
        %v418 = vld [vmem:[%s388 + $0x6c] sm:$0xf]
        %v419 = vld [vmem:[%s388 + $0x70] sm:$0xf]
        %v420 = vld [vmem:[%s388 + $0x74] sm:$0xf]
        %v421 = vld [vmem:[%s388 + $0x78] sm:$0xf]
        %v422 = vld [vmem:[%s388 + $0x7c] sm:$0xf]
        %v423 = vld [vmem:[%s1] sm:$0xff]
        %v424 = vld [vmem:[%s1 + $0x8] sm:$0xff]
        %v425 = vld [vmem:[%s1 + $0x10] sm:$0xff]
        %v426 = vld [vmem:[%s1 + $0x18] sm:$0xff]
        %v427 = vld [vmem:[%s1 + $0x20] sm:$0xff]
        %v428 = vld [vmem:[%s1 + $0x28] sm:$0xff]
        %v429 = vld [vmem:[%s1 + $0x30] sm:$0xff]
        %v430 = vld [vmem:[%s1 + $0x38] sm:$0xff]
        %v431 = vld [vmem:[%s1 + $0x40] sm:$0xff]
        %v432 = vld [vmem:[%s1 + $0x48] sm:$0xff]
        %v433 = vld [vmem:[%s1 + $0x50] sm:$0xff]
        %v434 = vld [vmem:[%s1 + $0x58] sm:$0xff]
        %v435 = vld [vmem:[%s1 + $0x60] sm:$0xff]
        %v436 = vld [vmem:[%s1 + $0x68] sm:$0xff]
        %v437 = vld [vmem:[%s1 + $0x70] sm:$0xff]
        %v438 = vld [vmem:[%s1 + $0x78] sm:$0xff]
        %v471 = vunpack.c.l.b16 %v391
        %v472 = vunpack.c.l.b16 %v392
        %v473 = vunpack.c.l.b16 %v393
        %v474 = vunpack.c.l.b16 %v394
        %v475 = vunpack.c.l.b16 %v395
        %v476 = vunpack.c.l.b16 %v396
        %v477 = vunpack.c.l.b16 %v397
        %v478 = vunpack.c.l.b16 %v398
        %v479 = vunpack.c.l.b16 %v399
        %v480 = vunpack.c.l.b16 %v400
        %v481 = vunpack.c.l.b16 %v401
        %v482 = vunpack.c.l.b16 %v402
        %v483 = vunpack.c.l.b16 %v403
        %v484 = vunpack.c.l.b16 %v404
        %v485 = vunpack.c.l.b16 %v405
        %v486 = vunpack.c.l.b16 %v406
        %v487 = vunpack.c.l.b16 %v407
        %v488 = vunpack.c.l.b16 %v408
        %v489 = vunpack.c.l.b16 %v409
        %v490 = vunpack.c.l.b16 %v410
        %v491 = vunpack.c.l.b16 %v411
        %v492 = vunpack.c.l.b16 %v412
        %v493 = vunpack.c.l.b16 %v413
        %v494 = vunpack.c.l.b16 %v414
        %v495 = vunpack.c.l.b16 %v415
        %v496 = vunpack.c.l.b16 %v416
        %v497 = vunpack.c.l.b16 %v417
        %v498 = vunpack.c.l.b16 %v418
        %v499 = vunpack.c.l.b16 %v419
        %v500 = vunpack.c.l.b16 %v420
        %v501 = vunpack.c.l.b16 %v421
        %v502 = vunpack.c.l.b16 %v422
        %v503 = vpack.c.b16 %v472, %v471
        %v504 = vpack.c.b16 %v474, %v473
        %v505 = vpack.c.b16 %v476, %v475
        %v506 = vpack.c.b16 %v478, %v477
        %v507 = vpack.c.b16 %v480, %v479
        %v508 = vpack.c.b16 %v482, %v481
        %v509 = vpack.c.b16 %v484, %v483
        %v510 = vpack.c.b16 %v486, %v485
        %v511 = vpack.c.b16 %v488, %v487
        %v512 = vpack.c.b16 %v490, %v489
        %v513 = vpack.c.b16 %v492, %v491
        %v514 = vpack.c.b16 %v494, %v493
        %v515 = vpack.c.b16 %v496, %v495
        %v516 = vpack.c.b16 %v498, %v497
        %v517 = vpack.c.b16 %v500, %v499
        %v518 = vpack.c.b16 %v502, %v501
        %v551 = vunpack.c.l.b16 %v423
        %v552 = vunpack.c.h.b16 %v423
        %v553 = vunpack.c.l.b16 %v424
        %v554 = vunpack.c.h.b16 %v424
        %v555 = vunpack.c.l.b16 %v425
        %v556 = vunpack.c.h.b16 %v425
        %v557 = vunpack.c.l.b16 %v426
        %v558 = vunpack.c.h.b16 %v426
        %v559 = vunpack.c.l.b16 %v427
        %v560 = vunpack.c.h.b16 %v427
        %v561 = vunpack.c.l.b16 %v428
        %v562 = vunpack.c.h.b16 %v428
        %v563 = vunpack.c.l.b16 %v429
        %v564 = vunpack.c.h.b16 %v429
        %v565 = vunpack.c.l.b16 %v430
        %v566 = vunpack.c.h.b16 %v430
        %v567 = vunpack.c.l.b16 %v431
        %v568 = vunpack.c.h.b16 %v431
        %v569 = vunpack.c.l.b16 %v432
        %v570 = vunpack.c.h.b16 %v432
        %v571 = vunpack.c.l.b16 %v433
        %v572 = vunpack.c.h.b16 %v433
        %v573 = vunpack.c.l.b16 %v434
        %v574 = vunpack.c.h.b16 %v434
        %v575 = vunpack.c.l.b16 %v435
        %v576 = vunpack.c.h.b16 %v435
        %v577 = vunpack.c.l.b16 %v436
        %v578 = vunpack.c.h.b16 %v436
        %v579 = vunpack.c.l.b16 %v437
        %v580 = vunpack.c.h.b16 %v437
        %v581 = vunpack.c.l.b16 %v438
        %v582 = vunpack.c.h.b16 %v438
        %v583 = vpack.c.b16 %v553, %v551
        %v584 = vpack.c.b16 %v554, %v552
        %v585 = vpack.c.b16 %v557, %v555
        %v586 = vpack.c.b16 %v558, %v556
        %v587 = vpack.c.b16 %v561, %v559
        %v588 = vpack.c.b16 %v562, %v560
        %v589 = vpack.c.b16 %v565, %v563
        %v590 = vpack.c.b16 %v566, %v564
        %v591 = vpack.c.b16 %v569, %v567
        %v592 = vpack.c.b16 %v570, %v568
        %v593 = vpack.c.b16 %v573, %v571
        %v594 = vpack.c.b16 %v574, %v572
        %v595 = vpack.c.b16 %v577, %v575
        %v596 = vpack.c.b16 %v578, %v576
        %v597 = vpack.c.b16 %v581, %v579
        %v598 = vpack.c.b16 %v582, %v580
        %615 = vmatprep.subr.bf16.mxu0 %v584
        %616 = vmatpush1.bf16.msra.mxu0 %v583
        %617 = vmatprep.subr.bf16.mxu0 %v586
        %618 = vmatpush1.bf16.msra.mxu0 %v585
        %619 = vmatprep.subr.bf16.mxu0 %v588
        %620 = vmatpush1.bf16.msra.mxu0 %v587
        %621 = vmatprep.subr.bf16.mxu0 %v590
        %622 = vmatpush1.bf16.msra.mxu0 %v589
        %623 = vmatprep.subr.bf16.mxu0 %v592
        %624 = vmatpush1.bf16.msra.mxu0 %v591
        %625 = vmatprep.subr.bf16.mxu0 %v594
        %626 = vmatpush1.bf16.msra.mxu0 %v593
        %627 = vmatprep.subr.bf16.mxu0 %v596
        %628 = vmatpush1.bf16.msra.mxu0 %v595
        %629 = vmatprep.subr.bf16.mxu0 %v598
        %630 = vmatpush1.bf16.msra.mxu0 %v597
        %631 = vmatprep.subr.bf16.mxu0 0
        %632 = vmatpush1.bf16.msra.mxu0 0
        %633 = vmatprep.subr.bf16.mxu0 0
        %634 = vmatpush1.bf16.msra.mxu0 0
        %635 = vmatprep.subr.bf16.mxu0 0
        %636 = vmatpush1.bf16.msra.mxu0 0
        %637 = vmatprep.subr.bf16.mxu0 0
        %638 = vmatpush1.bf16.msra.mxu0 0
        %639 = vmatprep.subr.bf16.mxu0 0
        %640 = vmatpush1.bf16.msra.mxu0 0
        %641 = vmatprep.subr.bf16.mxu0 0
        %642 = vmatpush1.bf16.msra.mxu0 0
        %643 = vmatprep.subr.bf16.mxu0 0
        %644 = vmatpush1.bf16.msra.mxu0 0
        %645 = vmatprep.subr.bf16.mxu0 0
        %646 = vmatpush1.bf16.msra.mxu0 0
        %647 = vmatprep.mubr.bf16.mxu0 0
        %648 = vmatmul.mubr.bf16.gmra.mrb[0].mxu0 %v503
        %v649 = vpop.f32.mrb[0].mxu0
        %v650 = vadd.f32 0.0, %v649
        %v651 = vpop.f32.mrb[0].mxu0
        %v652 = vadd.f32 0.0, %v651
        %v653 = vpop.f32.mrb[0].mxu0
        %v654 = vadd.f32 0.0, %v653
        %v655 = vpop.f32.mrb[0].mxu0
        %v656 = vadd.f32 0.0, %v655
        %657 = vmatprep.mubr.bf16.mxu0 0
        %658 = vmatmul.mubr.bf16.gmra.mrb[0].mxu0 %v504
        %v659 = vpop.f32.mrb[0].mxu0
        %v660 = vadd.f32 0.0, %v659
        %v661 = vpop.f32.mrb[0].mxu0
        %v662 = vadd.f32 0.0, %v661
        %v663 = vpop.f32.mrb[0].mxu0
        %v664 = vadd.f32 0.0, %v663
        %v665 = vpop.f32.mrb[0].mxu0
        %v666 = vadd.f32 0.0, %v665
        %667 = vmatprep.mubr.bf16.mxu0 0
        %668 = vmatmul.mubr.bf16.gmra.mrb[0].mxu0 %v505
        %v669 = vpop.f32.mrb[0].mxu0
        %v670 = vadd.f32 0.0, %v669
        %v671 = vpop.f32.mrb[0].mxu0
        %v672 = vadd.f32 0.0, %v671
        %v673 = vpop.f32.mrb[0].mxu0
        %v674 = vadd.f32 0.0, %v673
        %v675 = vpop.f32.mrb[0].mxu0
        %v676 = vadd.f32 0.0, %v675
        %677 = vmatprep.mubr.bf16.mxu0 0
        %678 = vmatmul.mubr.bf16.gmra.mrb[0].mxu0 %v506
        %v679 = vpop.f32.mrb[0].mxu0
        %v680 = vadd.f32 0.0, %v679
        %v681 = vpop.f32.mrb[0].mxu0
        %v682 = vadd.f32 0.0, %v681
        %v683 = vpop.f32.mrb[0].mxu0
        %v684 = vadd.f32 0.0, %v683
        %v685 = vpop.f32.mrb[0].mxu0
        %v686 = vadd.f32 0.0, %v685
        %687 = vmatprep.mubr.bf16.mxu0 0
        %688 = vmatmul.mubr.bf16.gmra.mrb[0].mxu0 %v507
        %v689 = vpop.f32.mrb[0].mxu0
        %v690 = vadd.f32 0.0, %v689
        %v691 = vpop.f32.mrb[0].mxu0
        %v692 = vadd.f32 0.0, %v691
        %v693 = vpop.f32.mrb[0].mxu0
        %v694 = vadd.f32 0.0, %v693
        %v695 = vpop.f32.mrb[0].mxu0
        %v696 = vadd.f32 0.0, %v695
        %697 = vmatprep.mubr.bf16.mxu0 0
        %698 = vmatmul.mubr.bf16.gmra.mrb[0].mxu0 %v508
        %v699 = vpop.f32.mrb[0].mxu0
        %v700 = vadd.f32 0.0, %v699
        %v701 = vpop.f32.mrb[0].mxu0
        %v702 = vadd.f32 0.0, %v701
        %v703 = vpop.f32.mrb[0].mxu0
        %v704 = vadd.f32 0.0, %v703
        %v705 = vpop.f32.mrb[0].mxu0
        %v706 = vadd.f32 0.0, %v705
        %707 = vmatprep.mubr.bf16.mxu0 0
        %708 = vmatmul.mubr.bf16.gmra.mrb[0].mxu0 %v509
        %v709 = vpop.f32.mrb[0].mxu0
        %v710 = vadd.f32 0.0, %v709
        %v711 = vpop.f32.mrb[0].mxu0
        %v712 = vadd.f32 0.0, %v711
        %v713 = vpop.f32.mrb[0].mxu0
        %v714 = vadd.f32 0.0, %v713
        %v715 = vpop.f32.mrb[0].mxu0
        %v716 = vadd.f32 0.0, %v715
        %717 = vmatprep.mubr.bf16.mxu0 0
        %718 = vmatmul.mubr.bf16.gmra.mrb[0].mxu0 %v510
        %v719 = vpop.f32.mrb[0].mxu0
        %v720 = vadd.f32 0.0, %v719
        %v721 = vpop.f32.mrb[0].mxu0
        %v722 = vadd.f32 0.0, %v721
        %v723 = vpop.f32.mrb[0].mxu0
        %v724 = vadd.f32 0.0, %v723
        %v725 = vpop.f32.mrb[0].mxu0
        %v726 = vadd.f32 0.0, %v725
        %727 = vmatprep.mubr.bf16.mxu0 0
        %728 = vmatmul.mubr.bf16.gmra.mrb[0].mxu0 %v511
        %v729 = vpop.f32.mrb[0].mxu0
        %v730 = vadd.f32 0.0, %v729
        %v731 = vpop.f32.mrb[0].mxu0
        %v732 = vadd.f32 0.0, %v731
        %v733 = vpop.f32.mrb[0].mxu0
        %v734 = vadd.f32 0.0, %v733
        %v735 = vpop.f32.mrb[0].mxu0
        %v736 = vadd.f32 0.0, %v735
        %737 = vmatprep.mubr.bf16.mxu0 0
        %738 = vmatmul.mubr.bf16.gmra.mrb[0].mxu0 %v512
        %v739 = vpop.f32.mrb[0].mxu0
        %v740 = vadd.f32 0.0, %v739
        %v741 = vpop.f32.mrb[0].mxu0
        %v742 = vadd.f32 0.0, %v741
        %v743 = vpop.f32.mrb[0].mxu0
        %v744 = vadd.f32 0.0, %v743
        %v745 = vpop.f32.mrb[0].mxu0
        %v746 = vadd.f32 0.0, %v745
        %747 = vmatprep.mubr.bf16.mxu0 0
        %748 = vmatmul.mubr.bf16.gmra.mrb[0].mxu0 %v513
        %v749 = vpop.f32.mrb[0].mxu0
        %v750 = vadd.f32 0.0, %v749
        %v751 = vpop.f32.mrb[0].mxu0
        %v752 = vadd.f32 0.0, %v751
        %v753 = vpop.f32.mrb[0].mxu0
        %v754 = vadd.f32 0.0, %v753
        %v755 = vpop.f32.mrb[0].mxu0
        %v756 = vadd.f32 0.0, %v755
        %757 = vmatprep.mubr.bf16.mxu0 0
        %758 = vmatmul.mubr.bf16.gmra.mrb[0].mxu0 %v514
        %v759 = vpop.f32.mrb[0].mxu0
        %v760 = vadd.f32 0.0, %v759
        %v761 = vpop.f32.mrb[0].mxu0
        %v762 = vadd.f32 0.0, %v761
        %v763 = vpop.f32.mrb[0].mxu0
        %v764 = vadd.f32 0.0, %v763
        %v765 = vpop.f32.mrb[0].mxu0
        %v766 = vadd.f32 0.0, %v765
        %767 = vmatprep.mubr.bf16.mxu0 0
        %768 = vmatmul.mubr.bf16.gmra.mrb[0].mxu0 %v515
        %v769 = vpop.f32.mrb[0].mxu0
        %v770 = vadd.f32 0.0, %v769
        %v771 = vpop.f32.mrb[0].mxu0
        %v772 = vadd.f32 0.0, %v771
        %v773 = vpop.f32.mrb[0].mxu0
        %v774 = vadd.f32 0.0, %v773
        %v775 = vpop.f32.mrb[0].mxu0
        %v776 = vadd.f32 0.0, %v775
        %777 = vmatprep.mubr.bf16.mxu0 0
        %778 = vmatmul.mubr.bf16.gmra.mrb[0].mxu0 %v516
        %v779 = vpop.f32.mrb[0].mxu0
        %v780 = vadd.f32 0.0, %v779
        %v781 = vpop.f32.mrb[0].mxu0
        %v782 = vadd.f32 0.0, %v781
        %v783 = vpop.f32.mrb[0].mxu0
        %v784 = vadd.f32 0.0, %v783
        %v785 = vpop.f32.mrb[0].mxu0
        %v786 = vadd.f32 0.0, %v785
        %787 = vmatprep.mubr.bf16.mxu0 0
        %788 = vmatmul.mubr.bf16.gmra.mrb[0].mxu0 %v517
        %v789 = vpop.f32.mrb[0].mxu0
        %v790 = vadd.f32 0.0, %v789
        %v791 = vpop.f32.mrb[0].mxu0
        %v792 = vadd.f32 0.0, %v791
        %v793 = vpop.f32.mrb[0].mxu0
        %v794 = vadd.f32 0.0, %v793
        %v795 = vpop.f32.mrb[0].mxu0
        %v796 = vadd.f32 0.0, %v795
        %797 = vmatprep.mubr.bf16.mxu0 0
        %798 = vmatmul.mubr.bf16.gmra.mrb[0].mxu0 %v518
        %v799 = vpop.f32.mrb[0].mxu0
        %v800 = vadd.f32 0.0, %v799
        %v801 = vpop.f32.mrb[0].mxu0
        %v802 = vadd.f32 0.0, %v801
        %v803 = vpop.f32.mrb[0].mxu0
        %v804 = vadd.f32 0.0, %v803
        %v805 = vpop.f32.mrb[0].mxu0
        %v806 = vadd.f32 0.0, %v805
        %807 = vdwg.mxu0
        %808 = vst [vmem:[#allocation2] sm:$0xff] %v650
        %809 = vst [vmem:[#allocation2 + $0x8] sm:$0xff] %v652
        %810 = vst [vmem:[#allocation2 + $0x10] sm:$0xff] %v654
        %811 = vst [vmem:[#allocation2 + $0x18] sm:$0xff] %v656
        %812 = vst [vmem:[#allocation2 + $0x20] sm:$0xff] %v660
        %813 = vst [vmem:[#allocation2 + $0x28] sm:$0xff] %v662
        %814 = vst [vmem:[#allocation2 + $0x30] sm:$0xff] %v664
        %815 = vst [vmem:[#allocation2 + $0x38] sm:$0xff] %v666
        %816 = vst [vmem:[#allocation2 + $0x40] sm:$0xff] %v670
        %817 = vst [vmem:[#allocation2 + $0x48] sm:$0xff] %v672
        %818 = vst [vmem:[#allocation2 + $0x50] sm:$0xff] %v674
        %819 = vst [vmem:[#allocation2 + $0x58] sm:$0xff] %v676
        %820 = vst [vmem:[#allocation2 + $0x60] sm:$0xff] %v680
        %821 = vst [vmem:[#allocation2 + $0x68] sm:$0xff] %v682
        %822 = vst [vmem:[#allocation2 + $0x70] sm:$0xff] %v684
        %823 = vst [vmem:[#allocation2 + $0x78] sm:$0xff] %v686
        %824 = vst [vmem:[#allocation2 + $0x80] sm:$0xff] %v690
        %825 = vst [vmem:[#allocation2 + $0x88] sm:$0xff] %v692
        %826 = vst [vmem:[#allocation2 + $0x90] sm:$0xff] %v694
        %827 = vst [vmem:[#allocation2 + $0x98] sm:$0xff] %v696
        %828 = vst [vmem:[#allocation2 + $0xa0] sm:$0xff] %v700
        %829 = vst [vmem:[#allocation2 + $0xa8] sm:$0xff] %v702
        %830 = vst [vmem:[#allocation2 + $0xb0] sm:$0xff] %v704
        %831 = vst [vmem:[#allocation2 + $0xb8] sm:$0xff] %v706
        %832 = vst [vmem:[#allocation2 + $0xc0] sm:$0xff] %v710
        %833 = vst [vmem:[#allocation2 + $0xc8] sm:$0xff] %v712
        %834 = vst [vmem:[#allocation2 + $0xd0] sm:$0xff] %v714
        %835 = vst [vmem:[#allocation2 + $0xd8] sm:$0xff] %v716
        %836 = vst [vmem:[#allocation2 + $0xe0] sm:$0xff] %v720
        %837 = vst [vmem:[#allocation2 + $0xe8] sm:$0xff] %v722
        %838 = vst [vmem:[#allocation2 + $0xf0] sm:$0xff] %v724
        %839 = vst [vmem:[#allocation2 + $0xf8] sm:$0xff] %v726
        %840 = vst [vmem:[#allocation2 + $0x100] sm:$0xff] %v730
        %841 = vst [vmem:[#allocation2 + $0x108] sm:$0xff] %v732
        %842 = vst [vmem:[#allocation2 + $0x110] sm:$0xff] %v734
        %843 = vst [vmem:[#allocation2 + $0x118] sm:$0xff] %v736
        %844 = vst [vmem:[#allocation2 + $0x120] sm:$0xff] %v740
        %845 = vst [vmem:[#allocation2 + $0x128] sm:$0xff] %v742
        %846 = vst [vmem:[#allocation2 + $0x130] sm:$0xff] %v744
        %847 = vst [vmem:[#allocation2 + $0x138] sm:$0xff] %v746
        %848 = vst [vmem:[#allocation2 + $0x140] sm:$0xff] %v750
        %849 = vst [vmem:[#allocation2 + $0x148] sm:$0xff] %v752
        %850 = vst [vmem:[#allocation2 + $0x150] sm:$0xff] %v754
        %851 = vst [vmem:[#allocation2 + $0x158] sm:$0xff] %v756
        %852 = vst [vmem:[#allocation2 + $0x160] sm:$0xff] %v760
        %853 = vst [vmem:[#allocation2 + $0x168] sm:$0xff] %v762
        %854 = vst [vmem:[#allocation2 + $0x170] sm:$0xff] %v764
        %855 = vst [vmem:[#allocation2 + $0x178] sm:$0xff] %v766
        %856 = vst [vmem:[#allocation2 + $0x180] sm:$0xff] %v770
        %857 = vst [vmem:[#allocation2 + $0x188] sm:$0xff] %v772
        %858 = vst [vmem:[#allocation2 + $0x190] sm:$0xff] %v774
        %859 = vst [vmem:[#allocation2 + $0x198] sm:$0xff] %v776
        %860 = vst [vmem:[#allocation2 + $0x1a0] sm:$0xff] %v780
        %861 = vst [vmem:[#allocation2 + $0x1a8] sm:$0xff] %v782
        %862 = vst [vmem:[#allocation2 + $0x1b0] sm:$0xff] %v784
        %863 = vst [vmem:[#allocation2 + $0x1b8] sm:$0xff] %v786
        %864 = vst [vmem:[#allocation2 + $0x1c0] sm:$0xff] %v790
        %865 = vst [vmem:[#allocation2 + $0x1c8] sm:$0xff] %v792
        %866 = vst [vmem:[#allocation2 + $0x1d0] sm:$0xff] %v794
        %867 = vst [vmem:[#allocation2 + $0x1d8] sm:$0xff] %v796
        %868 = vst [vmem:[#allocation2 + $0x1e0] sm:$0xff] %v800
        %869 = vst [vmem:[#allocation2 + $0x1e8] sm:$0xff] %v802
        %870 = vst [vmem:[#allocation2 + $0x1f0] sm:$0xff] %v804
        %871 = vst [vmem:[#allocation2 + $0x1f8] sm:$0xff] %v806
        %s872 = scalar_lea.vmem %s1, 128
        %v873 = vld [vmem:[%s872] sm:$0xff]
        %v874 = vld [vmem:[%s872 + $0x8] sm:$0xff]
        %v875 = vld [vmem:[%s872 + $0x10] sm:$0xff]
        %v876 = vld [vmem:[%s872 + $0x18] sm:$0xff]
        %v877 = vld [vmem:[%s872 + $0x20] sm:$0xff]
        %v878 = vld [vmem:[%s872 + $0x28] sm:$0xff]
        %v879 = vld [vmem:[%s872 + $0x30] sm:$0xff]
        %v880 = vld [vmem:[%s872 + $0x38] sm:$0xff]
        %v881 = vld [vmem:[%s872 + $0x40] sm:$0xff]
        %v882 = vld [vmem:[%s872 + $0x48] sm:$0xff]
        %v883 = vld [vmem:[%s872 + $0x50] sm:$0xff]
        %v884 = vld [vmem:[%s872 + $0x58] sm:$0xff]
        %v885 = vld [vmem:[%s872 + $0x60] sm:$0xff]
        %v886 = vld [vmem:[%s872 + $0x68] sm:$0xff]
        %v887 = vld [vmem:[%s872 + $0x70] sm:$0xff]
        %v888 = vld [vmem:[%s872 + $0x78] sm:$0xff]
        %v905 = vunpack.c.l.b16 %v873
        %v906 = vunpack.c.h.b16 %v873
        %v907 = vunpack.c.l.b16 %v874
        %v908 = vunpack.c.h.b16 %v874
        %v909 = vunpack.c.l.b16 %v875
        %v910 = vunpack.c.h.b16 %v875
        %v911 = vunpack.c.l.b16 %v876
        %v912 = vunpack.c.h.b16 %v876
        %v913 = vunpack.c.l.b16 %v877
        %v914 = vunpack.c.h.b16 %v877
        %v915 = vunpack.c.l.b16 %v878
        %v916 = vunpack.c.h.b16 %v878
        %v917 = vunpack.c.l.b16 %v879
        %v918 = vunpack.c.h.b16 %v879
        %v919 = vunpack.c.l.b16 %v880
        %v920 = vunpack.c.h.b16 %v880
        %v921 = vunpack.c.l.b16 %v881
        %v922 = vunpack.c.h.b16 %v881
        %v923 = vunpack.c.l.b16 %v882
        %v924 = vunpack.c.h.b16 %v882
        %v925 = vunpack.c.l.b16 %v883
        %v926 = vunpack.c.h.b16 %v883
        %v927 = vunpack.c.l.b16 %v884
        %v928 = vunpack.c.h.b16 %v884
        %v929 = vunpack.c.l.b16 %v885
        %v930 = vunpack.c.h.b16 %v885
        %v931 = vunpack.c.l.b16 %v886
        %v932 = vunpack.c.h.b16 %v886
        %v933 = vunpack.c.l.b16 %v887
        %v934 = vunpack.c.h.b16 %v887
        %v935 = vunpack.c.l.b16 %v888
        %v936 = vunpack.c.h.b16 %v888
        %v937 = vpack.c.b16 %v907, %v905
        %v938 = vpack.c.b16 %v908, %v906
        %v939 = vpack.c.b16 %v911, %v909
        %v940 = vpack.c.b16 %v912, %v910
        %v941 = vpack.c.b16 %v915, %v913
        %v942 = vpack.c.b16 %v916, %v914
        %v943 = vpack.c.b16 %v919, %v917
        %v944 = vpack.c.b16 %v920, %v918
        %v945 = vpack.c.b16 %v923, %v921
        %v946 = vpack.c.b16 %v924, %v922
        %v947 = vpack.c.b16 %v927, %v925
        %v948 = vpack.c.b16 %v928, %v926
        %v949 = vpack.c.b16 %v931, %v929
        %v950 = vpack.c.b16 %v932, %v930
        %v951 = vpack.c.b16 %v935, %v933
        %v952 = vpack.c.b16 %v936, %v934
        %969 = vmatprep.subr.bf16.mxu0 %v938
        %970 = vmatpush1.bf16.msra.mxu0 %v937
        %971 = vmatprep.subr.bf16.mxu0 %v940
        %972 = vmatpush1.bf16.msra.mxu0 %v939
        %973 = vmatprep.subr.bf16.mxu0 %v942
        %974 = vmatpush1.bf16.msra.mxu0 %v941
        %975 = vmatprep.subr.bf16.mxu0 %v944
        %976 = vmatpush1.bf16.msra.mxu0 %v943
        %977 = vmatprep.subr.bf16.mxu0 %v946
        %978 = vmatpush1.bf16.msra.mxu0 %v945
        %979 = vmatprep.subr.bf16.mxu0 %v948
        %980 = vmatpush1.bf16.msra.mxu0 %v947
        %981 = vmatprep.subr.bf16.mxu0 %v950
        %982 = vmatpush1.bf16.msra.mxu0 %v949
        %983 = vmatprep.subr.bf16.mxu0 %v952
        %984 = vmatpush1.bf16.msra.mxu0 %v951
        %985 = vmatprep.subr.bf16.mxu0 0
        %986 = vmatpush1.bf16.msra.mxu0 0
        %987 = vmatprep.subr.bf16.mxu0 0
        %988 = vmatpush1.bf16.msra.mxu0 0
        %989 = vmatprep.subr.bf16.mxu0 0
        %990 = vmatpush1.bf16.msra.mxu0 0
        %991 = vmatprep.subr.bf16.mxu0 0
        %992 = vmatpush1.bf16.msra.mxu0 0
        %993 = vmatprep.subr.bf16.mxu0 0
        %994 = vmatpush1.bf16.msra.mxu0 0
        %995 = vmatprep.subr.bf16.mxu0 0
        %996 = vmatpush1.bf16.msra.mxu0 0
        %997 = vmatprep.subr.bf16.mxu0 0
        %998 = vmatpush1.bf16.msra.mxu0 0
        %999 = vmatprep.subr.bf16.mxu0 0
        %1000 = vmatpush1.bf16.msra.mxu0 0
        %1001 = vmatprep.mubr.bf16.mxu0 0
        %1002 = vmatmul.mubr.bf16.gmra.mrb[0].mxu0 %v503
        %v1003 = vpop.f32.mrb[0].mxu0
        %v1004 = vadd.f32 0.0, %v1003
        %v1005 = vpop.f32.mrb[0].mxu0
        %v1006 = vadd.f32 0.0, %v1005
        %v1007 = vpop.f32.mrb[0].mxu0
        %v1008 = vadd.f32 0.0, %v1007
        %v1009 = vpop.f32.mrb[0].mxu0
        %v1010 = vadd.f32 0.0, %v1009
        %1011 = vmatprep.mubr.bf16.mxu0 0
        %1012 = vmatmul.mubr.bf16.gmra.mrb[0].mxu0 %v504
        %v1013 = vpop.f32.mrb[0].mxu0
        %v1014 = vadd.f32 0.0, %v1013
        %v1015 = vpop.f32.mrb[0].mxu0
        %v1016 = vadd.f32 0.0, %v1015
        %v1017 = vpop.f32.mrb[0].mxu0
        %v1018 = vadd.f32 0.0, %v1017
        %v1019 = vpop.f32.mrb[0].mxu0
        %v1020 = vadd.f32 0.0, %v1019
        %1021 = vmatprep.mubr.bf16.mxu0 0
        %1022 = vmatmul.mubr.bf16.gmra.mrb[0].mxu0 %v505
        %v1023 = vpop.f32.mrb[0].mxu0
        %v1024 = vadd.f32 0.0, %v1023
        %v1025 = vpop.f32.mrb[0].mxu0
        %v1026 = vadd.f32 0.0, %v1025
        %v1027 = vpop.f32.mrb[0].mxu0
        %v1028 = vadd.f32 0.0, %v1027
        %v1029 = vpop.f32.mrb[0].mxu0
        %v1030 = vadd.f32 0.0, %v1029
        %1031 = vmatprep.mubr.bf16.mxu0 0
        %1032 = vmatmul.mubr.bf16.gmra.mrb[0].mxu0 %v506
        %v1033 = vpop.f32.mrb[0].mxu0
        %v1034 = vadd.f32 0.0, %v1033
        %v1035 = vpop.f32.mrb[0].mxu0
        %v1036 = vadd.f32 0.0, %v1035
        %v1037 = vpop.f32.mrb[0].mxu0
        %v1038 = vadd.f32 0.0, %v1037
        %v1039 = vpop.f32.mrb[0].mxu0
        %v1040 = vadd.f32 0.0, %v1039
        %1041 = vmatprep.mubr.bf16.mxu0 0
        %1042 = vmatmul.mubr.bf16.gmra.mrb[0].mxu0 %v507
        %v1043 = vpop.f32.mrb[0].mxu0
        %v1044 = vadd.f32 0.0, %v1043
        %v1045 = vpop.f32.mrb[0].mxu0
        %v1046 = vadd.f32 0.0, %v1045
        %v1047 = vpop.f32.mrb[0].mxu0
        %v1048 = vadd.f32 0.0, %v1047
        %v1049 = vpop.f32.mrb[0].mxu0
        %v1050 = vadd.f32 0.0, %v1049
        %1051 = vmatprep.mubr.bf16.mxu0 0
        %1052 = vmatmul.mubr.bf16.gmra.mrb[0].mxu0 %v508
        %v1053 = vpop.f32.mrb[0].mxu0
        %v1054 = vadd.f32 0.0, %v1053
        %v1055 = vpop.f32.mrb[0].mxu0
        %v1056 = vadd.f32 0.0, %v1055
        %v1057 = vpop.f32.mrb[0].mxu0
        %v1058 = vadd.f32 0.0, %v1057
        %v1059 = vpop.f32.mrb[0].mxu0
        %v1060 = vadd.f32 0.0, %v1059
        %1061 = vmatprep.mubr.bf16.mxu0 0
        %1062 = vmatmul.mubr.bf16.gmra.mrb[0].mxu0 %v509
        %v1063 = vpop.f32.mrb[0].mxu0
        %v1064 = vadd.f32 0.0, %v1063
        %v1065 = vpop.f32.mrb[0].mxu0
        %v1066 = vadd.f32 0.0, %v1065
        %v1067 = vpop.f32.mrb[0].mxu0
        %v1068 = vadd.f32 0.0, %v1067
        %v1069 = vpop.f32.mrb[0].mxu0
        %v1070 = vadd.f32 0.0, %v1069
        %1071 = vmatprep.mubr.bf16.mxu0 0
        %1072 = vmatmul.mubr.bf16.gmra.mrb[0].mxu0 %v510
        %v1073 = vpop.f32.mrb[0].mxu0
        %v1074 = vadd.f32 0.0, %v1073
        %v1075 = vpop.f32.mrb[0].mxu0
        %v1076 = vadd.f32 0.0, %v1075
        %v1077 = vpop.f32.mrb[0].mxu0
        %v1078 = vadd.f32 0.0, %v1077
        %v1079 = vpop.f32.mrb[0].mxu0
        %v1080 = vadd.f32 0.0, %v1079
        %1081 = vmatprep.mubr.bf16.mxu0 0
        %1082 = vmatmul.mubr.bf16.gmra.mrb[0].mxu0 %v511
        %v1083 = vpop.f32.mrb[0].mxu0
        %v1084 = vadd.f32 0.0, %v1083
        %v1085 = vpop.f32.mrb[0].mxu0
        %v1086 = vadd.f32 0.0, %v1085
        %v1087 = vpop.f32.mrb[0].mxu0
        %v1088 = vadd.f32 0.0, %v1087
        %v1089 = vpop.f32.mrb[0].mxu0
        %v1090 = vadd.f32 0.0, %v1089
        %1091 = vmatprep.mubr.bf16.mxu0 0
        %1092 = vmatmul.mubr.bf16.gmra.mrb[0].mxu0 %v512
        %v1093 = vpop.f32.mrb[0].mxu0
        %v1094 = vadd.f32 0.0, %v1093
        %v1095 = vpop.f32.mrb[0].mxu0
        %v1096 = vadd.f32 0.0, %v1095
        %v1097 = vpop.f32.mrb[0].mxu0
        %v1098 = vadd.f32 0.0, %v1097
        %v1099 = vpop.f32.mrb[0].mxu0
        %v1100 = vadd.f32 0.0, %v1099
        %1101 = vmatprep.mubr.bf16.mxu0 0
        %1102 = vmatmul.mubr.bf16.gmra.mrb[0].mxu0 %v513
        %v1103 = vpop.f32.mrb[0].mxu0
        %v1104 = vadd.f32 0.0, %v1103
        %v1105 = vpop.f32.mrb[0].mxu0
        %v1106 = vadd.f32 0.0, %v1105
        %v1107 = vpop.f32.mrb[0].mxu0
        %v1108 = vadd.f32 0.0, %v1107
        %v1109 = vpop.f32.mrb[0].mxu0
        %v1110 = vadd.f32 0.0, %v1109
        %1111 = vmatprep.mubr.bf16.mxu0 0
        %1112 = vmatmul.mubr.bf16.gmra.mrb[0].mxu0 %v514
        %v1113 = vpop.f32.mrb[0].mxu0
        %v1114 = vadd.f32 0.0, %v1113
        %v1115 = vpop.f32.mrb[0].mxu0
        %v1116 = vadd.f32 0.0, %v1115
        %v1117 = vpop.f32.mrb[0].mxu0
        %v1118 = vadd.f32 0.0, %v1117
        %v1119 = vpop.f32.mrb[0].mxu0
        %v1120 = vadd.f32 0.0, %v1119
        %1121 = vmatprep.mubr.bf16.mxu0 0
        %1122 = vmatmul.mubr.bf16.gmra.mrb[0].mxu0 %v515
        %v1123 = vpop.f32.mrb[0].mxu0
        %v1124 = vadd.f32 0.0, %v1123
        %v1125 = vpop.f32.mrb[0].mxu0
        %v1126 = vadd.f32 0.0, %v1125
        %v1127 = vpop.f32.mrb[0].mxu0
        %v1128 = vadd.f32 0.0, %v1127
        %v1129 = vpop.f32.mrb[0].mxu0
        %v1130 = vadd.f32 0.0, %v1129
        %1131 = vmatprep.mubr.bf16.mxu0 0
        %1132 = vmatmul.mubr.bf16.gmra.mrb[0].mxu0 %v516
        %v1133 = vpop.f32.mrb[0].mxu0
        %v1134 = vadd.f32 0.0, %v1133
        %v1135 = vpop.f32.mrb[0].mxu0
        %v1136 = vadd.f32 0.0, %v1135
        %v1137 = vpop.f32.mrb[0].mxu0
        %v1138 = vadd.f32 0.0, %v1137
        %v1139 = vpop.f32.mrb[0].mxu0
        %v1140 = vadd.f32 0.0, %v1139
        %1141 = vmatprep.mubr.bf16.mxu0 0
        %1142 = vmatmul.mubr.bf16.gmra.mrb[0].mxu0 %v517
        %v1143 = vpop.f32.mrb[0].mxu0
        %v1144 = vadd.f32 0.0, %v1143
        %v1145 = vpop.f32.mrb[0].mxu0
        %v1146 = vadd.f32 0.0, %v1145
        %v1147 = vpop.f32.mrb[0].mxu0
        %v1148 = vadd.f32 0.0, %v1147
        %v1149 = vpop.f32.mrb[0].mxu0
        %v1150 = vadd.f32 0.0, %v1149
        %1151 = vmatprep.mubr.bf16.mxu0 0
        %1152 = vmatmul.mubr.bf16.gmra.mrb[0].mxu0 %v518
        %v1153 = vpop.f32.mrb[0].mxu0
        %v1154 = vadd.f32 0.0, %v1153
        %v1155 = vpop.f32.mrb[0].mxu0
        %v1156 = vadd.f32 0.0, %v1155
        %v1157 = vpop.f32.mrb[0].mxu0
        %v1158 = vadd.f32 0.0, %v1157
        %v1159 = vpop.f32.mrb[0].mxu0
        %v1160 = vadd.f32 0.0, %v1159
        %1161 = vdwg.mxu0
        %s1162 = scalar_lea.vmem [#allocation2], 512
        %1163 = vst [vmem:[%s1162] sm:$0xff] %v1004
        %1164 = vst [vmem:[%s1162 + $0x8] sm:$0xff] %v1006
        %1165 = vst [vmem:[%s1162 + $0x10] sm:$0xff] %v1008
        %1166 = vst [vmem:[%s1162 + $0x18] sm:$0xff] %v1010
        %1167 = vst [vmem:[%s1162 + $0x20] sm:$0xff] %v1014
        %1168 = vst [vmem:[%s1162 + $0x28] sm:$0xff] %v1016
        %1169 = vst [vmem:[%s1162 + $0x30] sm:$0xff] %v1018
        %1170 = vst [vmem:[%s1162 + $0x38] sm:$0xff] %v1020
        %1171 = vst [vmem:[%s1162 + $0x40] sm:$0xff] %v1024
        %1172 = vst [vmem:[%s1162 + $0x48] sm:$0xff] %v1026
        %1173 = vst [vmem:[%s1162 + $0x50] sm:$0xff] %v1028
        %1174 = vst [vmem:[%s1162 + $0x58] sm:$0xff] %v1030
        %1175 = vst [vmem:[%s1162 + $0x60] sm:$0xff] %v1034
        %1176 = vst [vmem:[%s1162 + $0x68] sm:$0xff] %v1036
        %1177 = vst [vmem:[%s1162 + $0x70] sm:$0xff] %v1038
        %1178 = vst [vmem:[%s1162 + $0x78] sm:$0xff] %v1040
        %1179 = vst [vmem:[%s1162 + $0x80] sm:$0xff] %v1044
        %1180 = vst [vmem:[%s1162 + $0x88] sm:$0xff] %v1046
        %1181 = vst [vmem:[%s1162 + $0x90] sm:$0xff] %v1048
        %1182 = vst [vmem:[%s1162 + $0x98] sm:$0xff] %v1050
        %1183 = vst [vmem:[%s1162 + $0xa0] sm:$0xff] %v1054
        %1184 = vst [vmem:[%s1162 + $0xa8] sm:$0xff] %v1056
        %1185 = vst [vmem:[%s1162 + $0xb0] sm:$0xff] %v1058
        %1186 = vst [vmem:[%s1162 + $0xb8] sm:$0xff] %v1060
        %1187 = vst [vmem:[%s1162 + $0xc0] sm:$0xff] %v1064
        %1188 = vst [vmem:[%s1162 + $0xc8] sm:$0xff] %v1066
        %1189 = vst [vmem:[%s1162 + $0xd0] sm:$0xff] %v1068
        %1190 = vst [vmem:[%s1162 + $0xd8] sm:$0xff] %v1070
        %1191 = vst [vmem:[%s1162 + $0xe0] sm:$0xff] %v1074
        %1192 = vst [vmem:[%s1162 + $0xe8] sm:$0xff] %v1076
        %1193 = vst [vmem:[%s1162 + $0xf0] sm:$0xff] %v1078
        %1194 = vst [vmem:[%s1162 + $0xf8] sm:$0xff] %v1080
        %1195 = vst [vmem:[%s1162 + $0x100] sm:$0xff] %v1084
        %1196 = vst [vmem:[%s1162 + $0x108] sm:$0xff] %v1086
        %1197 = vst [vmem:[%s1162 + $0x110] sm:$0xff] %v1088
        %1198 = vst [vmem:[%s1162 + $0x118] sm:$0xff] %v1090
        %1199 = vst [vmem:[%s1162 + $0x120] sm:$0xff] %v1094
        %1200 = vst [vmem:[%s1162 + $0x128] sm:$0xff] %v1096
        %1201 = vst [vmem:[%s1162 + $0x130] sm:$0xff] %v1098
        %1202 = vst [vmem:[%s1162 + $0x138] sm:$0xff] %v1100
        %1203 = vst [vmem:[%s1162 + $0x140] sm:$0xff] %v1104
        %1204 = vst [vmem:[%s1162 + $0x148] sm:$0xff] %v1106
        %1205 = vst [vmem:[%s1162 + $0x150] sm:$0xff] %v1108
        %1206 = vst [vmem:[%s1162 + $0x158] sm:$0xff] %v1110
        %1207 = vst [vmem:[%s1162 + $0x160] sm:$0xff] %v1114
        %1208 = vst [vmem:[%s1162 + $0x168] sm:$0xff] %v1116
        %1209 = vst [vmem:[%s1162 + $0x170] sm:$0xff] %v1118
        %1210 = vst [vmem:[%s1162 + $0x178] sm:$0xff] %v1120
        %1211 = vst [vmem:[%s1162 + $0x180] sm:$0xff] %v1124
        %1212 = vst [vmem:[%s1162 + $0x188] sm:$0xff] %v1126
        %1213 = vst [vmem:[%s1162 + $0x190] sm:$0xff] %v1128
        %1214 = vst [vmem:[%s1162 + $0x198] sm:$0xff] %v1130
        %1215 = vst [vmem:[%s1162 + $0x1a0] sm:$0xff] %v1134
        %1216 = vst [vmem:[%s1162 + $0x1a8] sm:$0xff] %v1136
        %1217 = vst [vmem:[%s1162 + $0x1b0] sm:$0xff] %v1138
        %1218 = vst [vmem:[%s1162 + $0x1b8] sm:$0xff] %v1140
        %1219 = vst [vmem:[%s1162 + $0x1c0] sm:$0xff] %v1144
        %1220 = vst [vmem:[%s1162 + $0x1c8] sm:$0xff] %v1146
        %1221 = vst [vmem:[%s1162 + $0x1d0] sm:$0xff] %v1148
        %1222 = vst [vmem:[%s1162 + $0x1d8] sm:$0xff] %v1150
        %1223 = vst [vmem:[%s1162 + $0x1e0] sm:$0xff] %v1154
        %1224 = vst [vmem:[%s1162 + $0x1e8] sm:$0xff] %v1156
        %1225 = vst [vmem:[%s1162 + $0x1f0] sm:$0xff] %v1158
        %1226 = vst [vmem:[%s1162 + $0x1f8] sm:$0xff] %v1160
        %s1227 = scalar_lea.vmem %s1, 256
        %v1228 = vld [vmem:[%s1227] sm:$0xff]
        %v1229 = vld [vmem:[%s1227 + $0x8] sm:$0xff]
        %v1230 = vld [vmem:[%s1227 + $0x10] sm:$0xff]
        %v1231 = vld [vmem:[%s1227 + $0x18] sm:$0xff]
        %v1232 = vld [vmem:[%s1227 + $0x20] sm:$0xff]
        %v1233 = vld [vmem:[%s1227 + $0x28] sm:$0xff]
        %v1234 = vld [vmem:[%s1227 + $0x30] sm:$0xff]
        %v1235 = vld [vmem:[%s1227 + $0x38] sm:$0xff]
        %v1236 = vld [vmem:[%s1227 + $0x40] sm:$0xff]
        %v1237 = vld [vmem:[%s1227 + $0x48] sm:$0xff]
        %v1238 = vld [vmem:[%s1227 + $0x50] sm:$0xff]
        %v1239 = vld [vmem:[%s1227 + $0x58] sm:$0xff]
        %v1240 = vld [vmem:[%s1227 + $0x60] sm:$0xff]
        %v1241 = vld [vmem:[%s1227 + $0x68] sm:$0xff]
        %v1242 = vld [vmem:[%s1227 + $0x70] sm:$0xff]
        %v1243 = vld [vmem:[%s1227 + $0x78] sm:$0xff]
        %v1260 = vunpack.c.l.b16 %v1228
        %v1261 = vunpack.c.h.b16 %v1228
        %v1262 = vunpack.c.l.b16 %v1229
        %v1263 = vunpack.c.h.b16 %v1229
        %v1264 = vunpack.c.l.b16 %v1230
        %v1265 = vunpack.c.h.b16 %v1230
        %v1266 = vunpack.c.l.b16 %v1231
        %v1267 = vunpack.c.h.b16 %v1231
        %v1268 = vunpack.c.l.b16 %v1232
        %v1269 = vunpack.c.h.b16 %v1232
        %v1270 = vunpack.c.l.b16 %v1233
        %v1271 = vunpack.c.h.b16 %v1233
        %v1272 = vunpack.c.l.b16 %v1234
        %v1273 = vunpack.c.h.b16 %v1234
        %v1274 = vunpack.c.l.b16 %v1235
        %v1275 = vunpack.c.h.b16 %v1235
        %v1276 = vunpack.c.l.b16 %v1236
        %v1277 = vunpack.c.h.b16 %v1236
        %v1278 = vunpack.c.l.b16 %v1237
        %v1279 = vunpack.c.h.b16 %v1237
        %v1280 = vunpack.c.l.b16 %v1238
        %v1281 = vunpack.c.h.b16 %v1238
        %v1282 = vunpack.c.l.b16 %v1239
        %v1283 = vunpack.c.h.b16 %v1239
        %v1284 = vunpack.c.l.b16 %v1240
        %v1285 = vunpack.c.h.b16 %v1240
        %v1286 = vunpack.c.l.b16 %v1241
        %v1287 = vunpack.c.h.b16 %v1241
        %v1288 = vunpack.c.l.b16 %v1242
        %v1289 = vunpack.c.h.b16 %v1242
        %v1290 = vunpack.c.l.b16 %v1243
        %v1291 = vunpack.c.h.b16 %v1243
        %v1292 = vpack.c.b16 %v1262, %v1260
        %v1293 = vpack.c.b16 %v1263, %v1261
        %v1294 = vpack.c.b16 %v1266, %v1264
        %v1295 = vpack.c.b16 %v1267, %v1265
        %v1296 = vpack.c.b16 %v1270, %v1268
        %v1297 = vpack.c.b16 %v1271, %v1269
        %v1298 = vpack.c.b16 %v1274, %v1272
        %v1299 = vpack.c.b16 %v1275, %v1273
        %v1300 = vpack.c.b16 %v1278, %v1276
        %v1301 = vpack.c.b16 %v1279, %v1277
        %v1302 = vpack.c.b16 %v1282, %v1280
        %v1303 = vpack.c.b16 %v1283, %v1281
        %v1304 = vpack.c.b16 %v1286, %v1284
        %v1305 = vpack.c.b16 %v1287, %v1285
        %v1306 = vpack.c.b16 %v1290, %v1288
        %v1307 = vpack.c.b16 %v1291, %v1289
        %1324 = vmatprep.subr.bf16.mxu0 %v1293
        %1325 = vmatpush1.bf16.msra.mxu0 %v1292
        %1326 = vmatprep.subr.bf16.mxu0 %v1295
        %1327 = vmatpush1.bf16.msra.mxu0 %v1294
        %1328 = vmatprep.subr.bf16.mxu0 %v1297
        %1329 = vmatpush1.bf16.msra.mxu0 %v1296
        %1330 = vmatprep.subr.bf16.mxu0 %v1299
        %1331 = vmatpush1.bf16.msra.mxu0 %v1298
        %1332 = vmatprep.subr.bf16.mxu0 %v1301
        %1333 = vmatpush1.bf16.msra.mxu0 %v1300
        %1334 = vmatprep.subr.bf16.mxu0 %v1303
        %1335 = vmatpush1.bf16.msra.mxu0 %v1302
        %1336 = vmatprep.subr.bf16.mxu0 %v1305
        %1337 = vmatpush1.bf16.msra.mxu0 %v1304
        %1338 = vmatprep.subr.bf16.mxu0 %v1307
        %1339 = vmatpush1.bf16.msra.mxu0 %v1306
        %1340 = vmatprep.subr.bf16.mxu0 0
        %1341 = vmatpush1.bf16.msra.mxu0 0
        %1342 = vmatprep.subr.bf16.mxu0 0
        %1343 = vmatpush1.bf16.msra.mxu0 0
        %1344 = vmatprep.subr.bf16.mxu0 0
        %1345 = vmatpush1.bf16.msra.mxu0 0
        %1346 = vmatprep.subr.bf16.mxu0 0
        %1347 = vmatpush1.bf16.msra.mxu0 0
        %1348 = vmatprep.subr.bf16.mxu0 0
        %1349 = vmatpush1.bf16.msra.mxu0 0
        %1350 = vmatprep.subr.bf16.mxu0 0
        %1351 = vmatpush1.bf16.msra.mxu0 0
        %1352 = vmatprep.subr.bf16.mxu0 0
        %1353 = vmatpush1.bf16.msra.mxu0 0
        %1354 = vmatprep.subr.bf16.mxu0 0
        %1355 = vmatpush1.bf16.msra.mxu0 0
        %1356 = vmatprep.mubr.bf16.mxu0 0
        %1357 = vmatmul.mubr.bf16.gmra.mrb[0].mxu0 %v503
        %v1358 = vpop.f32.mrb[0].mxu0
        %v1359 = vadd.f32 0.0, %v1358
        %v1360 = vpop.f32.mrb[0].mxu0
        %v1361 = vadd.f32 0.0, %v1360
        %v1362 = vpop.f32.mrb[0].mxu0
        %v1363 = vadd.f32 0.0, %v1362
        %v1364 = vpop.f32.mrb[0].mxu0
        %v1365 = vadd.f32 0.0, %v1364
        %1366 = vmatprep.mubr.bf16.mxu0 0
        %1367 = vmatmul.mubr.bf16.gmra.mrb[0].mxu0 %v504
        %v1368 = vpop.f32.mrb[0].mxu0
        %v1369 = vadd.f32 0.0, %v1368
        %v1370 = vpop.f32.mrb[0].mxu0
        %v1371 = vadd.f32 0.0, %v1370
        %v1372 = vpop.f32.mrb[0].mxu0
        %v1373 = vadd.f32 0.0, %v1372
        %v1374 = vpop.f32.mrb[0].mxu0
        %v1375 = vadd.f32 0.0, %v1374
        %1376 = vmatprep.mubr.bf16.mxu0 0
        %1377 = vmatmul.mubr.bf16.gmra.mrb[0].mxu0 %v505
        %v1378 = vpop.f32.mrb[0].mxu0
        %v1379 = vadd.f32 0.0, %v1378
        %v1380 = vpop.f32.mrb[0].mxu0
        %v1381 = vadd.f32 0.0, %v1380
        %v1382 = vpop.f32.mrb[0].mxu0
        %v1383 = vadd.f32 0.0, %v1382
        %v1384 = vpop.f32.mrb[0].mxu0
        %v1385 = vadd.f32 0.0, %v1384
        %1386 = vmatprep.mubr.bf16.mxu0 0
        %1387 = vmatmul.mubr.bf16.gmra.mrb[0].mxu0 %v506
        %v1388 = vpop.f32.mrb[0].mxu0
        %v1389 = vadd.f32 0.0, %v1388
        %v1390 = vpop.f32.mrb[0].mxu0
        %v1391 = vadd.f32 0.0, %v1390
        %v1392 = vpop.f32.mrb[0].mxu0
        %v1393 = vadd.f32 0.0, %v1392
        %v1394 = vpop.f32.mrb[0].mxu0
        %v1395 = vadd.f32 0.0, %v1394
        %1396 = vmatprep.mubr.bf16.mxu0 0
        %1397 = vmatmul.mubr.bf16.gmra.mrb[0].mxu0 %v507
        %v1398 = vpop.f32.mrb[0].mxu0
        %v1399 = vadd.f32 0.0, %v1398
        %v1400 = vpop.f32.mrb[0].mxu0
        %v1401 = vadd.f32 0.0, %v1400
        %v1402 = vpop.f32.mrb[0].mxu0
        %v1403 = vadd.f32 0.0, %v1402
        %v1404 = vpop.f32.mrb[0].mxu0
        %v1405 = vadd.f32 0.0, %v1404
        %1406 = vmatprep.mubr.bf16.mxu0 0
        %1407 = vmatmul.mubr.bf16.gmra.mrb[0].mxu0 %v508
        %v1408 = vpop.f32.mrb[0].mxu0
        %v1409 = vadd.f32 0.0, %v1408
        %v1410 = vpop.f32.mrb[0].mxu0
        %v1411 = vadd.f32 0.0, %v1410
        %v1412 = vpop.f32.mrb[0].mxu0
        %v1413 = vadd.f32 0.0, %v1412
        %v1414 = vpop.f32.mrb[0].mxu0
        %v1415 = vadd.f32 0.0, %v1414
        %1416 = vmatprep.mubr.bf16.mxu0 0
        %1417 = vmatmul.mubr.bf16.gmra.mrb[0].mxu0 %v509
        %v1418 = vpop.f32.mrb[0].mxu0
        %v1419 = vadd.f32 0.0, %v1418
        %v1420 = vpop.f32.mrb[0].mxu0
        %v1421 = vadd.f32 0.0, %v1420
        %v1422 = vpop.f32.mrb[0].mxu0
        %v1423 = vadd.f32 0.0, %v1422
        %v1424 = vpop.f32.mrb[0].mxu0
        %v1425 = vadd.f32 0.0, %v1424
        %1426 = vmatprep.mubr.bf16.mxu0 0
        %1427 = vmatmul.mubr.bf16.gmra.mrb[0].mxu0 %v510
        %v1428 = vpop.f32.mrb[0].mxu0
        %v1429 = vadd.f32 0.0, %v1428
        %v1430 = vpop.f32.mrb[0].mxu0
        %v1431 = vadd.f32 0.0, %v1430
        %v1432 = vpop.f32.mrb[0].mxu0
        %v1433 = vadd.f32 0.0, %v1432
        %v1434 = vpop.f32.mrb[0].mxu0
        %v1435 = vadd.f32 0.0, %v1434
        %1436 = vmatprep.mubr.bf16.mxu0 0
        %1437 = vmatmul.mubr.bf16.gmra.mrb[0].mxu0 %v511
        %v1438 = vpop.f32.mrb[0].mxu0
        %v1439 = vadd.f32 0.0, %v1438
        %v1440 = vpop.f32.mrb[0].mxu0
        %v1441 = vadd.f32 0.0, %v1440
        %v1442 = vpop.f32.mrb[0].mxu0
        %v1443 = vadd.f32 0.0, %v1442
        %v1444 = vpop.f32.mrb[0].mxu0
        %v1445 = vadd.f32 0.0, %v1444
        %1446 = vmatprep.mubr.bf16.mxu0 0
        %1447 = vmatmul.mubr.bf16.gmra.mrb[0].mxu0 %v512
        %v1448 = vpop.f32.mrb[0].mxu0
        %v1449 = vadd.f32 0.0, %v1448
        %v1450 = vpop.f32.mrb[0].mxu0
        %v1451 = vadd.f32 0.0, %v1450
        %v1452 = vpop.f32.mrb[0].mxu0
        %v1453 = vadd.f32 0.0, %v1452
        %v1454 = vpop.f32.mrb[0].mxu0
        %v1455 = vadd.f32 0.0, %v1454
        %1456 = vmatprep.mubr.bf16.mxu0 0
        %1457 = vmatmul.mubr.bf16.gmra.mrb[0].mxu0 %v513
        %v1458 = vpop.f32.mrb[0].mxu0
        %v1459 = vadd.f32 0.0, %v1458
        %v1460 = vpop.f32.mrb[0].mxu0
        %v1461 = vadd.f32 0.0, %v1460
        %v1462 = vpop.f32.mrb[0].mxu0
        %v1463 = vadd.f32 0.0, %v1462
        %v1464 = vpop.f32.mrb[0].mxu0
        %v1465 = vadd.f32 0.0, %v1464
        %1466 = vmatprep.mubr.bf16.mxu0 0
        %1467 = vmatmul.mubr.bf16.gmra.mrb[0].mxu0 %v514
        %v1468 = vpop.f32.mrb[0].mxu0
        %v1469 = vadd.f32 0.0, %v1468
        %v1470 = vpop.f32.mrb[0].mxu0
        %v1471 = vadd.f32 0.0, %v1470
        %v1472 = vpop.f32.mrb[0].mxu0
        %v1473 = vadd.f32 0.0, %v1472
        %v1474 = vpop.f32.mrb[0].mxu0
        %v1475 = vadd.f32 0.0, %v1474
        %1476 = vmatprep.mubr.bf16.mxu0 0
        %1477 = vmatmul.mubr.bf16.gmra.mrb[0].mxu0 %v515
        %v1478 = vpop.f32.mrb[0].mxu0
        %v1479 = vadd.f32 0.0, %v1478
        %v1480 = vpop.f32.mrb[0].mxu0
        %v1481 = vadd.f32 0.0, %v1480
        %v1482 = vpop.f32.mrb[0].mxu0
        %v1483 = vadd.f32 0.0, %v1482
        %v1484 = vpop.f32.mrb[0].mxu0
        %v1485 = vadd.f32 0.0, %v1484
        %1486 = vmatprep.mubr.bf16.mxu0 0
        %1487 = vmatmul.mubr.bf16.gmra.mrb[0].mxu0 %v516
        %v1488 = vpop.f32.mrb[0].mxu0
        %v1489 = vadd.f32 0.0, %v1488
        %v1490 = vpop.f32.mrb[0].mxu0
        %v1491 = vadd.f32 0.0, %v1490
        %v1492 = vpop.f32.mrb[0].mxu0
        %v1493 = vadd.f32 0.0, %v1492
        %v1494 = vpop.f32.mrb[0].mxu0
        %v1495 = vadd.f32 0.0, %v1494
        %1496 = vmatprep.mubr.bf16.mxu0 0
        %1497 = vmatmul.mubr.bf16.gmra.mrb[0].mxu0 %v517
        %v1498 = vpop.f32.mrb[0].mxu0
        %v1499 = vadd.f32 0.0, %v1498
        %v1500 = vpop.f32.mrb[0].mxu0
        %v1501 = vadd.f32 0.0, %v1500
        %v1502 = vpop.f32.mrb[0].mxu0
        %v1503 = vadd.f32 0.0, %v1502
        %v1504 = vpop.f32.mrb[0].mxu0
        %v1505 = vadd.f32 0.0, %v1504
        %1506 = vmatprep.mubr.bf16.mxu0 0
        %1507 = vmatmul.mubr.bf16.gmra.mrb[0].mxu0 %v518
        %v1508 = vpop.f32.mrb[0].mxu0
        %v1509 = vadd.f32 0.0, %v1508
        %v1510 = vpop.f32.mrb[0].mxu0
        %v1511 = vadd.f32 0.0, %v1510
        %v1512 = vpop.f32.mrb[0].mxu0
        %v1513 = vadd.f32 0.0, %v1512
        %v1514 = vpop.f32.mrb[0].mxu0
        %v1515 = vadd.f32 0.0, %v1514
        %1516 = vdwg.mxu0
        %s1517 = scalar_lea.vmem [#allocation2], 1024
        %1518 = vst [vmem:[%s1517] sm:$0xff] %v1359
        %1519 = vst [vmem:[%s1517 + $0x8] sm:$0xff] %v1361
        %1520 = vst [vmem:[%s1517 + $0x10] sm:$0xff] %v1363
        %1521 = vst [vmem:[%s1517 + $0x18] sm:$0xff] %v1365
        %1522 = vst [vmem:[%s1517 + $0x20] sm:$0xff] %v1369
        %1523 = vst [vmem:[%s1517 + $0x28] sm:$0xff] %v1371
        %1524 = vst [vmem:[%s1517 + $0x30] sm:$0xff] %v1373
        %1525 = vst [vmem:[%s1517 + $0x38] sm:$0xff] %v1375
        %1526 = vst [vmem:[%s1517 + $0x40] sm:$0xff] %v1379
        %1527 = vst [vmem:[%s1517 + $0x48] sm:$0xff] %v1381
        %1528 = vst [vmem:[%s1517 + $0x50] sm:$0xff] %v1383
        %1529 = vst [vmem:[%s1517 + $0x58] sm:$0xff] %v1385
        %1530 = vst [vmem:[%s1517 + $0x60] sm:$0xff] %v1389
        %1531 = vst [vmem:[%s1517 + $0x68] sm:$0xff] %v1391
        %1532 = vst [vmem:[%s1517 + $0x70] sm:$0xff] %v1393
        %1533 = vst [vmem:[%s1517 + $0x78] sm:$0xff] %v1395
        %1534 = vst [vmem:[%s1517 + $0x80] sm:$0xff] %v1399
        %1535 = vst [vmem:[%s1517 + $0x88] sm:$0xff] %v1401
        %1536 = vst [vmem:[%s1517 + $0x90] sm:$0xff] %v1403
        %1537 = vst [vmem:[%s1517 + $0x98] sm:$0xff] %v1405
        %1538 = vst [vmem:[%s1517 + $0xa0] sm:$0xff] %v1409
        %1539 = vst [vmem:[%s1517 + $0xa8] sm:$0xff] %v1411
        %1540 = vst [vmem:[%s1517 + $0xb0] sm:$0xff] %v1413
        %1541 = vst [vmem:[%s1517 + $0xb8] sm:$0xff] %v1415
        %1542 = vst [vmem:[%s1517 + $0xc0] sm:$0xff] %v1419
        %1543 = vst [vmem:[%s1517 + $0xc8] sm:$0xff] %v1421
        %1544 = vst [vmem:[%s1517 + $0xd0] sm:$0xff] %v1423
        %1545 = vst [vmem:[%s1517 + $0xd8] sm:$0xff] %v1425
        %1546 = vst [vmem:[%s1517 + $0xe0] sm:$0xff] %v1429
        %1547 = vst [vmem:[%s1517 + $0xe8] sm:$0xff] %v1431
        %1548 = vst [vmem:[%s1517 + $0xf0] sm:$0xff] %v1433
        %1549 = vst [vmem:[%s1517 + $0xf8] sm:$0xff] %v1435
        %1550 = vst [vmem:[%s1517 + $0x100] sm:$0xff] %v1439
        %1551 = vst [vmem:[%s1517 + $0x108] sm:$0xff] %v1441
        %1552 = vst [vmem:[%s1517 + $0x110] sm:$0xff] %v1443
        %1553 = vst [vmem:[%s1517 + $0x118] sm:$0xff] %v1445
        %1554 = vst [vmem:[%s1517 + $0x120] sm:$0xff] %v1449
        %1555 = vst [vmem:[%s1517 + $0x128] sm:$0xff] %v1451
        %1556 = vst [vmem:[%s1517 + $0x130] sm:$0xff] %v1453
        %1557 = vst [vmem:[%s1517 + $0x138] sm:$0xff] %v1455
        %1558 = vst [vmem:[%s1517 + $0x140] sm:$0xff] %v1459
        %1559 = vst [vmem:[%s1517 + $0x148] sm:$0xff] %v1461
        %1560 = vst [vmem:[%s1517 + $0x150] sm:$0xff] %v1463
        %1561 = vst [vmem:[%s1517 + $0x158] sm:$0xff] %v1465
        %1562 = vst [vmem:[%s1517 + $0x160] sm:$0xff] %v1469
        %1563 = vst [vmem:[%s1517 + $0x168] sm:$0xff] %v1471
        %1564 = vst [vmem:[%s1517 + $0x170] sm:$0xff] %v1473
        %1565 = vst [vmem:[%s1517 + $0x178] sm:$0xff] %v1475
        %1566 = vst [vmem:[%s1517 + $0x180] sm:$0xff] %v1479
        %1567 = vst [vmem:[%s1517 + $0x188] sm:$0xff] %v1481
        %1568 = vst [vmem:[%s1517 + $0x190] sm:$0xff] %v1483
        %1569 = vst [vmem:[%s1517 + $0x198] sm:$0xff] %v1485
        %1570 = vst [vmem:[%s1517 + $0x1a0] sm:$0xff] %v1489
        %1571 = vst [vmem:[%s1517 + $0x1a8] sm:$0xff] %v1491
        %1572 = vst [vmem:[%s1517 + $0x1b0] sm:$0xff] %v1493
        %1573 = vst [vmem:[%s1517 + $0x1b8] sm:$0xff] %v1495
        %1574 = vst [vmem:[%s1517 + $0x1c0] sm:$0xff] %v1499
        %1575 = vst [vmem:[%s1517 + $0x1c8] sm:$0xff] %v1501
        %1576 = vst [vmem:[%s1517 + $0x1d0] sm:$0xff] %v1503
        %1577 = vst [vmem:[%s1517 + $0x1d8] sm:$0xff] %v1505
        %1578 = vst [vmem:[%s1517 + $0x1e0] sm:$0xff] %v1509
        %1579 = vst [vmem:[%s1517 + $0x1e8] sm:$0xff] %v1511
        %1580 = vst [vmem:[%s1517 + $0x1f0] sm:$0xff] %v1513
        %1581 = vst [vmem:[%s1517 + $0x1f8] sm:$0xff] %v1515
        %s1582 = scalar_lea.vmem %s1, 384
        %v1583 = vld [vmem:[%s1582] sm:$0xff]
        %v1584 = vld [vmem:[%s1582 + $0x8] sm:$0xff]
        %v1585 = vld [vmem:[%s1582 + $0x10] sm:$0xff]
        %v1586 = vld [vmem:[%s1582 + $0x18] sm:$0xff]
        %v1587 = vld [vmem:[%s1582 + $0x20] sm:$0xff]
        %v1588 = vld [vmem:[%s1582 + $0x28] sm:$0xff]
        %v1589 = vld [vmem:[%s1582 + $0x30] sm:$0xff]
        %v1590 = vld [vmem:[%s1582 + $0x38] sm:$0xff]
        %v1591 = vld [vmem:[%s1582 + $0x40] sm:$0xff]
        %v1592 = vld [vmem:[%s1582 + $0x48] sm:$0xff]
        %v1593 = vld [vmem:[%s1582 + $0x50] sm:$0xff]
        %v1594 = vld [vmem:[%s1582 + $0x58] sm:$0xff]
        %v1595 = vld [vmem:[%s1582 + $0x60] sm:$0xff]
        %v1596 = vld [vmem:[%s1582 + $0x68] sm:$0xff]
        %v1597 = vld [vmem:[%s1582 + $0x70] sm:$0xff]
        %v1598 = vld [vmem:[%s1582 + $0x78] sm:$0xff]
        %v1615 = vunpack.c.l.b16 %v1583
        %v1616 = vunpack.c.h.b16 %v1583
        %v1617 = vunpack.c.l.b16 %v1584
        %v1618 = vunpack.c.h.b16 %v1584
        %v1619 = vunpack.c.l.b16 %v1585
        %v1620 = vunpack.c.h.b16 %v1585
        %v1621 = vunpack.c.l.b16 %v1586
        %v1622 = vunpack.c.h.b16 %v1586
        %v1623 = vunpack.c.l.b16 %v1587
        %v1624 = vunpack.c.h.b16 %v1587
        %v1625 = vunpack.c.l.b16 %v1588
        %v1626 = vunpack.c.h.b16 %v1588
        %v1627 = vunpack.c.l.b16 %v1589
        %v1628 = vunpack.c.h.b16 %v1589
        %v1629 = vunpack.c.l.b16 %v1590
        %v1630 = vunpack.c.h.b16 %v1590
        %v1631 = vunpack.c.l.b16 %v1591
        %v1632 = vunpack.c.h.b16 %v1591
        %v1633 = vunpack.c.l.b16 %v1592
        %v1634 = vunpack.c.h.b16 %v1592
        %v1635 = vunpack.c.l.b16 %v1593
        %v1636 = vunpack.c.h.b16 %v1593
        %v1637 = vunpack.c.l.b16 %v1594
        %v1638 = vunpack.c.h.b16 %v1594
        %v1639 = vunpack.c.l.b16 %v1595
        %v1640 = vunpack.c.h.b16 %v1595
        %v1641 = vunpack.c.l.b16 %v1596
        %v1642 = vunpack.c.h.b16 %v1596
        %v1643 = vunpack.c.l.b16 %v1597
        %v1644 = vunpack.c.h.b16 %v1597
        %v1645 = vunpack.c.l.b16 %v1598
        %v1646 = vunpack.c.h.b16 %v1598
        %v1647 = vpack.c.b16 %v1617, %v1615
        %v1648 = vpack.c.b16 %v1618, %v1616
        %v1649 = vpack.c.b16 %v1621, %v1619
        %v1650 = vpack.c.b16 %v1622, %v1620
        %v1651 = vpack.c.b16 %v1625, %v1623
        %v1652 = vpack.c.b16 %v1626, %v1624
        %v1653 = vpack.c.b16 %v1629, %v1627
        %v1654 = vpack.c.b16 %v1630, %v1628
        %v1655 = vpack.c.b16 %v1633, %v1631
        %v1656 = vpack.c.b16 %v1634, %v1632
        %v1657 = vpack.c.b16 %v1637, %v1635
        %v1658 = vpack.c.b16 %v1638, %v1636
        %v1659 = vpack.c.b16 %v1641, %v1639
        %v1660 = vpack.c.b16 %v1642, %v1640
        %v1661 = vpack.c.b16 %v1645, %v1643
        %v1662 = vpack.c.b16 %v1646, %v1644
        %1679 = vmatprep.subr.bf16.mxu0 %v1648
        %1680 = vmatpush1.bf16.msra.mxu0 %v1647
        %1681 = vmatprep.subr.bf16.mxu0 %v1650
        %1682 = vmatpush1.bf16.msra.mxu0 %v1649
        %1683 = vmatprep.subr.bf16.mxu0 %v1652
        %1684 = vmatpush1.bf16.msra.mxu0 %v1651
        %1685 = vmatprep.subr.bf16.mxu0 %v1654
        %1686 = vmatpush1.bf16.msra.mxu0 %v1653
        %1687 = vmatprep.subr.bf16.mxu0 %v1656
        %1688 = vmatpush1.bf16.msra.mxu0 %v1655
        %1689 = vmatprep.subr.bf16.mxu0 %v1658
        %1690 = vmatpush1.bf16.msra.mxu0 %v1657
        %1691 = vmatprep.subr.bf16.mxu0 %v1660
        %1692 = vmatpush1.bf16.msra.mxu0 %v1659
        %1693 = vmatprep.subr.bf16.mxu0 %v1662
        %1694 = vmatpush1.bf16.msra.mxu0 %v1661
        %1695 = vmatprep.subr.bf16.mxu0 0
        %1696 = vmatpush1.bf16.msra.mxu0 0
        %1697 = vmatprep.subr.bf16.mxu0 0
        %1698 = vmatpush1.bf16.msra.mxu0 0
        %1699 = vmatprep.subr.bf16.mxu0 0
        %1700 = vmatpush1.bf16.msra.mxu0 0
        %1701 = vmatprep.subr.bf16.mxu0 0
        %1702 = vmatpush1.bf16.msra.mxu0 0
        %1703 = vmatprep.subr.bf16.mxu0 0
        %1704 = vmatpush1.bf16.msra.mxu0 0
        %1705 = vmatprep.subr.bf16.mxu0 0
        %1706 = vmatpush1.bf16.msra.mxu0 0
        %1707 = vmatprep.subr.bf16.mxu0 0
        %1708 = vmatpush1.bf16.msra.mxu0 0
        %1709 = vmatprep.subr.bf16.mxu0 0
        %1710 = vmatpush1.bf16.msra.mxu0 0
        %1711 = vmatprep.mubr.bf16.mxu0 0
        %1712 = vmatmul.mubr.bf16.gmra.mrb[0].mxu0 %v503
        %v1713 = vpop.f32.mrb[0].mxu0
        %v1714 = vadd.f32 0.0, %v1713
        %v1715 = vpop.f32.mrb[0].mxu0
        %v1716 = vadd.f32 0.0, %v1715
        %v1717 = vpop.f32.mrb[0].mxu0
        %v1718 = vadd.f32 0.0, %v1717
        %v1719 = vpop.f32.mrb[0].mxu0
        %v1720 = vadd.f32 0.0, %v1719
        %1721 = vmatprep.mubr.bf16.mxu0 0
        %1722 = vmatmul.mubr.bf16.gmra.mrb[0].mxu0 %v504
        %v1723 = vpop.f32.mrb[0].mxu0
        %v1724 = vadd.f32 0.0, %v1723
        %v1725 = vpop.f32.mrb[0].mxu0
        %v1726 = vadd.f32 0.0, %v1725
        %v1727 = vpop.f32.mrb[0].mxu0
        %v1728 = vadd.f32 0.0, %v1727
        %v1729 = vpop.f32.mrb[0].mxu0
        %v1730 = vadd.f32 0.0, %v1729
        %1731 = vmatprep.mubr.bf16.mxu0 0
        %1732 = vmatmul.mubr.bf16.gmra.mrb[0].mxu0 %v505
        %v1733 = vpop.f32.mrb[0].mxu0
        %v1734 = vadd.f32 0.0, %v1733
        %v1735 = vpop.f32.mrb[0].mxu0
        %v1736 = vadd.f32 0.0, %v1735
        %v1737 = vpop.f32.mrb[0].mxu0
        %v1738 = vadd.f32 0.0, %v1737
        %v1739 = vpop.f32.mrb[0].mxu0
        %v1740 = vadd.f32 0.0, %v1739
        %1741 = vmatprep.mubr.bf16.mxu0 0
        %1742 = vmatmul.mubr.bf16.gmra.mrb[0].mxu0 %v506
        %v1743 = vpop.f32.mrb[0].mxu0
        %v1744 = vadd.f32 0.0, %v1743
        %v1745 = vpop.f32.mrb[0].mxu0
        %v1746 = vadd.f32 0.0, %v1745
        %v1747 = vpop.f32.mrb[0].mxu0
        %v1748 = vadd.f32 0.0, %v1747
        %v1749 = vpop.f32.mrb[0].mxu0
        %v1750 = vadd.f32 0.0, %v1749
        %1751 = vmatprep.mubr.bf16.mxu0 0
        %1752 = vmatmul.mubr.bf16.gmra.mrb[0].mxu0 %v507
        %v1753 = vpop.f32.mrb[0].mxu0
        %v1754 = vadd.f32 0.0, %v1753
        %v1755 = vpop.f32.mrb[0].mxu0
        %v1756 = vadd.f32 0.0, %v1755
        %v1757 = vpop.f32.mrb[0].mxu0
        %v1758 = vadd.f32 0.0, %v1757
        %v1759 = vpop.f32.mrb[0].mxu0
        %v1760 = vadd.f32 0.0, %v1759
        %1761 = vmatprep.mubr.bf16.mxu0 0
        %1762 = vmatmul.mubr.bf16.gmra.mrb[0].mxu0 %v508
        %v1763 = vpop.f32.mrb[0].mxu0
        %v1764 = vadd.f32 0.0, %v1763
        %v1765 = vpop.f32.mrb[0].mxu0
        %v1766 = vadd.f32 0.0, %v1765
        %v1767 = vpop.f32.mrb[0].mxu0
        %v1768 = vadd.f32 0.0, %v1767
        %v1769 = vpop.f32.mrb[0].mxu0
        %v1770 = vadd.f32 0.0, %v1769
        %1771 = vmatprep.mubr.bf16.mxu0 0
        %1772 = vmatmul.mubr.bf16.gmra.mrb[0].mxu0 %v509
        %v1773 = vpop.f32.mrb[0].mxu0
        %v1774 = vadd.f32 0.0, %v1773
        %v1775 = vpop.f32.mrb[0].mxu0
        %v1776 = vadd.f32 0.0, %v1775
        %v1777 = vpop.f32.mrb[0].mxu0
        %v1778 = vadd.f32 0.0, %v1777
        %v1779 = vpop.f32.mrb[0].mxu0
        %v1780 = vadd.f32 0.0, %v1779
        %1781 = vmatprep.mubr.bf16.mxu0 0
        %1782 = vmatmul.mubr.bf16.gmra.mrb[0].mxu0 %v510
        %v1783 = vpop.f32.mrb[0].mxu0
        %v1784 = vadd.f32 0.0, %v1783
        %v1785 = vpop.f32.mrb[0].mxu0
        %v1786 = vadd.f32 0.0, %v1785
        %v1787 = vpop.f32.mrb[0].mxu0
        %v1788 = vadd.f32 0.0, %v1787
        %v1789 = vpop.f32.mrb[0].mxu0
        %v1790 = vadd.f32 0.0, %v1789
        %1791 = vmatprep.mubr.bf16.mxu0 0
        %1792 = vmatmul.mubr.bf16.gmra.mrb[0].mxu0 %v511
        %v1793 = vpop.f32.mrb[0].mxu0
        %v1794 = vadd.f32 0.0, %v1793
        %v1795 = vpop.f32.mrb[0].mxu0
        %v1796 = vadd.f32 0.0, %v1795
        %v1797 = vpop.f32.mrb[0].mxu0
        %v1798 = vadd.f32 0.0, %v1797
        %v1799 = vpop.f32.mrb[0].mxu0
        %v1800 = vadd.f32 0.0, %v1799
        %1801 = vmatprep.mubr.bf16.mxu0 0
        %1802 = vmatmul.mubr.bf16.gmra.mrb[0].mxu0 %v512
        %v1803 = vpop.f32.mrb[0].mxu0
        %v1804 = vadd.f32 0.0, %v1803
        %v1805 = vpop.f32.mrb[0].mxu0
        %v1806 = vadd.f32 0.0, %v1805
        %v1807 = vpop.f32.mrb[0].mxu0
        %v1808 = vadd.f32 0.0, %v1807
        %v1809 = vpop.f32.mrb[0].mxu0
        %v1810 = vadd.f32 0.0, %v1809
        %1811 = vmatprep.mubr.bf16.mxu0 0
        %1812 = vmatmul.mubr.bf16.gmra.mrb[0].mxu0 %v513
        %v1813 = vpop.f32.mrb[0].mxu0
        %v1814 = vadd.f32 0.0, %v1813
        %v1815 = vpop.f32.mrb[0].mxu0
        %v1816 = vadd.f32 0.0, %v1815
        %v1817 = vpop.f32.mrb[0].mxu0
        %v1818 = vadd.f32 0.0, %v1817
        %v1819 = vpop.f32.mrb[0].mxu0
        %v1820 = vadd.f32 0.0, %v1819
        %1821 = vmatprep.mubr.bf16.mxu0 0
        %1822 = vmatmul.mubr.bf16.gmra.mrb[0].mxu0 %v514
        %v1823 = vpop.f32.mrb[0].mxu0
        %v1824 = vadd.f32 0.0, %v1823
        %v1825 = vpop.f32.mrb[0].mxu0
        %v1826 = vadd.f32 0.0, %v1825
        %v1827 = vpop.f32.mrb[0].mxu0
        %v1828 = vadd.f32 0.0, %v1827
        %v1829 = vpop.f32.mrb[0].mxu0
        %v1830 = vadd.f32 0.0, %v1829
        %1831 = vmatprep.mubr.bf16.mxu0 0
        %1832 = vmatmul.mubr.bf16.gmra.mrb[0].mxu0 %v515
        %v1833 = vpop.f32.mrb[0].mxu0
        %v1834 = vadd.f32 0.0, %v1833
        %v1835 = vpop.f32.mrb[0].mxu0
        %v1836 = vadd.f32 0.0, %v1835
        %v1837 = vpop.f32.mrb[0].mxu0
        %v1838 = vadd.f32 0.0, %v1837
        %v1839 = vpop.f32.mrb[0].mxu0
        %v1840 = vadd.f32 0.0, %v1839
        %1841 = vmatprep.mubr.bf16.mxu0 0
        %1842 = vmatmul.mubr.bf16.gmra.mrb[0].mxu0 %v516
        %v1843 = vpop.f32.mrb[0].mxu0
        %v1844 = vadd.f32 0.0, %v1843
        %v1845 = vpop.f32.mrb[0].mxu0
        %v1846 = vadd.f32 0.0, %v1845
        %v1847 = vpop.f32.mrb[0].mxu0
        %v1848 = vadd.f32 0.0, %v1847
        %v1849 = vpop.f32.mrb[0].mxu0
        %v1850 = vadd.f32 0.0, %v1849
        %1851 = vmatprep.mubr.bf16.mxu0 0
        %1852 = vmatmul.mubr.bf16.gmra.mrb[0].mxu0 %v517
        %v1853 = vpop.f32.mrb[0].mxu0
        %v1854 = vadd.f32 0.0, %v1853
        %v1855 = vpop.f32.mrb[0].mxu0
        %v1856 = vadd.f32 0.0, %v1855
        %v1857 = vpop.f32.mrb[0].mxu0
        %v1858 = vadd.f32 0.0, %v1857
        %v1859 = vpop.f32.mrb[0].mxu0
        %v1860 = vadd.f32 0.0, %v1859
        %1861 = vmatprep.mubr.bf16.mxu0 0
        %1862 = vmatmul.mubr.bf16.gmra.mrb[0].mxu0 %v518
        %v1863 = vpop.f32.mrb[0].mxu0
        %v1864 = vadd.f32 0.0, %v1863
        %v1865 = vpop.f32.mrb[0].mxu0
        %v1866 = vadd.f32 0.0, %v1865
        %v1867 = vpop.f32.mrb[0].mxu0
        %v1868 = vadd.f32 0.0, %v1867
        %v1869 = vpop.f32.mrb[0].mxu0
        %v1870 = vadd.f32 0.0, %v1869
        %1871 = vdwg.mxu0
        %s1872 = scalar_lea.vmem [#allocation2], 1536
        %1873 = vst [vmem:[%s1872] sm:$0xff] %v1714
        %1874 = vst [vmem:[%s1872 + $0x8] sm:$0xff] %v1716
        %1875 = vst [vmem:[%s1872 + $0x10] sm:$0xff] %v1718
        %1876 = vst [vmem:[%s1872 + $0x18] sm:$0xff] %v1720
        %1877 = vst [vmem:[%s1872 + $0x20] sm:$0xff] %v1724
        %1878 = vst [vmem:[%s1872 + $0x28] sm:$0xff] %v1726
        %1879 = vst [vmem:[%s1872 + $0x30] sm:$0xff] %v1728
        %1880 = vst [vmem:[%s1872 + $0x38] sm:$0xff] %v1730
        %1881 = vst [vmem:[%s1872 + $0x40] sm:$0xff] %v1734
        %1882 = vst [vmem:[%s1872 + $0x48] sm:$0xff] %v1736
        %1883 = vst [vmem:[%s1872 + $0x50] sm:$0xff] %v1738
        %1884 = vst [vmem:[%s1872 + $0x58] sm:$0xff] %v1740
        %1885 = vst [vmem:[%s1872 + $0x60] sm:$0xff] %v1744
        %1886 = vst [vmem:[%s1872 + $0x68] sm:$0xff] %v1746
        %1887 = vst [vmem:[%s1872 + $0x70] sm:$0xff] %v1748
        %1888 = vst [vmem:[%s1872 + $0x78] sm:$0xff] %v1750
        %1889 = vst [vmem:[%s1872 + $0x80] sm:$0xff] %v1754
        %1890 = vst [vmem:[%s1872 + $0x88] sm:$0xff] %v1756
        %1891 = vst [vmem:[%s1872 + $0x90] sm:$0xff] %v1758
        %1892 = vst [vmem:[%s1872 + $0x98] sm:$0xff] %v1760
        %1893 = vst [vmem:[%s1872 + $0xa0] sm:$0xff] %v1764
        %1894 = vst [vmem:[%s1872 + $0xa8] sm:$0xff] %v1766
        %1895 = vst [vmem:[%s1872 + $0xb0] sm:$0xff] %v1768
        %1896 = vst [vmem:[%s1872 + $0xb8] sm:$0xff] %v1770
        %1897 = vst [vmem:[%s1872 + $0xc0] sm:$0xff] %v1774
        %1898 = vst [vmem:[%s1872 + $0xc8] sm:$0xff] %v1776
        %1899 = vst [vmem:[%s1872 + $0xd0] sm:$0xff] %v1778
        %1900 = vst [vmem:[%s1872 + $0xd8] sm:$0xff] %v1780
        %1901 = vst [vmem:[%s1872 + $0xe0] sm:$0xff] %v1784
        %1902 = vst [vmem:[%s1872 + $0xe8] sm:$0xff] %v1786
        %1903 = vst [vmem:[%s1872 + $0xf0] sm:$0xff] %v1788
        %1904 = vst [vmem:[%s1872 + $0xf8] sm:$0xff] %v1790
        %1905 = vst [vmem:[%s1872 + $0x100] sm:$0xff] %v1794
        %1906 = vst [vmem:[%s1872 + $0x108] sm:$0xff] %v1796
        %1907 = vst [vmem:[%s1872 + $0x110] sm:$0xff] %v1798
        %1908 = vst [vmem:[%s1872 + $0x118] sm:$0xff] %v1800
        %1909 = vst [vmem:[%s1872 + $0x120] sm:$0xff] %v1804
        %1910 = vst [vmem:[%s1872 + $0x128] sm:$0xff] %v1806
        %1911 = vst [vmem:[%s1872 + $0x130] sm:$0xff] %v1808
        %1912 = vst [vmem:[%s1872 + $0x138] sm:$0xff] %v1810
        %1913 = vst [vmem:[%s1872 + $0x140] sm:$0xff] %v1814
        %1914 = vst [vmem:[%s1872 + $0x148] sm:$0xff] %v1816
        %1915 = vst [vmem:[%s1872 + $0x150] sm:$0xff] %v1818
        %1916 = vst [vmem:[%s1872 + $0x158] sm:$0xff] %v1820
        %1917 = vst [vmem:[%s1872 + $0x160] sm:$0xff] %v1824
        %1918 = vst [vmem:[%s1872 + $0x168] sm:$0xff] %v1826
        %1919 = vst [vmem:[%s1872 + $0x170] sm:$0xff] %v1828
        %1920 = vst [vmem:[%s1872 + $0x178] sm:$0xff] %v1830
        %1921 = vst [vmem:[%s1872 + $0x180] sm:$0xff] %v1834
        %1922 = vst [vmem:[%s1872 + $0x188] sm:$0xff] %v1836
        %1923 = vst [vmem:[%s1872 + $0x190] sm:$0xff] %v1838
        %1924 = vst [vmem:[%s1872 + $0x198] sm:$0xff] %v1840
        %1925 = vst [vmem:[%s1872 + $0x1a0] sm:$0xff] %v1844
        %1926 = vst [vmem:[%s1872 + $0x1a8] sm:$0xff] %v1846
        %1927 = vst [vmem:[%s1872 + $0x1b0] sm:$0xff] %v1848
        %1928 = vst [vmem:[%s1872 + $0x1b8] sm:$0xff] %v1850
        %1929 = vst [vmem:[%s1872 + $0x1c0] sm:$0xff] %v1854
        %1930 = vst [vmem:[%s1872 + $0x1c8] sm:$0xff] %v1856
        %1931 = vst [vmem:[%s1872 + $0x1d0] sm:$0xff] %v1858
        %1932 = vst [vmem:[%s1872 + $0x1d8] sm:$0xff] %v1860
        %1933 = vst [vmem:[%s1872 + $0x1e0] sm:$0xff] %v1864
        %1934 = vst [vmem:[%s1872 + $0x1e8] sm:$0xff] %v1866
        %1935 = vst [vmem:[%s1872 + $0x1f0] sm:$0xff] %v1868
        %1936 = vst [vmem:[%s1872 + $0x1f8] sm:$0xff] %v1870
        %s1937 = scalar_lea.vmem %s1, 512
        %v1938 = vld [vmem:[%s1937] sm:$0xff]
        %v1939 = vld [vmem:[%s1937 + $0x8] sm:$0xff]
        %v1940 = vld [vmem:[%s1937 + $0x10] sm:$0xff]
        %v1941 = vld [vmem:[%s1937 + $0x18] sm:$0xff]
        %v1942 = vld [vmem:[%s1937 + $0x20] sm:$0xff]
        %v1943 = vld [vmem:[%s1937 + $0x28] sm:$0xff]
        %v1944 = vld [vmem:[%s1937 + $0x30] sm:$0xff]
        %v1945 = vld [vmem:[%s1937 + $0x38] sm:$0xff]
        %v1946 = vld [vmem:[%s1937 + $0x40] sm:$0xff]
        %v1947 = vld [vmem:[%s1937 + $0x48] sm:$0xff]
        %v1948 = vld [vmem:[%s1937 + $0x50] sm:$0xff]
        %v1949 = vld [vmem:[%s1937 + $0x58] sm:$0xff]
        %v1950 = vld [vmem:[%s1937 + $0x60] sm:$0xff]
        %v1951 = vld [vmem:[%s1937 + $0x68] sm:$0xff]
        %v1952 = vld [vmem:[%s1937 + $0x70] sm:$0xff]
        %v1953 = vld [vmem:[%s1937 + $0x78] sm:$0xff]
        %v1970 = vunpack.c.l.b16 %v1938
        %v1971 = vunpack.c.h.b16 %v1938
        %v1972 = vunpack.c.l.b16 %v1939
        %v1973 = vunpack.c.h.b16 %v1939
        %v1974 = vunpack.c.l.b16 %v1940
        %v1975 = vunpack.c.h.b16 %v1940
        %v1976 = vunpack.c.l.b16 %v1941
        %v1977 = vunpack.c.h.b16 %v1941
        %v1978 = vunpack.c.l.b16 %v1942
        %v1979 = vunpack.c.h.b16 %v1942
        %v1980 = vunpack.c.l.b16 %v1943
        %v1981 = vunpack.c.h.b16 %v1943
        %v1982 = vunpack.c.l.b16 %v1944
        %v1983 = vunpack.c.h.b16 %v1944
        %v1984 = vunpack.c.l.b16 %v1945
        %v1985 = vunpack.c.h.b16 %v1945
        %v1986 = vunpack.c.l.b16 %v1946
        %v1987 = vunpack.c.h.b16 %v1946
        %v1988 = vunpack.c.l.b16 %v1947
        %v1989 = vunpack.c.h.b16 %v1947
        %v1990 = vunpack.c.l.b16 %v1948
        %v1991 = vunpack.c.h.b16 %v1948
        %v1992 = vunpack.c.l.b16 %v1949
        %v1993 = vunpack.c.h.b16 %v1949
        %v1994 = vunpack.c.l.b16 %v1950
        %v1995 = vunpack.c.h.b16 %v1950
        %v1996 = vunpack.c.l.b16 %v1951
        %v1997 = vunpack.c.h.b16 %v1951
        %v1998 = vunpack.c.l.b16 %v1952
        %v1999 = vunpack.c.h.b16 %v1952
        %v2000 = vunpack.c.l.b16 %v1953
        %v2001 = vunpack.c.h.b16 %v1953
        %v2002 = vpack.c.b16 %v1972, %v1970
        %v2003 = vpack.c.b16 %v1973, %v1971
        %v2004 = vpack.c.b16 %v1976, %v1974
        %v2005 = vpack.c.b16 %v1977, %v1975
        %v2006 = vpack.c.b16 %v1980, %v1978
        %v2007 = vpack.c.b16 %v1981, %v1979
        %v2008 = vpack.c.b16 %v1984, %v1982
        %v2009 = vpack.c.b16 %v1985, %v1983
        %v2010 = vpack.c.b16 %v1988, %v1986
        %v2011 = vpack.c.b16 %v1989, %v1987
        %v2012 = vpack.c.b16 %v1992, %v1990
        %v2013 = vpack.c.b16 %v1993, %v1991
        %v2014 = vpack.c.b16 %v1996, %v1994
        %v2015 = vpack.c.b16 %v1997, %v1995
        %v2016 = vpack.c.b16 %v2000, %v1998
        %v2017 = vpack.c.b16 %v2001, %v1999
        %2034 = vmatprep.subr.bf16.mxu0 %v2003
        %2035 = vmatpush1.bf16.msra.mxu0 %v2002
        %2036 = vmatprep.subr.bf16.mxu0 %v2005
        %2037 = vmatpush1.bf16.msra.mxu0 %v2004
        %2038 = vmatprep.subr.bf16.mxu0 %v2007
        %2039 = vmatpush1.bf16.msra.mxu0 %v2006
        %2040 = vmatprep.subr.bf16.mxu0 %v2009
        %2041 = vmatpush1.bf16.msra.mxu0 %v2008
        %2042 = vmatprep.subr.bf16.mxu0 %v2011
        %2043 = vmatpush1.bf16.msra.mxu0 %v2010
        %2044 = vmatprep.subr.bf16.mxu0 %v2013
        %2045 = vmatpush1.bf16.msra.mxu0 %v2012
        %2046 = vmatprep.subr.bf16.mxu0 %v2015
        %2047 = vmatpush1.bf16.msra.mxu0 %v2014
        %2048 = vmatprep.subr.bf16.mxu0 %v2017
        %2049 = vmatpush1.bf16.msra.mxu0 %v2016
        %2050 = vmatprep.subr.bf16.mxu0 0
        %2051 = vmatpush1.bf16.msra.mxu0 0
        %2052 = vmatprep.subr.bf16.mxu0 0
        %2053 = vmatpush1.bf16.msra.mxu0 0
        %2054 = vmatprep.subr.bf16.mxu0 0
        %2055 = vmatpush1.bf16.msra.mxu0 0
        %2056 = vmatprep.subr.bf16.mxu0 0
        %2057 = vmatpush1.bf16.msra.mxu0 0
        %2058 = vmatprep.subr.bf16.mxu0 0
        %2059 = vmatpush1.bf16.msra.mxu0 0
        %2060 = vmatprep.subr.bf16.mxu0 0
        %2061 = vmatpush1.bf16.msra.mxu0 0
        %2062 = vmatprep.subr.bf16.mxu0 0
        %2063 = vmatpush1.bf16.msra.mxu0 0
        %2064 = vmatprep.subr.bf16.mxu0 0
        %2065 = vmatpush1.bf16.msra.mxu0 0
        %2066 = vmatprep.mubr.bf16.mxu0 0
        %2067 = vmatmul.mubr.bf16.gmra.mrb[0].mxu0 %v503
        %v2068 = vpop.f32.mrb[0].mxu0
        %v2069 = vadd.f32 0.0, %v2068
        %v2070 = vpop.f32.mrb[0].mxu0
        %v2071 = vadd.f32 0.0, %v2070
        %v2072 = vpop.f32.mrb[0].mxu0
        %v2073 = vadd.f32 0.0, %v2072
        %v2074 = vpop.f32.mrb[0].mxu0
        %v2075 = vadd.f32 0.0, %v2074
        %2076 = vmatprep.mubr.bf16.mxu0 0
        %2077 = vmatmul.mubr.bf16.gmra.mrb[0].mxu0 %v504
        %v2078 = vpop.f32.mrb[0].mxu0
        %v2079 = vadd.f32 0.0, %v2078
        %v2080 = vpop.f32.mrb[0].mxu0
        %v2081 = vadd.f32 0.0, %v2080
        %v2082 = vpop.f32.mrb[0].mxu0
        %v2083 = vadd.f32 0.0, %v2082
        %v2084 = vpop.f32.mrb[0].mxu0
        %v2085 = vadd.f32 0.0, %v2084
        %2086 = vmatprep.mubr.bf16.mxu0 0
        %2087 = vmatmul.mubr.bf16.gmra.mrb[0].mxu0 %v505
        %v2088 = vpop.f32.mrb[0].mxu0
        %v2089 = vadd.f32 0.0, %v2088
        %v2090 = vpop.f32.mrb[0].mxu0
        %v2091 = vadd.f32 0.0, %v2090
        %v2092 = vpop.f32.mrb[0].mxu0
        %v2093 = vadd.f32 0.0, %v2092
        %v2094 = vpop.f32.mrb[0].mxu0
        %v2095 = vadd.f32 0.0, %v2094
        %2096 = vmatprep.mubr.bf16.mxu0 0
        %2097 = vmatmul.mubr.bf16.gmra.mrb[0].mxu0 %v506
        %v2098 = vpop.f32.mrb[0].mxu0
        %v2099 = vadd.f32 0.0, %v2098
        %v2100 = vpop.f32.mrb[0].mxu0
        %v2101 = vadd.f32 0.0, %v2100
        %v2102 = vpop.f32.mrb[0].mxu0
        %v2103 = vadd.f32 0.0, %v2102
        %v2104 = vpop.f32.mrb[0].mxu0
        %v2105 = vadd.f32 0.0, %v2104
        %2106 = vmatprep.mubr.bf16.mxu0 0
        %2107 = vmatmul.mubr.bf16.gmra.mrb[0].mxu0 %v507
        %v2108 = vpop.f32.mrb[0].mxu0
        %v2109 = vadd.f32 0.0, %v2108
        %v2110 = vpop.f32.mrb[0].mxu0
        %v2111 = vadd.f32 0.0, %v2110
        %v2112 = vpop.f32.mrb[0].mxu0
        %v2113 = vadd.f32 0.0, %v2112
        %v2114 = vpop.f32.mrb[0].mxu0
        %v2115 = vadd.f32 0.0, %v2114
        %2116 = vmatprep.mubr.bf16.mxu0 0
        %2117 = vmatmul.mubr.bf16.gmra.mrb[0].mxu0 %v508
        %v2118 = vpop.f32.mrb[0].mxu0
        %v2119 = vadd.f32 0.0, %v2118
        %v2120 = vpop.f32.mrb[0].mxu0
        %v2121 = vadd.f32 0.0, %v2120
        %v2122 = vpop.f32.mrb[0].mxu0
        %v2123 = vadd.f32 0.0, %v2122
        %v2124 = vpop.f32.mrb[0].mxu0
        %v2125 = vadd.f32 0.0, %v2124
        %2126 = vmatprep.mubr.bf16.mxu0 0
        %2127 = vmatmul.mubr.bf16.gmra.mrb[0].mxu0 %v509
        %v2128 = vpop.f32.mrb[0].mxu0
        %v2129 = vadd.f32 0.0, %v2128
        %v2130 = vpop.f32.mrb[0].mxu0
        %v2131 = vadd.f32 0.0, %v2130
        %v2132 = vpop.f32.mrb[0].mxu0
        %v2133 = vadd.f32 0.0, %v2132
        %v2134 = vpop.f32.mrb[0].mxu0
        %v2135 = vadd.f32 0.0, %v2134
        %2136 = vmatprep.mubr.bf16.mxu0 0
        %2137 = vmatmul.mubr.bf16.gmra.mrb[0].mxu0 %v510
        %v2138 = vpop.f32.mrb[0].mxu0
        %v2139 = vadd.f32 0.0, %v2138
        %v2140 = vpop.f32.mrb[0].mxu0
        %v2141 = vadd.f32 0.0, %v2140
        %v2142 = vpop.f32.mrb[0].mxu0
        %v2143 = vadd.f32 0.0, %v2142
        %v2144 = vpop.f32.mrb[0].mxu0
        %v2145 = vadd.f32 0.0, %v2144
        %2146 = vmatprep.mubr.bf16.mxu0 0
        %2147 = vmatmul.mubr.bf16.gmra.mrb[0].mxu0 %v511
        %v2148 = vpop.f32.mrb[0].mxu0
        %v2149 = vadd.f32 0.0, %v2148
        %v2150 = vpop.f32.mrb[0].mxu0
        %v2151 = vadd.f32 0.0, %v2150
        %v2152 = vpop.f32.mrb[0].mxu0
        %v2153 = vadd.f32 0.0, %v2152
        %v2154 = vpop.f32.mrb[0].mxu0
        %v2155 = vadd.f32 0.0, %v2154
        %2156 = vmatprep.mubr.bf16.mxu0 0
        %2157 = vmatmul.mubr.bf16.gmra.mrb[0].mxu0 %v512
        %v2158 = vpop.f32.mrb[0].mxu0
        %v2159 = vadd.f32 0.0, %v2158
        %v2160 = vpop.f32.mrb[0].mxu0
        %v2161 = vadd.f32 0.0, %v2160
        %v2162 = vpop.f32.mrb[0].mxu0
        %v2163 = vadd.f32 0.0, %v2162
        %v2164 = vpop.f32.mrb[0].mxu0
        %v2165 = vadd.f32 0.0, %v2164
        %2166 = vmatprep.mubr.bf16.mxu0 0
        %2167 = vmatmul.mubr.bf16.gmra.mrb[0].mxu0 %v513
        %v2168 = vpop.f32.mrb[0].mxu0
        %v2169 = vadd.f32 0.0, %v2168
        %v2170 = vpop.f32.mrb[0].mxu0
        %v2171 = vadd.f32 0.0, %v2170
        %v2172 = vpop.f32.mrb[0].mxu0
        %v2173 = vadd.f32 0.0, %v2172
        %v2174 = vpop.f32.mrb[0].mxu0
        %v2175 = vadd.f32 0.0, %v2174
        %2176 = vmatprep.mubr.bf16.mxu0 0
        %2177 = vmatmul.mubr.bf16.gmra.mrb[0].mxu0 %v514
        %v2178 = vpop.f32.mrb[0].mxu0
        %v2179 = vadd.f32 0.0, %v2178
        %v2180 = vpop.f32.mrb[0].mxu0
        %v2181 = vadd.f32 0.0, %v2180
        %v2182 = vpop.f32.mrb[0].mxu0
        %v2183 = vadd.f32 0.0, %v2182
        %v2184 = vpop.f32.mrb[0].mxu0
        %v2185 = vadd.f32 0.0, %v2184
        %2186 = vmatprep.mubr.bf16.mxu0 0
        %2187 = vmatmul.mubr.bf16.gmra.mrb[0].mxu0 %v515
        %v2188 = vpop.f32.mrb[0].mxu0
        %v2189 = vadd.f32 0.0, %v2188
        %v2190 = vpop.f32.mrb[0].mxu0
        %v2191 = vadd.f32 0.0, %v2190
        %v2192 = vpop.f32.mrb[0].mxu0
        %v2193 = vadd.f32 0.0, %v2192
        %v2194 = vpop.f32.mrb[0].mxu0
        %v2195 = vadd.f32 0.0, %v2194
        %2196 = vmatprep.mubr.bf16.mxu0 0
        %2197 = vmatmul.mubr.bf16.gmra.mrb[0].mxu0 %v516
        %v2198 = vpop.f32.mrb[0].mxu0
        %v2199 = vadd.f32 0.0, %v2198
        %v2200 = vpop.f32.mrb[0].mxu0
        %v2201 = vadd.f32 0.0, %v2200
        %v2202 = vpop.f32.mrb[0].mxu0
        %v2203 = vadd.f32 0.0, %v2202
        %v2204 = vpop.f32.mrb[0].mxu0
        %v2205 = vadd.f32 0.0, %v2204
        %2206 = vmatprep.mubr.bf16.mxu0 0
        %2207 = vmatmul.mubr.bf16.gmra.mrb[0].mxu0 %v517
        %v2208 = vpop.f32.mrb[0].mxu0
        %v2209 = vadd.f32 0.0, %v2208
        %v2210 = vpop.f32.mrb[0].mxu0
        %v2211 = vadd.f32 0.0, %v2210
        %v2212 = vpop.f32.mrb[0].mxu0
        %v2213 = vadd.f32 0.0, %v2212
        %v2214 = vpop.f32.mrb[0].mxu0
        %v2215 = vadd.f32 0.0, %v2214
        %2216 = vmatprep.mubr.bf16.mxu0 0
        %2217 = vmatmul.mubr.bf16.gmra.mrb[0].mxu0 %v518
        %v2218 = vpop.f32.mrb[0].mxu0
        %v2219 = vadd.f32 0.0, %v2218
        %v2220 = vpop.f32.mrb[0].mxu0
        %v2221 = vadd.f32 0.0, %v2220
        %v2222 = vpop.f32.mrb[0].mxu0
        %v2223 = vadd.f32 0.0, %v2222
        %v2224 = vpop.f32.mrb[0].mxu0
        %v2225 = vadd.f32 0.0, %v2224
        %2226 = vdwg.mxu0
        %s2227 = scalar_lea.vmem [#allocation2], 2048
        %2228 = vst [vmem:[%s2227] sm:$0xff] %v2069
        %2229 = vst [vmem:[%s2227 + $0x8] sm:$0xff] %v2071
        %2230 = vst [vmem:[%s2227 + $0x10] sm:$0xff] %v2073
        %2231 = vst [vmem:[%s2227 + $0x18] sm:$0xff] %v2075
        %2232 = vst [vmem:[%s2227 + $0x20] sm:$0xff] %v2079
        %2233 = vst [vmem:[%s2227 + $0x28] sm:$0xff] %v2081
        %2234 = vst [vmem:[%s2227 + $0x30] sm:$0xff] %v2083
        %2235 = vst [vmem:[%s2227 + $0x38] sm:$0xff] %v2085
        %2236 = vst [vmem:[%s2227 + $0x40] sm:$0xff] %v2089
        %2237 = vst [vmem:[%s2227 + $0x48] sm:$0xff] %v2091
        %2238 = vst [vmem:[%s2227 + $0x50] sm:$0xff] %v2093
        %2239 = vst [vmem:[%s2227 + $0x58] sm:$0xff] %v2095
        %2240 = vst [vmem:[%s2227 + $0x60] sm:$0xff] %v2099
        %2241 = vst [vmem:[%s2227 + $0x68] sm:$0xff] %v2101
        %2242 = vst [vmem:[%s2227 + $0x70] sm:$0xff] %v2103
        %2243 = vst [vmem:[%s2227 + $0x78] sm:$0xff] %v2105
        %2244 = vst [vmem:[%s2227 + $0x80] sm:$0xff] %v2109
        %2245 = vst [vmem:[%s2227 + $0x88] sm:$0xff] %v2111
        %2246 = vst [vmem:[%s2227 + $0x90] sm:$0xff] %v2113
        %2247 = vst [vmem:[%s2227 + $0x98] sm:$0xff] %v2115
        %2248 = vst [vmem:[%s2227 + $0xa0] sm:$0xff] %v2119
        %2249 = vst [vmem:[%s2227 + $0xa8] sm:$0xff] %v2121
        %2250 = vst [vmem:[%s2227 + $0xb0] sm:$0xff] %v2123
        %2251 = vst [vmem:[%s2227 + $0xb8] sm:$0xff] %v2125
        %2252 = vst [vmem:[%s2227 + $0xc0] sm:$0xff] %v2129
        %2253 = vst [vmem:[%s2227 + $0xc8] sm:$0xff] %v2131
        %2254 = vst [vmem:[%s2227 + $0xd0] sm:$0xff] %v2133
        %2255 = vst [vmem:[%s2227 + $0xd8] sm:$0xff] %v2135
        %2256 = vst [vmem:[%s2227 + $0xe0] sm:$0xff] %v2139
        %2257 = vst [vmem:[%s2227 + $0xe8] sm:$0xff] %v2141
        %2258 = vst [vmem:[%s2227 + $0xf0] sm:$0xff] %v2143
        %2259 = vst [vmem:[%s2227 + $0xf8] sm:$0xff] %v2145
        %2260 = vst [vmem:[%s2227 + $0x100] sm:$0xff] %v2149
        %2261 = vst [vmem:[%s2227 + $0x108] sm:$0xff] %v2151
        %2262 = vst [vmem:[%s2227 + $0x110] sm:$0xff] %v2153
        %2263 = vst [vmem:[%s2227 + $0x118] sm:$0xff] %v2155
        %2264 = vst [vmem:[%s2227 + $0x120] sm:$0xff] %v2159
        %2265 = vst [vmem:[%s2227 + $0x128] sm:$0xff] %v2161
        %2266 = vst [vmem:[%s2227 + $0x130] sm:$0xff] %v2163
        %2267 = vst [vmem:[%s2227 + $0x138] sm:$0xff] %v2165
        %2268 = vst [vmem:[%s2227 + $0x140] sm:$0xff] %v2169
        %2269 = vst [vmem:[%s2227 + $0x148] sm:$0xff] %v2171
        %2270 = vst [vmem:[%s2227 + $0x150] sm:$0xff] %v2173
        %2271 = vst [vmem:[%s2227 + $0x158] sm:$0xff] %v2175
        %2272 = vst [vmem:[%s2227 + $0x160] sm:$0xff] %v2179
        %2273 = vst [vmem:[%s2227 + $0x168] sm:$0xff] %v2181
        %2274 = vst [vmem:[%s2227 + $0x170] sm:$0xff] %v2183
        %2275 = vst [vmem:[%s2227 + $0x178] sm:$0xff] %v2185
        %2276 = vst [vmem:[%s2227 + $0x180] sm:$0xff] %v2189
        %2277 = vst [vmem:[%s2227 + $0x188] sm:$0xff] %v2191
        %2278 = vst [vmem:[%s2227 + $0x190] sm:$0xff] %v2193
        %2279 = vst [vmem:[%s2227 + $0x198] sm:$0xff] %v2195
        %2280 = vst [vmem:[%s2227 + $0x1a0] sm:$0xff] %v2199
        %2281 = vst [vmem:[%s2227 + $0x1a8] sm:$0xff] %v2201
        %2282 = vst [vmem:[%s2227 + $0x1b0] sm:$0xff] %v2203
        %2283 = vst [vmem:[%s2227 + $0x1b8] sm:$0xff] %v2205
        %2284 = vst [vmem:[%s2227 + $0x1c0] sm:$0xff] %v2209
        %2285 = vst [vmem:[%s2227 + $0x1c8] sm:$0xff] %v2211
        %2286 = vst [vmem:[%s2227 + $0x1d0] sm:$0xff] %v2213
        %2287 = vst [vmem:[%s2227 + $0x1d8] sm:$0xff] %v2215
        %2288 = vst [vmem:[%s2227 + $0x1e0] sm:$0xff] %v2219
        %2289 = vst [vmem:[%s2227 + $0x1e8] sm:$0xff] %v2221
        %2290 = vst [vmem:[%s2227 + $0x1f0] sm:$0xff] %v2223
        %2291 = vst [vmem:[%s2227 + $0x1f8] sm:$0xff] %v2225
        %2292 = vst [vmem:[#allocation3] sm:$0xff] 0.0
        %2293 = vst [vmem:[#allocation3 + $0x8] sm:$0xff] 0.0
        %2294 = vst [vmem:[#allocation3 + $0x10] sm:$0xff] 0.0
        %2295 = vst [vmem:[#allocation3 + $0x18] sm:$0xff] 0.0
        %2296 = vst [vmem:[#allocation3 + $0x20] sm:$0xff] 0.0
        %2297 = vst [vmem:[#allocation3 + $0x28] sm:$0xff] 0.0
        %2298 = vst [vmem:[#allocation3 + $0x30] sm:$0xff] 0.0
        %2299 = vst [vmem:[#allocation3 + $0x38] sm:$0xff] 0.0
        %2300 = vst [vmem:[#allocation3 + $0x40] sm:$0xff] 0.0
        %2301 = vst [vmem:[#allocation3 + $0x48] sm:$0xff] 0.0
        %2302 = vst [vmem:[#allocation3 + $0x50] sm:$0xff] 0.0
        %2303 = vst [vmem:[#allocation3 + $0x58] sm:$0xff] 0.0
        %2304 = vst [vmem:[#allocation3 + $0x60] sm:$0xff] 0.0
        %2305 = vst [vmem:[#allocation3 + $0x68] sm:$0xff] 0.0
        %2306 = vst [vmem:[#allocation3 + $0x70] sm:$0xff] 0.0
        %2307 = vst [vmem:[#allocation3 + $0x78] sm:$0xff] 0.0
        %v2308 = vld [vmem:[%s2] sm:$0x3]
        loop: start=0, step=1, limit=8
        $region65: #{net_forward.1} parent=63 // loop_pre_header
          _
        $region66: #{net_forward.1} parent=63 // loop_header
          %s2310 = sphi 0, %s2314
          %p2311 = scmp.ge.s32.totalorder %s2310, 8
        $region67: #{net_forward.1} parent=63 // loop_header_branch
          %2313 = sbr.rel (%p2311) target = $region71
        $region68: #{net_forward.1} parent=63 // loop_body
          %s2315 = smul.u32 %s2310, 32
          %s2316 = sshra.s32 %s2315, 3
          %s2317 = sand.u32 %s2315, 7
          %s2318 = smul.u32 %s2316, 2
          %s2319 = smul.addr %s2318, 8
          %s2320 = scalar_lea.vmem [#allocation2], %s2319
          %v2321 = vld [vmem:[%s2320] sm:$0xff]
          %v2322 = vld [vmem:[%s2320 + $0x8] sm:$0xff]
          %v2323 = vld [vmem:[%s2320 + $0x10] sm:$0xff]
          %v2324 = vld [vmem:[%s2320 + $0x18] sm:$0xff]
          %v2325 = vld [vmem:[%s2320 + $0x20] sm:$0xff]
          %v2326 = vld [vmem:[%s2320 + $0x28] sm:$0xff]
          %v2327 = vld [vmem:[%s2320 + $0x30] sm:$0xff]
          %v2328 = vld [vmem:[%s2320 + $0x38] sm:$0xff]
          %v2329 = vadd.f32 %v2321, 0.0
          %v2330 = vadd.f32 %v2322, 0.0
          %v2331 = vadd.f32 %v2323, 0.0
          %v2332 = vadd.f32 %v2324, 0.0
          %v2333 = vadd.f32 %v2325, 0.0
          %v2334 = vadd.f32 %v2326, 0.0
          %v2335 = vadd.f32 %v2327, 0.0
          %v2336 = vadd.f32 %v2328, 0.0
          %s2337 = sadd.s32 %s2318, 64
          %s2338 = smul.addr %s2337, 8
          %s2339 = scalar_lea.vmem [#allocation2], %s2338
          %v2340 = vld [vmem:[%s2339] sm:$0xff]
          %v2341 = vld [vmem:[%s2339 + $0x8] sm:$0xff]
          %v2342 = vld [vmem:[%s2339 + $0x10] sm:$0xff]
          %v2343 = vld [vmem:[%s2339 + $0x18] sm:$0xff]
          %v2344 = vld [vmem:[%s2339 + $0x20] sm:$0xff]
          %v2345 = vld [vmem:[%s2339 + $0x28] sm:$0xff]
          %v2346 = vld [vmem:[%s2339 + $0x30] sm:$0xff]
          %v2347 = vld [vmem:[%s2339 + $0x38] sm:$0xff]
          %v2348 = vadd.f32 %v2329, %v2342
          %v2349 = vadd.f32 %v2330, %v2343
          %v2350 = vadd.f32 %v2331, %v2344
          %v2351 = vadd.f32 %v2332, %v2345
          %v2352 = vadd.f32 %v2333, %v2346
          %v2353 = vadd.f32 %v2334, %v2347
          %v2356 = vrot.slane %v2340, 1
          %v2357 = vrot.slane %v2341, 1
          %v2360 = vadd.f32 %v2335, %v2356
          %v2361 = vadd.f32 %v2336, %v2357
          %s2362 = sadd.s32 %s2318, 128
          %s2363 = smul.addr %s2362, 8
          %s2364 = scalar_lea.vmem [#allocation2], %s2363
          %v2365 = vld [vmem:[%s2364] sm:$0xff]
          %v2366 = vld [vmem:[%s2364 + $0x8] sm:$0xff]
          %v2367 = vld [vmem:[%s2364 + $0x10] sm:$0xff]
          %v2368 = vld [vmem:[%s2364 + $0x18] sm:$0xff]
          %v2369 = vld [vmem:[%s2364 + $0x20] sm:$0xff]
          %v2370 = vld [vmem:[%s2364 + $0x28] sm:$0xff]
          %v2371 = vld [vmem:[%s2364 + $0x30] sm:$0xff]
          %v2372 = vld [vmem:[%s2364 + $0x38] sm:$0xff]
          %v2373 = vadd.f32 %v2348, %v2369
          %v2374 = vadd.f32 %v2349, %v2370
          %v2375 = vadd.f32 %v2350, %v2371
          %v2376 = vadd.f32 %v2351, %v2372
          %v2379 = vrot.slane %v2365, 1
          %v2380 = vrot.slane %v2366, 1
          %v2383 = vadd.f32 %v2352, %v2379
          %v2384 = vadd.f32 %v2353, %v2380
          %v2387 = vrot.slane %v2367, 1
          %v2388 = vrot.slane %v2368, 1
          %v2391 = vadd.f32 %v2360, %v2387
          %v2392 = vadd.f32 %v2361, %v2388
          %s2393 = sadd.s32 %s2318, 192
          %s2394 = smul.addr %s2393, 8
          %s2395 = scalar_lea.vmem [#allocation2], %s2394
          %v2396 = vld [vmem:[%s2395] sm:$0xff]
          %v2397 = vld [vmem:[%s2395 + $0x8] sm:$0xff]
          %v2398 = vld [vmem:[%s2395 + $0x10] sm:$0xff]
          %v2399 = vld [vmem:[%s2395 + $0x18] sm:$0xff]
          %v2400 = vld [vmem:[%s2395 + $0x20] sm:$0xff]
          %v2401 = vld [vmem:[%s2395 + $0x28] sm:$0xff]
          %v2402 = vld [vmem:[%s2395 + $0x30] sm:$0xff]
          %v2403 = vld [vmem:[%s2395 + $0x38] sm:$0xff]
          %v2404 = vadd.f32 %v2373, %v2402
          %v2405 = vadd.f32 %v2374, %v2403
          %v2408 = vrot.slane %v2396, 1
          %v2409 = vrot.slane %v2397, 1
          %v2412 = vadd.f32 %v2375, %v2408
          %v2413 = vadd.f32 %v2376, %v2409
          %v2416 = vrot.slane %v2398, 1
          %v2417 = vrot.slane %v2399, 1
          %v2420 = vadd.f32 %v2383, %v2416
          %v2421 = vadd.f32 %v2384, %v2417
          %v2424 = vrot.slane %v2400, 1
          %v2425 = vrot.slane %v2401, 1
          %v2428 = vadd.f32 %v2391, %v2424
          %v2429 = vadd.f32 %v2392, %v2425
          %s2430 = sadd.s32 %s2318, 256
          %s2431 = smul.addr %s2430, 8
          %s2432 = scalar_lea.vmem [#allocation2], %s2431
          %v2433 = vld [vmem:[%s2432] sm:$0xff]
          %v2434 = vld [vmem:[%s2432 + $0x8] sm:$0xff]
          %v2435 = vld [vmem:[%s2432 + $0x10] sm:$0xff]
          %v2436 = vld [vmem:[%s2432 + $0x18] sm:$0xff]
          %v2437 = vld [vmem:[%s2432 + $0x20] sm:$0xff]
          %v2438 = vld [vmem:[%s2432 + $0x28] sm:$0xff]
          %v2439 = vld [vmem:[%s2432 + $0x30] sm:$0xff]
          %v2440 = vld [vmem:[%s2432 + $0x38] sm:$0xff]
          %v2443 = vrot.slane %v2433, 1
          %v2444 = vrot.slane %v2434, 1
          %v2447 = vadd.f32 %v2404, %v2443
          %v2448 = vadd.f32 %v2405, %v2444
          %v2451 = vrot.slane %v2435, 1
          %v2452 = vrot.slane %v2436, 1
          %v2455 = vadd.f32 %v2412, %v2451
          %v2456 = vadd.f32 %v2413, %v2452
          %v2459 = vrot.slane %v2437, 1
          %v2460 = vrot.slane %v2438, 1
          %v2463 = vadd.f32 %v2420, %v2459
          %v2464 = vadd.f32 %v2421, %v2460
          %v2467 = vrot.slane %v2439, 1
          %v2468 = vrot.slane %v2440, 1
          %v2471 = vadd.f32 %v2428, %v2467
          %v2472 = vadd.f32 %v2429, %v2468
          %v2474 = vlaneseq
          %v2475 = vshrl.u32 %v2474, 7
          %v2476 = vsub.s32 0, %v2475
          %v2477 = vrot.slane %v2308, %v2476
          %v2478 = vlaneseq
          %v2479 = vshrl.u32 %v2478, 7
          %v2480 = vsub.s32 1, %v2479
          %v2481 = vrot.slane %v2308, %v2480
          %v2484 = vadd.f32 %v2447, %v2477
          %v2485 = vadd.f32 %v2448, %v2481
          %v2486 = vmax.f32 %v2484, 0.0
          %v2487 = vmax.f32 %v2485, 0.0
          %v2488 = vadd.f32 %v2455, %v2477
          %v2489 = vadd.f32 %v2456, %v2481
          %v2490 = vmax.f32 %v2488, 0.0
          %v2491 = vmax.f32 %v2489, 0.0
          %v2492 = vadd.f32 %v2463, %v2477
          %v2493 = vadd.f32 %v2464, %v2481
          %v2494 = vmax.f32 %v2492, 0.0
          %v2495 = vmax.f32 %v2493, 0.0
          %v2496 = vadd.f32 %v2471, %v2477
          %v2497 = vadd.f32 %v2472, %v2481
          %v2498 = vmax.f32 %v2496, 0.0
          %v2499 = vmax.f32 %v2497, 0.0
          %v2500 = vmax.f32 %v2486, %v2490
          %v2501 = vmax.f32 %v2487, %v2491
          %v2502 = vmax.f32 %v2494, %v2498
          %v2503 = vmax.f32 %v2495, %v2499
          %v2504 = vmax.f32 %v2500, %v2501
          %s2505 = smul.u32 %s2310, 8
          %s2506 = scalar_lea.vmem [#allocation3], %s2505
          %2507 = vst [vmem:[%s2506] sm:$0x7f] %v2504
          %v2508 = vmax.f32 %v2502, %v2503
          %s2509 = sadd.s32 %s2505, 64
          %s2510 = scalar_lea.vmem [#allocation3], %s2509
          %2511 = vst [vmem:[%s2510] sm:$0x7f] %v2508
        $region69: #{net_forward.1} parent=63 // loop_footer
          %s2314 = sadd.s32 1, %s2310
        $region70: #{net_forward.1} parent=63 // loop_footer_branch
          %2309 = sbr.rel target = $region66
        $region71: #{net_forward.1} parent=63 // loop_exit
          _
        %v2512 = vld [vmem:[#allocation3] sm:$0xff]
        %v2513 = vld [vmem:[#allocation3 + $0x8] sm:$0xff]
        %v2514 = vld [vmem:[#allocation3 + $0x10] sm:$0xff]
        %v2515 = vld [vmem:[#allocation3 + $0x18] sm:$0xff]
        %v2516 = vld [vmem:[#allocation3 + $0x20] sm:$0xff]
        %v2517 = vld [vmem:[#allocation3 + $0x28] sm:$0xff]
        %v2518 = vld [vmem:[#allocation3 + $0x30] sm:$0xff]
        %v2519 = vld [vmem:[#allocation3 + $0x38] sm:$0xff]
        %v2520 = vpack.c.bf16 %v2513, %v2512
        %v2521 = vpack.c.bf16 %v2515, %v2514
        %v2522 = vpack.c.bf16 %v2517, %v2516
        %v2523 = vpack.c.bf16 %v2519, %v2518
        %s2524 = scalar_lea.vmem [#allocation3], 64
        %v2525 = vld [vmem:[%s2524] sm:$0xff]
        %v2526 = vld [vmem:[%s2524 + $0x8] sm:$0xff]
        %v2527 = vld [vmem:[%s2524 + $0x10] sm:$0xff]
        %v2528 = vld [vmem:[%s2524 + $0x18] sm:$0xff]
        %v2529 = vld [vmem:[%s2524 + $0x20] sm:$0xff]
        %v2530 = vld [vmem:[%s2524 + $0x28] sm:$0xff]
        %v2531 = vld [vmem:[%s2524 + $0x30] sm:$0xff]
        %v2532 = vld [vmem:[%s2524 + $0x38] sm:$0xff]
        %v2533 = vpack.c.bf16 %v2526, %v2525
        %v2534 = vpack.c.bf16 %v2528, %v2527
        %v2535 = vpack.c.bf16 %v2530, %v2529
        %v2536 = vpack.c.bf16 %v2532, %v2531
        %v2537 = vld [vmem:[%s3] sm:$0xff]
        %v2538 = vld [vmem:[%s3 + $0x8] sm:$0xff]
        %v2539 = vld [vmem:[%s3 + $0x10] sm:$0xff]
        %v2540 = vld [vmem:[%s3 + $0x18] sm:$0xff]
        %v2541 = vld [vmem:[%s3 + $0x20] sm:$0xff]
        %v2542 = vld [vmem:[%s3 + $0x28] sm:$0xff]
        %v2543 = vld [vmem:[%s3 + $0x30] sm:$0xff]
        %v2544 = vld [vmem:[%s3 + $0x38] sm:$0xff]
        %v2545 = vld [vmem:[%s3 + $0x40] sm:$0xff]
        %v2546 = vld [vmem:[%s3 + $0x48] sm:$0xff]
        %v2547 = vld [vmem:[%s3 + $0x50] sm:$0xff]
        %v2548 = vld [vmem:[%s3 + $0x58] sm:$0xff]
        %v2549 = vld [vmem:[%s3 + $0x60] sm:$0xff]
        %v2550 = vld [vmem:[%s3 + $0x68] sm:$0xff]
        %v2551 = vld [vmem:[%s3 + $0x70] sm:$0xff]
        %v2552 = vld [vmem:[%s3 + $0x78] sm:$0xff]
        %v2569 = vunpack.c.l.b16 %v2537
        %v2570 = vunpack.c.h.b16 %v2537
        %v2571 = vunpack.c.l.b16 %v2538
        %v2572 = vunpack.c.h.b16 %v2538
        %v2573 = vunpack.c.l.b16 %v2539
        %v2574 = vunpack.c.h.b16 %v2539
        %v2575 = vunpack.c.l.b16 %v2540
        %v2576 = vunpack.c.h.b16 %v2540
        %v2577 = vunpack.c.l.b16 %v2541
        %v2578 = vunpack.c.h.b16 %v2541
        %v2579 = vunpack.c.l.b16 %v2542
        %v2580 = vunpack.c.h.b16 %v2542
        %v2581 = vunpack.c.l.b16 %v2543
        %v2582 = vunpack.c.h.b16 %v2543
        %v2583 = vunpack.c.l.b16 %v2544
        %v2584 = vunpack.c.h.b16 %v2544
        %v2585 = vunpack.c.l.b16 %v2545
        %v2586 = vunpack.c.h.b16 %v2545
        %v2587 = vunpack.c.l.b16 %v2546
        %v2588 = vunpack.c.h.b16 %v2546
        %v2589 = vunpack.c.l.b16 %v2547
        %v2590 = vunpack.c.h.b16 %v2547
        %v2591 = vunpack.c.l.b16 %v2548
        %v2592 = vunpack.c.h.b16 %v2548
        %v2593 = vunpack.c.l.b16 %v2549
        %v2594 = vunpack.c.h.b16 %v2549
        %v2595 = vunpack.c.l.b16 %v2550
        %v2596 = vunpack.c.h.b16 %v2550
        %v2597 = vunpack.c.l.b16 %v2551
        %v2598 = vunpack.c.h.b16 %v2551
        %v2599 = vunpack.c.l.b16 %v2552
        %v2600 = vunpack.c.h.b16 %v2552
        %v2601 = vpack.c.b16 %v2571, %v2569
        %v2602 = vpack.c.b16 %v2572, %v2570
        %v2603 = vpack.c.b16 %v2575, %v2573
        %v2604 = vpack.c.b16 %v2576, %v2574
        %v2605 = vpack.c.b16 %v2579, %v2577
        %v2606 = vpack.c.b16 %v2580, %v2578
        %v2607 = vpack.c.b16 %v2583, %v2581
        %v2608 = vpack.c.b16 %v2584, %v2582
        %v2609 = vpack.c.b16 %v2587, %v2585
        %v2610 = vpack.c.b16 %v2588, %v2586
        %v2611 = vpack.c.b16 %v2591, %v2589
        %v2612 = vpack.c.b16 %v2592, %v2590
        %v2613 = vpack.c.b16 %v2595, %v2593
        %v2614 = vpack.c.b16 %v2596, %v2594
        %v2615 = vpack.c.b16 %v2599, %v2597
        %v2616 = vpack.c.b16 %v2600, %v2598
        %2633 = vmatprep.subr.bf16.mxu0 %v2602
        %2634 = vmatpush1.bf16.msra.mxu0 %v2601
        %2635 = vmatprep.subr.bf16.mxu0 %v2604
        %2636 = vmatpush1.bf16.msra.mxu0 %v2603
        %2637 = vmatprep.subr.bf16.mxu0 %v2606
        %2638 = vmatpush1.bf16.msra.mxu0 %v2605
        %2639 = vmatprep.subr.bf16.mxu0 %v2608
        %2640 = vmatpush1.bf16.msra.mxu0 %v2607
        %2641 = vmatprep.subr.bf16.mxu0 %v2610
        %2642 = vmatpush1.bf16.msra.mxu0 %v2609
        %2643 = vmatprep.subr.bf16.mxu0 %v2612
        %2644 = vmatpush1.bf16.msra.mxu0 %v2611
        %2645 = vmatprep.subr.bf16.mxu0 %v2614
        %2646 = vmatpush1.bf16.msra.mxu0 %v2613
        %2647 = vmatprep.subr.bf16.mxu0 %v2616
        %2648 = vmatpush1.bf16.msra.mxu0 %v2615
        %2649 = vmatprep.subr.bf16.mxu0 0
        %2650 = vmatpush1.bf16.msra.mxu0 0
        %2651 = vmatprep.subr.bf16.mxu0 0
        %2652 = vmatpush1.bf16.msra.mxu0 0
        %2653 = vmatprep.subr.bf16.mxu0 0
        %2654 = vmatpush1.bf16.msra.mxu0 0
        %2655 = vmatprep.subr.bf16.mxu0 0
        %2656 = vmatpush1.bf16.msra.mxu0 0
        %2657 = vmatprep.subr.bf16.mxu0 0
        %2658 = vmatpush1.bf16.msra.mxu0 0
        %2659 = vmatprep.subr.bf16.mxu0 0
        %2660 = vmatpush1.bf16.msra.mxu0 0
        %2661 = vmatprep.subr.bf16.mxu0 0
        %2662 = vmatpush1.bf16.msra.mxu0 0
        %2663 = vmatprep.subr.bf16.mxu0 0
        %2664 = vmatpush1.bf16.msra.mxu0 0
        %2665 = vmatprep.mubr.bf16.mxu0 0
        %2666 = vmatmul.mubr.bf16.gmra.mrb[0].mxu0 %v2520
        %v2667 = vpop.f32.mrb[0].mxu0
        %v2668 = vadd.f32 0.0, %v2667
        %v2669 = vpop.f32.mrb[0].mxu0
        %v2670 = vadd.f32 0.0, %v2669
        %v2671 = vpop.f32.mrb[0].mxu0
        %v2672 = vadd.f32 0.0, %v2671
        %v2673 = vpop.f32.mrb[0].mxu0
        %v2674 = vadd.f32 0.0, %v2673
        %2675 = vmatprep.mubr.bf16.mxu0 0
        %2676 = vmatmul.mubr.bf16.gmra.mrb[0].mxu0 %v2521
        %v2677 = vpop.f32.mrb[0].mxu0
        %v2678 = vadd.f32 0.0, %v2677
        %v2679 = vpop.f32.mrb[0].mxu0
        %v2680 = vadd.f32 0.0, %v2679
        %v2681 = vpop.f32.mrb[0].mxu0
        %v2682 = vadd.f32 0.0, %v2681
        %v2683 = vpop.f32.mrb[0].mxu0
        %v2684 = vadd.f32 0.0, %v2683
        %2685 = vmatprep.mubr.bf16.mxu0 0
        %2686 = vmatmul.mubr.bf16.gmra.mrb[0].mxu0 %v2522
        %v2687 = vpop.f32.mrb[0].mxu0
        %v2688 = vadd.f32 0.0, %v2687
        %v2689 = vpop.f32.mrb[0].mxu0
        %v2690 = vadd.f32 0.0, %v2689
        %v2691 = vpop.f32.mrb[0].mxu0
        %v2692 = vadd.f32 0.0, %v2691
        %v2693 = vpop.f32.mrb[0].mxu0
        %v2694 = vadd.f32 0.0, %v2693
        %2695 = vmatprep.mubr.bf16.mxu0 0
        %2696 = vmatmul.mubr.bf16.gmra.mrb[0].mxu0 %v2523
        %v2697 = vpop.f32.mrb[0].mxu0
        %v2698 = vadd.f32 0.0, %v2697
        %v2699 = vpop.f32.mrb[0].mxu0
        %v2700 = vadd.f32 0.0, %v2699
        %v2701 = vpop.f32.mrb[0].mxu0
        %v2702 = vadd.f32 0.0, %v2701
        %v2703 = vpop.f32.mrb[0].mxu0
        %v2704 = vadd.f32 0.0, %v2703
        %2705 = vdwg.mxu0
        %2706 = vst [vmem:[#allocation4] sm:$0xff] %v2668
        %2707 = vst [vmem:[#allocation4 + $0x8] sm:$0xff] %v2670
        %2708 = vst [vmem:[#allocation4 + $0x10] sm:$0xff] %v2672
        %2709 = vst [vmem:[#allocation4 + $0x18] sm:$0xff] %v2674
        %2710 = vst [vmem:[#allocation4 + $0x20] sm:$0xff] %v2678
        %2711 = vst [vmem:[#allocation4 + $0x28] sm:$0xff] %v2680
        %2712 = vst [vmem:[#allocation4 + $0x30] sm:$0xff] %v2682
        %2713 = vst [vmem:[#allocation4 + $0x38] sm:$0xff] %v2684
        %2714 = vst [vmem:[#allocation4 + $0x40] sm:$0xff] %v2688
        %2715 = vst [vmem:[#allocation4 + $0x48] sm:$0xff] %v2690
        %2716 = vst [vmem:[#allocation4 + $0x50] sm:$0xff] %v2692
        %2717 = vst [vmem:[#allocation4 + $0x58] sm:$0xff] %v2694
        %2718 = vst [vmem:[#allocation4 + $0x60] sm:$0xff] %v2698
        %2719 = vst [vmem:[#allocation4 + $0x68] sm:$0xff] %v2700
        %2720 = vst [vmem:[#allocation4 + $0x70] sm:$0xff] %v2702
        %2721 = vst [vmem:[#allocation4 + $0x78] sm:$0xff] %v2704
        %v2722 = vld [vmem:[%s3] sm:$0xff]
        %v2723 = vld [vmem:[%s3 + $0x8] sm:$0xff]
        %v2724 = vld [vmem:[%s3 + $0x10] sm:$0xff]
        %v2725 = vld [vmem:[%s3 + $0x18] sm:$0xff]
        %v2726 = vld [vmem:[%s3 + $0x20] sm:$0xff]
        %v2727 = vld [vmem:[%s3 + $0x28] sm:$0xff]
        %v2728 = vld [vmem:[%s3 + $0x30] sm:$0xff]
        %v2729 = vld [vmem:[%s3 + $0x38] sm:$0xff]
        %v2730 = vld [vmem:[%s3 + $0x40] sm:$0xff]
        %v2731 = vld [vmem:[%s3 + $0x48] sm:$0xff]
        %v2732 = vld [vmem:[%s3 + $0x50] sm:$0xff]
        %v2733 = vld [vmem:[%s3 + $0x58] sm:$0xff]
        %v2734 = vld [vmem:[%s3 + $0x60] sm:$0xff]
        %v2735 = vld [vmem:[%s3 + $0x68] sm:$0xff]
        %v2736 = vld [vmem:[%s3 + $0x70] sm:$0xff]
        %v2737 = vld [vmem:[%s3 + $0x78] sm:$0xff]
        %v2754 = vunpack.c.l.b16 %v2722
        %v2755 = vunpack.c.h.b16 %v2722
        %v2756 = vunpack.c.l.b16 %v2723
        %v2757 = vunpack.c.h.b16 %v2723
        %v2758 = vunpack.c.l.b16 %v2724
        %v2759 = vunpack.c.h.b16 %v2724
        %v2760 = vunpack.c.l.b16 %v2725
        %v2761 = vunpack.c.h.b16 %v2725
        %v2762 = vunpack.c.l.b16 %v2726
        %v2763 = vunpack.c.h.b16 %v2726
        %v2764 = vunpack.c.l.b16 %v2727
        %v2765 = vunpack.c.h.b16 %v2727
        %v2766 = vunpack.c.l.b16 %v2728
        %v2767 = vunpack.c.h.b16 %v2728
        %v2768 = vunpack.c.l.b16 %v2729
        %v2769 = vunpack.c.h.b16 %v2729
        %v2770 = vunpack.c.l.b16 %v2730
        %v2771 = vunpack.c.h.b16 %v2730
        %v2772 = vunpack.c.l.b16 %v2731
        %v2773 = vunpack.c.h.b16 %v2731
        %v2774 = vunpack.c.l.b16 %v2732
        %v2775 = vunpack.c.h.b16 %v2732
        %v2776 = vunpack.c.l.b16 %v2733
        %v2777 = vunpack.c.h.b16 %v2733
        %v2778 = vunpack.c.l.b16 %v2734
        %v2779 = vunpack.c.h.b16 %v2734
        %v2780 = vunpack.c.l.b16 %v2735
        %v2781 = vunpack.c.h.b16 %v2735
        %v2782 = vunpack.c.l.b16 %v2736
        %v2783 = vunpack.c.h.b16 %v2736
        %v2784 = vunpack.c.l.b16 %v2737
        %v2785 = vunpack.c.h.b16 %v2737
        %v2786 = vpack.c.b16 %v2756, %v2754
        %v2787 = vpack.c.b16 %v2757, %v2755
        %v2788 = vpack.c.b16 %v2760, %v2758
        %v2789 = vpack.c.b16 %v2761, %v2759
        %v2790 = vpack.c.b16 %v2764, %v2762
        %v2791 = vpack.c.b16 %v2765, %v2763
        %v2792 = vpack.c.b16 %v2768, %v2766
        %v2793 = vpack.c.b16 %v2769, %v2767
        %v2794 = vpack.c.b16 %v2772, %v2770
        %v2795 = vpack.c.b16 %v2773, %v2771
        %v2796 = vpack.c.b16 %v2776, %v2774
        %v2797 = vpack.c.b16 %v2777, %v2775
        %v2798 = vpack.c.b16 %v2780, %v2778
        %v2799 = vpack.c.b16 %v2781, %v2779
        %v2800 = vpack.c.b16 %v2784, %v2782
        %v2801 = vpack.c.b16 %v2785, %v2783
        %2818 = vmatprep.subr.bf16.mxu0 %v2787
        %2819 = vmatpush1.bf16.msra.mxu0 %v2786
        %2820 = vmatprep.subr.bf16.mxu0 %v2789
        %2821 = vmatpush1.bf16.msra.mxu0 %v2788
        %2822 = vmatprep.subr.bf16.mxu0 %v2791
        %2823 = vmatpush1.bf16.msra.mxu0 %v2790
        %2824 = vmatprep.subr.bf16.mxu0 %v2793
        %2825 = vmatpush1.bf16.msra.mxu0 %v2792
        %2826 = vmatprep.subr.bf16.mxu0 %v2795
        %2827 = vmatpush1.bf16.msra.mxu0 %v2794
        %2828 = vmatprep.subr.bf16.mxu0 %v2797
        %2829 = vmatpush1.bf16.msra.mxu0 %v2796
        %2830 = vmatprep.subr.bf16.mxu0 %v2799
        %2831 = vmatpush1.bf16.msra.mxu0 %v2798
        %2832 = vmatprep.subr.bf16.mxu0 %v2801
        %2833 = vmatpush1.bf16.msra.mxu0 %v2800
        %2834 = vmatprep.subr.bf16.mxu0 0
        %2835 = vmatpush1.bf16.msra.mxu0 0
        %2836 = vmatprep.subr.bf16.mxu0 0
        %2837 = vmatpush1.bf16.msra.mxu0 0
        %2838 = vmatprep.subr.bf16.mxu0 0
        %2839 = vmatpush1.bf16.msra.mxu0 0
        %2840 = vmatprep.subr.bf16.mxu0 0
        %2841 = vmatpush1.bf16.msra.mxu0 0
        %2842 = vmatprep.subr.bf16.mxu0 0
        %2843 = vmatpush1.bf16.msra.mxu0 0
        %2844 = vmatprep.subr.bf16.mxu0 0
        %2845 = vmatpush1.bf16.msra.mxu0 0
        %2846 = vmatprep.subr.bf16.mxu0 0
        %2847 = vmatpush1.bf16.msra.mxu0 0
        %2848 = vmatprep.subr.bf16.mxu0 0
        %2849 = vmatpush1.bf16.msra.mxu0 0
        %2850 = vmatprep.mubr.bf16.mxu0 0
        %2851 = vmatmul.mubr.bf16.gmra.mrb[0].mxu0 %v2533
        %v2852 = vpop.f32.mrb[0].mxu0
        %v2853 = vadd.f32 0.0, %v2852
        %v2854 = vpop.f32.mrb[0].mxu0
        %v2855 = vadd.f32 0.0, %v2854
        %v2856 = vpop.f32.mrb[0].mxu0
        %v2857 = vadd.f32 0.0, %v2856
        %v2858 = vpop.f32.mrb[0].mxu0
        %v2859 = vadd.f32 0.0, %v2858
        %2860 = vmatprep.mubr.bf16.mxu0 0
        %2861 = vmatmul.mubr.bf16.gmra.mrb[0].mxu0 %v2534
        %v2862 = vpop.f32.mrb[0].mxu0
        %v2863 = vadd.f32 0.0, %v2862
        %v2864 = vpop.f32.mrb[0].mxu0
        %v2865 = vadd.f32 0.0, %v2864
        %v2866 = vpop.f32.mrb[0].mxu0
        %v2867 = vadd.f32 0.0, %v2866
        %v2868 = vpop.f32.mrb[0].mxu0
        %v2869 = vadd.f32 0.0, %v2868
        %2870 = vmatprep.mubr.bf16.mxu0 0
        %2871 = vmatmul.mubr.bf16.gmra.mrb[0].mxu0 %v2535
        %v2872 = vpop.f32.mrb[0].mxu0
        %v2873 = vadd.f32 0.0, %v2872
        %v2874 = vpop.f32.mrb[0].mxu0
        %v2875 = vadd.f32 0.0, %v2874
        %v2876 = vpop.f32.mrb[0].mxu0
        %v2877 = vadd.f32 0.0, %v2876
        %v2878 = vpop.f32.mrb[0].mxu0
        %v2879 = vadd.f32 0.0, %v2878
        %2880 = vmatprep.mubr.bf16.mxu0 0
        %2881 = vmatmul.mubr.bf16.gmra.mrb[0].mxu0 %v2536
        %v2882 = vpop.f32.mrb[0].mxu0
        %v2883 = vadd.f32 0.0, %v2882
        %v2884 = vpop.f32.mrb[0].mxu0
        %v2885 = vadd.f32 0.0, %v2884
        %v2886 = vpop.f32.mrb[0].mxu0
        %v2887 = vadd.f32 0.0, %v2886
        %v2888 = vpop.f32.mrb[0].mxu0
        %v2889 = vadd.f32 0.0, %v2888
        %2890 = vdwg.mxu0
        %s2891 = scalar_lea.vmem [#allocation4], 128
        %2892 = vst [vmem:[%s2891] sm:$0xff] %v2853
        %2893 = vst [vmem:[%s2891 + $0x8] sm:$0xff] %v2855
        %2894 = vst [vmem:[%s2891 + $0x10] sm:$0xff] %v2857
        %2895 = vst [vmem:[%s2891 + $0x18] sm:$0xff] %v2859
        %2896 = vst [vmem:[%s2891 + $0x20] sm:$0xff] %v2863
        %2897 = vst [vmem:[%s2891 + $0x28] sm:$0xff] %v2865
        %2898 = vst [vmem:[%s2891 + $0x30] sm:$0xff] %v2867
        %2899 = vst [vmem:[%s2891 + $0x38] sm:$0xff] %v2869
        %2900 = vst [vmem:[%s2891 + $0x40] sm:$0xff] %v2873
        %2901 = vst [vmem:[%s2891 + $0x48] sm:$0xff] %v2875
        %2902 = vst [vmem:[%s2891 + $0x50] sm:$0xff] %v2877
        %2903 = vst [vmem:[%s2891 + $0x58] sm:$0xff] %v2879
        %2904 = vst [vmem:[%s2891 + $0x60] sm:$0xff] %v2883
        %2905 = vst [vmem:[%s2891 + $0x68] sm:$0xff] %v2885
        %2906 = vst [vmem:[%s2891 + $0x70] sm:$0xff] %v2887
        %2907 = vst [vmem:[%s2891 + $0x78] sm:$0xff] %v2889
        %s2908 = scalar_lea.vmem %s3, 128
        %v2909 = vld [vmem:[%s2908] sm:$0xff]
        %v2910 = vld [vmem:[%s2908 + $0x8] sm:$0xff]
        %v2911 = vld [vmem:[%s2908 + $0x10] sm:$0xff]
        %v2912 = vld [vmem:[%s2908 + $0x18] sm:$0xff]
        %v2913 = vld [vmem:[%s2908 + $0x20] sm:$0xff]
        %v2914 = vld [vmem:[%s2908 + $0x28] sm:$0xff]
        %v2915 = vld [vmem:[%s2908 + $0x30] sm:$0xff]
        %v2916 = vld [vmem:[%s2908 + $0x38] sm:$0xff]
        %v2917 = vld [vmem:[%s2908 + $0x40] sm:$0xff]
        %v2918 = vld [vmem:[%s2908 + $0x48] sm:$0xff]
        %v2919 = vld [vmem:[%s2908 + $0x50] sm:$0xff]
        %v2920 = vld [vmem:[%s2908 + $0x58] sm:$0xff]
        %v2921 = vld [vmem:[%s2908 + $0x60] sm:$0xff]
        %v2922 = vld [vmem:[%s2908 + $0x68] sm:$0xff]
        %v2923 = vld [vmem:[%s2908 + $0x70] sm:$0xff]
        %v2924 = vld [vmem:[%s2908 + $0x78] sm:$0xff]
        %v2941 = vunpack.c.l.b16 %v2909
        %v2942 = vunpack.c.h.b16 %v2909
        %v2943 = vunpack.c.l.b16 %v2910
        %v2944 = vunpack.c.h.b16 %v2910
        %v2945 = vunpack.c.l.b16 %v2911
        %v2946 = vunpack.c.h.b16 %v2911
        %v2947 = vunpack.c.l.b16 %v2912
        %v2948 = vunpack.c.h.b16 %v2912
        %v2949 = vunpack.c.l.b16 %v2913
        %v2950 = vunpack.c.h.b16 %v2913
        %v2951 = vunpack.c.l.b16 %v2914
        %v2952 = vunpack.c.h.b16 %v2914
        %v2953 = vunpack.c.l.b16 %v2915
        %v2954 = vunpack.c.h.b16 %v2915
        %v2955 = vunpack.c.l.b16 %v2916
        %v2956 = vunpack.c.h.b16 %v2916
        %v2957 = vunpack.c.l.b16 %v2917
        %v2958 = vunpack.c.h.b16 %v2917
        %v2959 = vunpack.c.l.b16 %v2918
        %v2960 = vunpack.c.h.b16 %v2918
        %v2961 = vunpack.c.l.b16 %v2919
        %v2962 = vunpack.c.h.b16 %v2919
        %v2963 = vunpack.c.l.b16 %v2920
        %v2964 = vunpack.c.h.b16 %v2920
        %v2965 = vunpack.c.l.b16 %v2921
        %v2966 = vunpack.c.h.b16 %v2921
        %v2967 = vunpack.c.l.b16 %v2922
        %v2968 = vunpack.c.h.b16 %v2922
        %v2969 = vunpack.c.l.b16 %v2923
        %v2970 = vunpack.c.h.b16 %v2923
        %v2971 = vunpack.c.l.b16 %v2924
        %v2972 = vunpack.c.h.b16 %v2924
        %v2973 = vpack.c.b16 %v2943, %v2941
        %v2974 = vpack.c.b16 %v2944, %v2942
        %v2975 = vpack.c.b16 %v2947, %v2945
        %v2976 = vpack.c.b16 %v2948, %v2946
        %v2977 = vpack.c.b16 %v2951, %v2949
        %v2978 = vpack.c.b16 %v2952, %v2950
        %v2979 = vpack.c.b16 %v2955, %v2953
        %v2980 = vpack.c.b16 %v2956, %v2954
        %v2981 = vpack.c.b16 %v2959, %v2957
        %v2982 = vpack.c.b16 %v2960, %v2958
        %v2983 = vpack.c.b16 %v2963, %v2961
        %v2984 = vpack.c.b16 %v2964, %v2962
        %v2985 = vpack.c.b16 %v2967, %v2965
        %v2986 = vpack.c.b16 %v2968, %v2966
        %v2987 = vpack.c.b16 %v2971, %v2969
        %v2988 = vpack.c.b16 %v2972, %v2970
        %3005 = vmatprep.subr.bf16.mxu0 %v2974
        %3006 = vmatpush1.bf16.msra.mxu0 %v2973
        %3007 = vmatprep.subr.bf16.mxu0 %v2976
        %3008 = vmatpush1.bf16.msra.mxu0 %v2975
        %3009 = vmatprep.subr.bf16.mxu0 %v2978
        %3010 = vmatpush1.bf16.msra.mxu0 %v2977
        %3011 = vmatprep.subr.bf16.mxu0 %v2980
        %3012 = vmatpush1.bf16.msra.mxu0 %v2979
        %3013 = vmatprep.subr.bf16.mxu0 %v2982
        %3014 = vmatpush1.bf16.msra.mxu0 %v2981
        %3015 = vmatprep.subr.bf16.mxu0 %v2984
        %3016 = vmatpush1.bf16.msra.mxu0 %v2983
        %3017 = vmatprep.subr.bf16.mxu0 %v2986
        %3018 = vmatpush1.bf16.msra.mxu0 %v2985
        %3019 = vmatprep.subr.bf16.mxu0 %v2988
        %3020 = vmatpush1.bf16.msra.mxu0 %v2987
        %3021 = vmatprep.subr.bf16.mxu0 0
        %3022 = vmatpush1.bf16.msra.mxu0 0
        %3023 = vmatprep.subr.bf16.mxu0 0
        %3024 = vmatpush1.bf16.msra.mxu0 0
        %3025 = vmatprep.subr.bf16.mxu0 0
        %3026 = vmatpush1.bf16.msra.mxu0 0
        %3027 = vmatprep.subr.bf16.mxu0 0
        %3028 = vmatpush1.bf16.msra.mxu0 0
        %3029 = vmatprep.subr.bf16.mxu0 0
        %3030 = vmatpush1.bf16.msra.mxu0 0
        %3031 = vmatprep.subr.bf16.mxu0 0
        %3032 = vmatpush1.bf16.msra.mxu0 0
        %3033 = vmatprep.subr.bf16.mxu0 0
        %3034 = vmatpush1.bf16.msra.mxu0 0
        %3035 = vmatprep.subr.bf16.mxu0 0
        %3036 = vmatpush1.bf16.msra.mxu0 0
        %3037 = vmatprep.mubr.bf16.mxu0 0
        %3038 = vmatmul.mubr.bf16.gmra.mrb[0].mxu0 %v2520
        %v3039 = vpop.f32.mrb[0].mxu0
        %v3040 = vadd.f32 0.0, %v3039
        %v3041 = vpop.f32.mrb[0].mxu0
        %v3042 = vadd.f32 0.0, %v3041
        %v3043 = vpop.f32.mrb[0].mxu0
        %v3044 = vadd.f32 0.0, %v3043
        %v3045 = vpop.f32.mrb[0].mxu0
        %v3046 = vadd.f32 0.0, %v3045
        %3047 = vmatprep.mubr.bf16.mxu0 0
        %3048 = vmatmul.mubr.bf16.gmra.mrb[0].mxu0 %v2521
        %v3049 = vpop.f32.mrb[0].mxu0
        %v3050 = vadd.f32 0.0, %v3049
        %v3051 = vpop.f32.mrb[0].mxu0
        %v3052 = vadd.f32 0.0, %v3051
        %v3053 = vpop.f32.mrb[0].mxu0
        %v3054 = vadd.f32 0.0, %v3053
        %v3055 = vpop.f32.mrb[0].mxu0
        %v3056 = vadd.f32 0.0, %v3055
        %3057 = vmatprep.mubr.bf16.mxu0 0
        %3058 = vmatmul.mubr.bf16.gmra.mrb[0].mxu0 %v2522
        %v3059 = vpop.f32.mrb[0].mxu0
        %v3060 = vadd.f32 0.0, %v3059
        %v3061 = vpop.f32.mrb[0].mxu0
        %v3062 = vadd.f32 0.0, %v3061
        %v3063 = vpop.f32.mrb[0].mxu0
        %v3064 = vadd.f32 0.0, %v3063
        %v3065 = vpop.f32.mrb[0].mxu0
        %v3066 = vadd.f32 0.0, %v3065
        %3067 = vmatprep.mubr.bf16.mxu0 0
        %3068 = vmatmul.mubr.bf16.gmra.mrb[0].mxu0 %v2523
        %v3069 = vpop.f32.mrb[0].mxu0
        %v3070 = vadd.f32 0.0, %v3069
        %v3071 = vpop.f32.mrb[0].mxu0
        %v3072 = vadd.f32 0.0, %v3071
        %v3073 = vpop.f32.mrb[0].mxu0
        %v3074 = vadd.f32 0.0, %v3073
        %v3075 = vpop.f32.mrb[0].mxu0
        %v3076 = vadd.f32 0.0, %v3075
        %3077 = vdwg.mxu0
        %s3078 = scalar_lea.vmem [#allocation4], 256
        %3079 = vst [vmem:[%s3078] sm:$0xff] %v3040
        %3080 = vst [vmem:[%s3078 + $0x8] sm:$0xff] %v3042
        %3081 = vst [vmem:[%s3078 + $0x10] sm:$0xff] %v3044
        %3082 = vst [vmem:[%s3078 + $0x18] sm:$0xff] %v3046
        %3083 = vst [vmem:[%s3078 + $0x20] sm:$0xff] %v3050
        %3084 = vst [vmem:[%s3078 + $0x28] sm:$0xff] %v3052
        %3085 = vst [vmem:[%s3078 + $0x30] sm:$0xff] %v3054
        %3086 = vst [vmem:[%s3078 + $0x38] sm:$0xff] %v3056
        %3087 = vst [vmem:[%s3078 + $0x40] sm:$0xff] %v3060
        %3088 = vst [vmem:[%s3078 + $0x48] sm:$0xff] %v3062
        %3089 = vst [vmem:[%s3078 + $0x50] sm:$0xff] %v3064
        %3090 = vst [vmem:[%s3078 + $0x58] sm:$0xff] %v3066
        %3091 = vst [vmem:[%s3078 + $0x60] sm:$0xff] %v3070
        %3092 = vst [vmem:[%s3078 + $0x68] sm:$0xff] %v3072
        %3093 = vst [vmem:[%s3078 + $0x70] sm:$0xff] %v3074
        %3094 = vst [vmem:[%s3078 + $0x78] sm:$0xff] %v3076
        %v3095 = vld [vmem:[%s2908] sm:$0xff]
        %v3096 = vld [vmem:[%s2908 + $0x8] sm:$0xff]
        %v3097 = vld [vmem:[%s2908 + $0x10] sm:$0xff]
        %v3098 = vld [vmem:[%s2908 + $0x18] sm:$0xff]
        %v3099 = vld [vmem:[%s2908 + $0x20] sm:$0xff]
        %v3100 = vld [vmem:[%s2908 + $0x28] sm:$0xff]
        %v3101 = vld [vmem:[%s2908 + $0x30] sm:$0xff]
        %v3102 = vld [vmem:[%s2908 + $0x38] sm:$0xff]
        %v3103 = vld [vmem:[%s2908 + $0x40] sm:$0xff]
        %v3104 = vld [vmem:[%s2908 + $0x48] sm:$0xff]
        %v3105 = vld [vmem:[%s2908 + $0x50] sm:$0xff]
        %v3106 = vld [vmem:[%s2908 + $0x58] sm:$0xff]
        %v3107 = vld [vmem:[%s2908 + $0x60] sm:$0xff]
        %v3108 = vld [vmem:[%s2908 + $0x68] sm:$0xff]
        %v3109 = vld [vmem:[%s2908 + $0x70] sm:$0xff]
        %v3110 = vld [vmem:[%s2908 + $0x78] sm:$0xff]
        %v3127 = vunpack.c.l.b16 %v3095
        %v3128 = vunpack.c.h.b16 %v3095
        %v3129 = vunpack.c.l.b16 %v3096
        %v3130 = vunpack.c.h.b16 %v3096
        %v3131 = vunpack.c.l.b16 %v3097
        %v3132 = vunpack.c.h.b16 %v3097
        %v3133 = vunpack.c.l.b16 %v3098
        %v3134 = vunpack.c.h.b16 %v3098
        %v3135 = vunpack.c.l.b16 %v3099
        %v3136 = vunpack.c.h.b16 %v3099
        %v3137 = vunpack.c.l.b16 %v3100
        %v3138 = vunpack.c.h.b16 %v3100
        %v3139 = vunpack.c.l.b16 %v3101
        %v3140 = vunpack.c.h.b16 %v3101
        %v3141 = vunpack.c.l.b16 %v3102
        %v3142 = vunpack.c.h.b16 %v3102
        %v3143 = vunpack.c.l.b16 %v3103
        %v3144 = vunpack.c.h.b16 %v3103
        %v3145 = vunpack.c.l.b16 %v3104
        %v3146 = vunpack.c.h.b16 %v3104
        %v3147 = vunpack.c.l.b16 %v3105
        %v3148 = vunpack.c.h.b16 %v3105
        %v3149 = vunpack.c.l.b16 %v3106
        %v3150 = vunpack.c.h.b16 %v3106
        %v3151 = vunpack.c.l.b16 %v3107
        %v3152 = vunpack.c.h.b16 %v3107
        %v3153 = vunpack.c.l.b16 %v3108
        %v3154 = vunpack.c.h.b16 %v3108
        %v3155 = vunpack.c.l.b16 %v3109
        %v3156 = vunpack.c.h.b16 %v3109
        %v3157 = vunpack.c.l.b16 %v3110
        %v3158 = vunpack.c.h.b16 %v3110
        %v3159 = vpack.c.b16 %v3129, %v3127
        %v3160 = vpack.c.b16 %v3130, %v3128
        %v3161 = vpack.c.b16 %v3133, %v3131
        %v3162 = vpack.c.b16 %v3134, %v3132
        %v3163 = vpack.c.b16 %v3137, %v3135
        %v3164 = vpack.c.b16 %v3138, %v3136
        %v3165 = vpack.c.b16 %v3141, %v3139
        %v3166 = vpack.c.b16 %v3142, %v3140
        %v3167 = vpack.c.b16 %v3145, %v3143
        %v3168 = vpack.c.b16 %v3146, %v3144
        %v3169 = vpack.c.b16 %v3149, %v3147
        %v3170 = vpack.c.b16 %v3150, %v3148
        %v3171 = vpack.c.b16 %v3153, %v3151
        %v3172 = vpack.c.b16 %v3154, %v3152
        %v3173 = vpack.c.b16 %v3157, %v3155
        %v3174 = vpack.c.b16 %v3158, %v3156
        %3191 = vmatprep.subr.bf16.mxu0 %v3160
        %3192 = vmatpush1.bf16.msra.mxu0 %v3159
        %3193 = vmatprep.subr.bf16.mxu0 %v3162
        %3194 = vmatpush1.bf16.msra.mxu0 %v3161
        %3195 = vmatprep.subr.bf16.mxu0 %v3164
        %3196 = vmatpush1.bf16.msra.mxu0 %v3163
        %3197 = vmatprep.subr.bf16.mxu0 %v3166
        %3198 = vmatpush1.bf16.msra.mxu0 %v3165
        %3199 = vmatprep.subr.bf16.mxu0 %v3168
        %3200 = vmatpush1.bf16.msra.mxu0 %v3167
        %3201 = vmatprep.subr.bf16.mxu0 %v3170
        %3202 = vmatpush1.bf16.msra.mxu0 %v3169
        %3203 = vmatprep.subr.bf16.mxu0 %v3172
        %3204 = vmatpush1.bf16.msra.mxu0 %v3171
        %3205 = vmatprep.subr.bf16.mxu0 %v3174
        %3206 = vmatpush1.bf16.msra.mxu0 %v3173
        %3207 = vmatprep.subr.bf16.mxu0 0
        %3208 = vmatpush1.bf16.msra.mxu0 0
        %3209 = vmatprep.subr.bf16.mxu0 0
        %3210 = vmatpush1.bf16.msra.mxu0 0
        %3211 = vmatprep.subr.bf16.mxu0 0
        %3212 = vmatpush1.bf16.msra.mxu0 0
        %3213 = vmatprep.subr.bf16.mxu0 0
        %3214 = vmatpush1.bf16.msra.mxu0 0
        %3215 = vmatprep.subr.bf16.mxu0 0
        %3216 = vmatpush1.bf16.msra.mxu0 0
        %3217 = vmatprep.subr.bf16.mxu0 0
        %3218 = vmatpush1.bf16.msra.mxu0 0
        %3219 = vmatprep.subr.bf16.mxu0 0
        %3220 = vmatpush1.bf16.msra.mxu0 0
        %3221 = vmatprep.subr.bf16.mxu0 0
        %3222 = vmatpush1.bf16.msra.mxu0 0
        %3223 = vmatprep.mubr.bf16.mxu0 0
        %3224 = vmatmul.mubr.bf16.gmra.mrb[0].mxu0 %v2533
        %v3225 = vpop.f32.mrb[0].mxu0
        %v3226 = vadd.f32 0.0, %v3225
        %v3227 = vpop.f32.mrb[0].mxu0
        %v3228 = vadd.f32 0.0, %v3227
        %v3229 = vpop.f32.mrb[0].mxu0
        %v3230 = vadd.f32 0.0, %v3229
        %v3231 = vpop.f32.mrb[0].mxu0
        %v3232 = vadd.f32 0.0, %v3231
        %3233 = vmatprep.mubr.bf16.mxu0 0
        %3234 = vmatmul.mubr.bf16.gmra.mrb[0].mxu0 %v2534
        %v3235 = vpop.f32.mrb[0].mxu0
        %v3236 = vadd.f32 0.0, %v3235
        %v3237 = vpop.f32.mrb[0].mxu0
        %v3238 = vadd.f32 0.0, %v3237
        %v3239 = vpop.f32.mrb[0].mxu0
        %v3240 = vadd.f32 0.0, %v3239
        %v3241 = vpop.f32.mrb[0].mxu0
        %v3242 = vadd.f32 0.0, %v3241
        %3243 = vmatprep.mubr.bf16.mxu0 0
        %3244 = vmatmul.mubr.bf16.gmra.mrb[0].mxu0 %v2535
        %v3245 = vpop.f32.mrb[0].mxu0
        %v3246 = vadd.f32 0.0, %v3245
        %v3247 = vpop.f32.mrb[0].mxu0
        %v3248 = vadd.f32 0.0, %v3247
        %v3249 = vpop.f32.mrb[0].mxu0
        %v3250 = vadd.f32 0.0, %v3249
        %v3251 = vpop.f32.mrb[0].mxu0
        %v3252 = vadd.f32 0.0, %v3251
        %3253 = vmatprep.mubr.bf16.mxu0 0
        %3254 = vmatmul.mubr.bf16.gmra.mrb[0].mxu0 %v2536
        %v3255 = vpop.f32.mrb[0].mxu0
        %v3256 = vadd.f32 0.0, %v3255
        %v3257 = vpop.f32.mrb[0].mxu0
        %v3258 = vadd.f32 0.0, %v3257
        %v3259 = vpop.f32.mrb[0].mxu0
        %v3260 = vadd.f32 0.0, %v3259
        %v3261 = vpop.f32.mrb[0].mxu0
        %v3262 = vadd.f32 0.0, %v3261
        %3263 = vdwg.mxu0
        %s3264 = scalar_lea.vmem [#allocation4], 384
        %3265 = vst [vmem:[%s3264] sm:$0xff] %v3226
        %3266 = vst [vmem:[%s3264 + $0x8] sm:$0xff] %v3228
        %3267 = vst [vmem:[%s3264 + $0x10] sm:$0xff] %v3230
        %3268 = vst [vmem:[%s3264 + $0x18] sm:$0xff] %v3232
        %3269 = vst [vmem:[%s3264 + $0x20] sm:$0xff] %v3236
        %3270 = vst [vmem:[%s3264 + $0x28] sm:$0xff] %v3238
        %3271 = vst [vmem:[%s3264 + $0x30] sm:$0xff] %v3240
        %3272 = vst [vmem:[%s3264 + $0x38] sm:$0xff] %v3242
        %3273 = vst [vmem:[%s3264 + $0x40] sm:$0xff] %v3246
        %3274 = vst [vmem:[%s3264 + $0x48] sm:$0xff] %v3248
        %3275 = vst [vmem:[%s3264 + $0x50] sm:$0xff] %v3250
        %3276 = vst [vmem:[%s3264 + $0x58] sm:$0xff] %v3252
        %3277 = vst [vmem:[%s3264 + $0x60] sm:$0xff] %v3256
        %3278 = vst [vmem:[%s3264 + $0x68] sm:$0xff] %v3258
        %3279 = vst [vmem:[%s3264 + $0x70] sm:$0xff] %v3260
        %3280 = vst [vmem:[%s3264 + $0x78] sm:$0xff] %v3262
        %s3281 = scalar_lea.vmem %s3, 256
        %v3282 = vld [vmem:[%s3281] sm:$0xff]
        %v3283 = vld [vmem:[%s3281 + $0x8] sm:$0xff]
        %v3284 = vld [vmem:[%s3281 + $0x10] sm:$0xff]
        %v3285 = vld [vmem:[%s3281 + $0x18] sm:$0xff]
        %v3286 = vld [vmem:[%s3281 + $0x20] sm:$0xff]
        %v3287 = vld [vmem:[%s3281 + $0x28] sm:$0xff]
        %v3288 = vld [vmem:[%s3281 + $0x30] sm:$0xff]
        %v3289 = vld [vmem:[%s3281 + $0x38] sm:$0xff]
        %v3290 = vld [vmem:[%s3281 + $0x40] sm:$0xff]
        %v3291 = vld [vmem:[%s3281 + $0x48] sm:$0xff]
        %v3292 = vld [vmem:[%s3281 + $0x50] sm:$0xff]
        %v3293 = vld [vmem:[%s3281 + $0x58] sm:$0xff]
        %v3294 = vld [vmem:[%s3281 + $0x60] sm:$0xff]
        %v3295 = vld [vmem:[%s3281 + $0x68] sm:$0xff]
        %v3296 = vld [vmem:[%s3281 + $0x70] sm:$0xff]
        %v3297 = vld [vmem:[%s3281 + $0x78] sm:$0xff]
        %v3314 = vunpack.c.l.b16 %v3282
        %v3315 = vunpack.c.h.b16 %v3282
        %v3316 = vunpack.c.l.b16 %v3283
        %v3317 = vunpack.c.h.b16 %v3283
        %v3318 = vunpack.c.l.b16 %v3284
        %v3319 = vunpack.c.h.b16 %v3284
        %v3320 = vunpack.c.l.b16 %v3285
        %v3321 = vunpack.c.h.b16 %v3285
        %v3322 = vunpack.c.l.b16 %v3286
        %v3323 = vunpack.c.h.b16 %v3286
        %v3324 = vunpack.c.l.b16 %v3287
        %v3325 = vunpack.c.h.b16 %v3287
        %v3326 = vunpack.c.l.b16 %v3288
        %v3327 = vunpack.c.h.b16 %v3288
        %v3328 = vunpack.c.l.b16 %v3289
        %v3329 = vunpack.c.h.b16 %v3289
        %v3330 = vunpack.c.l.b16 %v3290
        %v3331 = vunpack.c.h.b16 %v3290
        %v3332 = vunpack.c.l.b16 %v3291
        %v3333 = vunpack.c.h.b16 %v3291
        %v3334 = vunpack.c.l.b16 %v3292
        %v3335 = vunpack.c.h.b16 %v3292
        %v3336 = vunpack.c.l.b16 %v3293
        %v3337 = vunpack.c.h.b16 %v3293
        %v3338 = vunpack.c.l.b16 %v3294
        %v3339 = vunpack.c.h.b16 %v3294
        %v3340 = vunpack.c.l.b16 %v3295
        %v3341 = vunpack.c.h.b16 %v3295
        %v3342 = vunpack.c.l.b16 %v3296
        %v3343 = vunpack.c.h.b16 %v3296
        %v3344 = vunpack.c.l.b16 %v3297
        %v3345 = vunpack.c.h.b16 %v3297
        %v3346 = vpack.c.b16 %v3316, %v3314
        %v3347 = vpack.c.b16 %v3317, %v3315
        %v3348 = vpack.c.b16 %v3320, %v3318
        %v3349 = vpack.c.b16 %v3321, %v3319
        %v3350 = vpack.c.b16 %v3324, %v3322
        %v3351 = vpack.c.b16 %v3325, %v3323
        %v3352 = vpack.c.b16 %v3328, %v3326
        %v3353 = vpack.c.b16 %v3329, %v3327
        %v3354 = vpack.c.b16 %v3332, %v3330
        %v3355 = vpack.c.b16 %v3333, %v3331
        %v3356 = vpack.c.b16 %v3336, %v3334
        %v3357 = vpack.c.b16 %v3337, %v3335
        %v3358 = vpack.c.b16 %v3340, %v3338
        %v3359 = vpack.c.b16 %v3341, %v3339
        %v3360 = vpack.c.b16 %v3344, %v3342
        %v3361 = vpack.c.b16 %v3345, %v3343
        %3378 = vmatprep.subr.bf16.mxu0 %v3347
        %3379 = vmatpush1.bf16.msra.mxu0 %v3346
        %3380 = vmatprep.subr.bf16.mxu0 %v3349
        %3381 = vmatpush1.bf16.msra.mxu0 %v3348
        %3382 = vmatprep.subr.bf16.mxu0 %v3351
        %3383 = vmatpush1.bf16.msra.mxu0 %v3350
        %3384 = vmatprep.subr.bf16.mxu0 %v3353
        %3385 = vmatpush1.bf16.msra.mxu0 %v3352
        %3386 = vmatprep.subr.bf16.mxu0 %v3355
        %3387 = vmatpush1.bf16.msra.mxu0 %v3354
        %3388 = vmatprep.subr.bf16.mxu0 %v3357
        %3389 = vmatpush1.bf16.msra.mxu0 %v3356
        %3390 = vmatprep.subr.bf16.mxu0 %v3359
        %3391 = vmatpush1.bf16.msra.mxu0 %v3358
        %3392 = vmatprep.subr.bf16.mxu0 %v3361
        %3393 = vmatpush1.bf16.msra.mxu0 %v3360
        %3394 = vmatprep.subr.bf16.mxu0 0
        %3395 = vmatpush1.bf16.msra.mxu0 0
        %3396 = vmatprep.subr.bf16.mxu0 0
        %3397 = vmatpush1.bf16.msra.mxu0 0
        %3398 = vmatprep.subr.bf16.mxu0 0
        %3399 = vmatpush1.bf16.msra.mxu0 0
        %3400 = vmatprep.subr.bf16.mxu0 0
        %3401 = vmatpush1.bf16.msra.mxu0 0
        %3402 = vmatprep.subr.bf16.mxu0 0
        %3403 = vmatpush1.bf16.msra.mxu0 0
        %3404 = vmatprep.subr.bf16.mxu0 0
        %3405 = vmatpush1.bf16.msra.mxu0 0
        %3406 = vmatprep.subr.bf16.mxu0 0
        %3407 = vmatpush1.bf16.msra.mxu0 0
        %3408 = vmatprep.subr.bf16.mxu0 0
        %3409 = vmatpush1.bf16.msra.mxu0 0
        %3410 = vmatprep.mubr.bf16.mxu0 0
        %3411 = vmatmul.mubr.bf16.gmra.mrb[0].mxu0 %v2520
        %v3412 = vpop.f32.mrb[0].mxu0
        %v3413 = vadd.f32 0.0, %v3412
        %v3414 = vpop.f32.mrb[0].mxu0
        %v3415 = vadd.f32 0.0, %v3414
        %v3416 = vpop.f32.mrb[0].mxu0
        %v3417 = vadd.f32 0.0, %v3416
        %v3418 = vpop.f32.mrb[0].mxu0
        %v3419 = vadd.f32 0.0, %v3418
        %3420 = vmatprep.mubr.bf16.mxu0 0
        %3421 = vmatmul.mubr.bf16.gmra.mrb[0].mxu0 %v2521
        %v3422 = vpop.f32.mrb[0].mxu0
        %v3423 = vadd.f32 0.0, %v3422
        %v3424 = vpop.f32.mrb[0].mxu0
        %v3425 = vadd.f32 0.0, %v3424
        %v3426 = vpop.f32.mrb[0].mxu0
        %v3427 = vadd.f32 0.0, %v3426
        %v3428 = vpop.f32.mrb[0].mxu0
        %v3429 = vadd.f32 0.0, %v3428
        %3430 = vmatprep.mubr.bf16.mxu0 0
        %3431 = vmatmul.mubr.bf16.gmra.mrb[0].mxu0 %v2522
        %v3432 = vpop.f32.mrb[0].mxu0
        %v3433 = vadd.f32 0.0, %v3432
        %v3434 = vpop.f32.mrb[0].mxu0
        %v3435 = vadd.f32 0.0, %v3434
        %v3436 = vpop.f32.mrb[0].mxu0
        %v3437 = vadd.f32 0.0, %v3436
        %v3438 = vpop.f32.mrb[0].mxu0
        %v3439 = vadd.f32 0.0, %v3438
        %3440 = vmatprep.mubr.bf16.mxu0 0
        %3441 = vmatmul.mubr.bf16.gmra.mrb[0].mxu0 %v2523
        %v3442 = vpop.f32.mrb[0].mxu0
        %v3443 = vadd.f32 0.0, %v3442
        %v3444 = vpop.f32.mrb[0].mxu0
        %v3445 = vadd.f32 0.0, %v3444
        %v3446 = vpop.f32.mrb[0].mxu0
        %v3447 = vadd.f32 0.0, %v3446
        %v3448 = vpop.f32.mrb[0].mxu0
        %v3449 = vadd.f32 0.0, %v3448
        %3450 = vdwg.mxu0
        %s3451 = scalar_lea.vmem [#allocation4], 512
        %3452 = vst [vmem:[%s3451] sm:$0xff] %v3413
        %3453 = vst [vmem:[%s3451 + $0x8] sm:$0xff] %v3415
        %3454 = vst [vmem:[%s3451 + $0x10] sm:$0xff] %v3417
        %3455 = vst [vmem:[%s3451 + $0x18] sm:$0xff] %v3419
        %3456 = vst [vmem:[%s3451 + $0x20] sm:$0xff] %v3423
        %3457 = vst [vmem:[%s3451 + $0x28] sm:$0xff] %v3425
        %3458 = vst [vmem:[%s3451 + $0x30] sm:$0xff] %v3427
        %3459 = vst [vmem:[%s3451 + $0x38] sm:$0xff] %v3429
        %3460 = vst [vmem:[%s3451 + $0x40] sm:$0xff] %v3433
        %3461 = vst [vmem:[%s3451 + $0x48] sm:$0xff] %v3435
        %3462 = vst [vmem:[%s3451 + $0x50] sm:$0xff] %v3437
        %3463 = vst [vmem:[%s3451 + $0x58] sm:$0xff] %v3439
        %3464 = vst [vmem:[%s3451 + $0x60] sm:$0xff] %v3443
        %3465 = vst [vmem:[%s3451 + $0x68] sm:$0xff] %v3445
        %3466 = vst [vmem:[%s3451 + $0x70] sm:$0xff] %v3447
        %3467 = vst [vmem:[%s3451 + $0x78] sm:$0xff] %v3449
        %v3468 = vld [vmem:[%s3281] sm:$0xff]
        %v3469 = vld [vmem:[%s3281 + $0x8] sm:$0xff]
        %v3470 = vld [vmem:[%s3281 + $0x10] sm:$0xff]
        %v3471 = vld [vmem:[%s3281 + $0x18] sm:$0xff]
        %v3472 = vld [vmem:[%s3281 + $0x20] sm:$0xff]
        %v3473 = vld [vmem:[%s3281 + $0x28] sm:$0xff]
        %v3474 = vld [vmem:[%s3281 + $0x30] sm:$0xff]
        %v3475 = vld [vmem:[%s3281 + $0x38] sm:$0xff]
        %v3476 = vld [vmem:[%s3281 + $0x40] sm:$0xff]
        %v3477 = vld [vmem:[%s3281 + $0x48] sm:$0xff]
        %v3478 = vld [vmem:[%s3281 + $0x50] sm:$0xff]
        %v3479 = vld [vmem:[%s3281 + $0x58] sm:$0xff]
        %v3480 = vld [vmem:[%s3281 + $0x60] sm:$0xff]
        %v3481 = vld [vmem:[%s3281 + $0x68] sm:$0xff]
        %v3482 = vld [vmem:[%s3281 + $0x70] sm:$0xff]
        %v3483 = vld [vmem:[%s3281 + $0x78] sm:$0xff]
        %v3500 = vunpack.c.l.b16 %v3468
        %v3501 = vunpack.c.h.b16 %v3468
        %v3502 = vunpack.c.l.b16 %v3469
        %v3503 = vunpack.c.h.b16 %v3469
        %v3504 = vunpack.c.l.b16 %v3470
        %v3505 = vunpack.c.h.b16 %v3470
        %v3506 = vunpack.c.l.b16 %v3471
        %v3507 = vunpack.c.h.b16 %v3471
        %v3508 = vunpack.c.l.b16 %v3472
        %v3509 = vunpack.c.h.b16 %v3472
        %v3510 = vunpack.c.l.b16 %v3473
        %v3511 = vunpack.c.h.b16 %v3473
        %v3512 = vunpack.c.l.b16 %v3474
        %v3513 = vunpack.c.h.b16 %v3474
        %v3514 = vunpack.c.l.b16 %v3475
        %v3515 = vunpack.c.h.b16 %v3475
        %v3516 = vunpack.c.l.b16 %v3476
        %v3517 = vunpack.c.h.b16 %v3476
        %v3518 = vunpack.c.l.b16 %v3477
        %v3519 = vunpack.c.h.b16 %v3477
        %v3520 = vunpack.c.l.b16 %v3478
        %v3521 = vunpack.c.h.b16 %v3478
        %v3522 = vunpack.c.l.b16 %v3479
        %v3523 = vunpack.c.h.b16 %v3479
        %v3524 = vunpack.c.l.b16 %v3480
        %v3525 = vunpack.c.h.b16 %v3480
        %v3526 = vunpack.c.l.b16 %v3481
        %v3527 = vunpack.c.h.b16 %v3481
        %v3528 = vunpack.c.l.b16 %v3482
        %v3529 = vunpack.c.h.b16 %v3482
        %v3530 = vunpack.c.l.b16 %v3483
        %v3531 = vunpack.c.h.b16 %v3483
        %v3532 = vpack.c.b16 %v3502, %v3500
        %v3533 = vpack.c.b16 %v3503, %v3501
        %v3534 = vpack.c.b16 %v3506, %v3504
        %v3535 = vpack.c.b16 %v3507, %v3505
        %v3536 = vpack.c.b16 %v3510, %v3508
        %v3537 = vpack.c.b16 %v3511, %v3509
        %v3538 = vpack.c.b16 %v3514, %v3512
        %v3539 = vpack.c.b16 %v3515, %v3513
        %v3540 = vpack.c.b16 %v3518, %v3516
        %v3541 = vpack.c.b16 %v3519, %v3517
        %v3542 = vpack.c.b16 %v3522, %v3520
        %v3543 = vpack.c.b16 %v3523, %v3521
        %v3544 = vpack.c.b16 %v3526, %v3524
        %v3545 = vpack.c.b16 %v3527, %v3525
        %v3546 = vpack.c.b16 %v3530, %v3528
        %v3547 = vpack.c.b16 %v3531, %v3529
        %3564 = vmatprep.subr.bf16.mxu0 %v3533
        %3565 = vmatpush1.bf16.msra.mxu0 %v3532
        %3566 = vmatprep.subr.bf16.mxu0 %v3535
        %3567 = vmatpush1.bf16.msra.mxu0 %v3534
        %3568 = vmatprep.subr.bf16.mxu0 %v3537
        %3569 = vmatpush1.bf16.msra.mxu0 %v3536
        %3570 = vmatprep.subr.bf16.mxu0 %v3539
        %3571 = vmatpush1.bf16.msra.mxu0 %v3538
        %3572 = vmatprep.subr.bf16.mxu0 %v3541
        %3573 = vmatpush1.bf16.msra.mxu0 %v3540
        %3574 = vmatprep.subr.bf16.mxu0 %v3543
        %3575 = vmatpush1.bf16.msra.mxu0 %v3542
        %3576 = vmatprep.subr.bf16.mxu0 %v3545
        %3577 = vmatpush1.bf16.msra.mxu0 %v3544
        %3578 = vmatprep.subr.bf16.mxu0 %v3547
        %3579 = vmatpush1.bf16.msra.mxu0 %v3546
        %3580 = vmatprep.subr.bf16.mxu0 0
        %3581 = vmatpush1.bf16.msra.mxu0 0
        %3582 = vmatprep.subr.bf16.mxu0 0
        %3583 = vmatpush1.bf16.msra.mxu0 0
        %3584 = vmatprep.subr.bf16.mxu0 0
        %3585 = vmatpush1.bf16.msra.mxu0 0
        %3586 = vmatprep.subr.bf16.mxu0 0
        %3587 = vmatpush1.bf16.msra.mxu0 0
        %3588 = vmatprep.subr.bf16.mxu0 0
        %3589 = vmatpush1.bf16.msra.mxu0 0
        %3590 = vmatprep.subr.bf16.mxu0 0
        %3591 = vmatpush1.bf16.msra.mxu0 0
        %3592 = vmatprep.subr.bf16.mxu0 0
        %3593 = vmatpush1.bf16.msra.mxu0 0
        %3594 = vmatprep.subr.bf16.mxu0 0
        %3595 = vmatpush1.bf16.msra.mxu0 0
        %3596 = vmatprep.mubr.bf16.mxu0 0
        %3597 = vmatmul.mubr.bf16.gmra.mrb[0].mxu0 %v2533
        %v3598 = vpop.f32.mrb[0].mxu0
        %v3599 = vadd.f32 0.0, %v3598
        %v3600 = vpop.f32.mrb[0].mxu0
        %v3601 = vadd.f32 0.0, %v3600
        %v3602 = vpop.f32.mrb[0].mxu0
        %v3603 = vadd.f32 0.0, %v3602
        %v3604 = vpop.f32.mrb[0].mxu0
        %v3605 = vadd.f32 0.0, %v3604
        %3606 = vmatprep.mubr.bf16.mxu0 0
        %3607 = vmatmul.mubr.bf16.gmra.mrb[0].mxu0 %v2534
        %v3608 = vpop.f32.mrb[0].mxu0
        %v3609 = vadd.f32 0.0, %v3608
        %v3610 = vpop.f32.mrb[0].mxu0
        %v3611 = vadd.f32 0.0, %v3610
        %v3612 = vpop.f32.mrb[0].mxu0
        %v3613 = vadd.f32 0.0, %v3612
        %v3614 = vpop.f32.mrb[0].mxu0
        %v3615 = vadd.f32 0.0, %v3614
        %3616 = vmatprep.mubr.bf16.mxu0 0
        %3617 = vmatmul.mubr.bf16.gmra.mrb[0].mxu0 %v2535
        %v3618 = vpop.f32.mrb[0].mxu0
        %v3619 = vadd.f32 0.0, %v3618
        %v3620 = vpop.f32.mrb[0].mxu0
        %v3621 = vadd.f32 0.0, %v3620
        %v3622 = vpop.f32.mrb[0].mxu0
        %v3623 = vadd.f32 0.0, %v3622
        %v3624 = vpop.f32.mrb[0].mxu0
        %v3625 = vadd.f32 0.0, %v3624
        %3626 = vmatprep.mubr.bf16.mxu0 0
        %3627 = vmatmul.mubr.bf16.gmra.mrb[0].mxu0 %v2536
        %v3628 = vpop.f32.mrb[0].mxu0
        %v3629 = vadd.f32 0.0, %v3628
        %v3630 = vpop.f32.mrb[0].mxu0
        %v3631 = vadd.f32 0.0, %v3630
        %v3632 = vpop.f32.mrb[0].mxu0
        %v3633 = vadd.f32 0.0, %v3632
        %v3634 = vpop.f32.mrb[0].mxu0
        %v3635 = vadd.f32 0.0, %v3634
        %3636 = vdwg.mxu0
        %s3637 = scalar_lea.vmem [#allocation4], 640
        %3638 = vst [vmem:[%s3637] sm:$0xff] %v3599
        %3639 = vst [vmem:[%s3637 + $0x8] sm:$0xff] %v3601
        %3640 = vst [vmem:[%s3637 + $0x10] sm:$0xff] %v3603
        %3641 = vst [vmem:[%s3637 + $0x18] sm:$0xff] %v3605
        %3642 = vst [vmem:[%s3637 + $0x20] sm:$0xff] %v3609
        %3643 = vst [vmem:[%s3637 + $0x28] sm:$0xff] %v3611
        %3644 = vst [vmem:[%s3637 + $0x30] sm:$0xff] %v3613
        %3645 = vst [vmem:[%s3637 + $0x38] sm:$0xff] %v3615
        %3646 = vst [vmem:[%s3637 + $0x40] sm:$0xff] %v3619
        %3647 = vst [vmem:[%s3637 + $0x48] sm:$0xff] %v3621
        %3648 = vst [vmem:[%s3637 + $0x50] sm:$0xff] %v3623
        %3649 = vst [vmem:[%s3637 + $0x58] sm:$0xff] %v3625
        %3650 = vst [vmem:[%s3637 + $0x60] sm:$0xff] %v3629
        %3651 = vst [vmem:[%s3637 + $0x68] sm:$0xff] %v3631
        %3652 = vst [vmem:[%s3637 + $0x70] sm:$0xff] %v3633
        %3653 = vst [vmem:[%s3637 + $0x78] sm:$0xff] %v3635
        %s3654 = scalar_lea.vmem %s3, 384
        %v3655 = vld [vmem:[%s3654] sm:$0xff]
        %v3656 = vld [vmem:[%s3654 + $0x8] sm:$0xff]
        %v3657 = vld [vmem:[%s3654 + $0x10] sm:$0xff]
        %v3658 = vld [vmem:[%s3654 + $0x18] sm:$0xff]
        %v3659 = vld [vmem:[%s3654 + $0x20] sm:$0xff]
        %v3660 = vld [vmem:[%s3654 + $0x28] sm:$0xff]
        %v3661 = vld [vmem:[%s3654 + $0x30] sm:$0xff]
        %v3662 = vld [vmem:[%s3654 + $0x38] sm:$0xff]
        %v3663 = vld [vmem:[%s3654 + $0x40] sm:$0xff]
        %v3664 = vld [vmem:[%s3654 + $0x48] sm:$0xff]
        %v3665 = vld [vmem:[%s3654 + $0x50] sm:$0xff]
        %v3666 = vld [vmem:[%s3654 + $0x58] sm:$0xff]
        %v3667 = vld [vmem:[%s3654 + $0x60] sm:$0xff]
        %v3668 = vld [vmem:[%s3654 + $0x68] sm:$0xff]
        %v3669 = vld [vmem:[%s3654 + $0x70] sm:$0xff]
        %v3670 = vld [vmem:[%s3654 + $0x78] sm:$0xff]
        %v3687 = vunpack.c.l.b16 %v3655
        %v3688 = vunpack.c.h.b16 %v3655
        %v3689 = vunpack.c.l.b16 %v3656
        %v3690 = vunpack.c.h.b16 %v3656
        %v3691 = vunpack.c.l.b16 %v3657
        %v3692 = vunpack.c.h.b16 %v3657
        %v3693 = vunpack.c.l.b16 %v3658
        %v3694 = vunpack.c.h.b16 %v3658
        %v3695 = vunpack.c.l.b16 %v3659
        %v3696 = vunpack.c.h.b16 %v3659
        %v3697 = vunpack.c.l.b16 %v3660
        %v3698 = vunpack.c.h.b16 %v3660
        %v3699 = vunpack.c.l.b16 %v3661
        %v3700 = vunpack.c.h.b16 %v3661
        %v3701 = vunpack.c.l.b16 %v3662
        %v3702 = vunpack.c.h.b16 %v3662
        %v3703 = vunpack.c.l.b16 %v3663
        %v3704 = vunpack.c.h.b16 %v3663
        %v3705 = vunpack.c.l.b16 %v3664
        %v3706 = vunpack.c.h.b16 %v3664
        %v3707 = vunpack.c.l.b16 %v3665
        %v3708 = vunpack.c.h.b16 %v3665
        %v3709 = vunpack.c.l.b16 %v3666
        %v3710 = vunpack.c.h.b16 %v3666
        %v3711 = vunpack.c.l.b16 %v3667
        %v3712 = vunpack.c.h.b16 %v3667
        %v3713 = vunpack.c.l.b16 %v3668
        %v3714 = vunpack.c.h.b16 %v3668
        %v3715 = vunpack.c.l.b16 %v3669
        %v3716 = vunpack.c.h.b16 %v3669
        %v3717 = vunpack.c.l.b16 %v3670
        %v3718 = vunpack.c.h.b16 %v3670
        %v3719 = vpack.c.b16 %v3689, %v3687
        %v3720 = vpack.c.b16 %v3690, %v3688
        %v3721 = vpack.c.b16 %v3693, %v3691
        %v3722 = vpack.c.b16 %v3694, %v3692
        %v3723 = vpack.c.b16 %v3697, %v3695
        %v3724 = vpack.c.b16 %v3698, %v3696
        %v3725 = vpack.c.b16 %v3701, %v3699
        %v3726 = vpack.c.b16 %v3702, %v3700
        %v3727 = vpack.c.b16 %v3705, %v3703
        %v3728 = vpack.c.b16 %v3706, %v3704
        %v3729 = vpack.c.b16 %v3709, %v3707
        %v3730 = vpack.c.b16 %v3710, %v3708
        %v3731 = vpack.c.b16 %v3713, %v3711
        %v3732 = vpack.c.b16 %v3714, %v3712
        %v3733 = vpack.c.b16 %v3717, %v3715
        %v3734 = vpack.c.b16 %v3718, %v3716
        %3751 = vmatprep.subr.bf16.mxu0 %v3720
        %3752 = vmatpush1.bf16.msra.mxu0 %v3719
        %3753 = vmatprep.subr.bf16.mxu0 %v3722
        %3754 = vmatpush1.bf16.msra.mxu0 %v3721
        %3755 = vmatprep.subr.bf16.mxu0 %v3724
        %3756 = vmatpush1.bf16.msra.mxu0 %v3723
        %3757 = vmatprep.subr.bf16.mxu0 %v3726
        %3758 = vmatpush1.bf16.msra.mxu0 %v3725
        %3759 = vmatprep.subr.bf16.mxu0 %v3728
        %3760 = vmatpush1.bf16.msra.mxu0 %v3727
        %3761 = vmatprep.subr.bf16.mxu0 %v3730
        %3762 = vmatpush1.bf16.msra.mxu0 %v3729
        %3763 = vmatprep.subr.bf16.mxu0 %v3732
        %3764 = vmatpush1.bf16.msra.mxu0 %v3731
        %3765 = vmatprep.subr.bf16.mxu0 %v3734
        %3766 = vmatpush1.bf16.msra.mxu0 %v3733
        %3767 = vmatprep.subr.bf16.mxu0 0
        %3768 = vmatpush1.bf16.msra.mxu0 0
        %3769 = vmatprep.subr.bf16.mxu0 0
        %3770 = vmatpush1.bf16.msra.mxu0 0
        %3771 = vmatprep.subr.bf16.mxu0 0
        %3772 = vmatpush1.bf16.msra.mxu0 0
        %3773 = vmatprep.subr.bf16.mxu0 0
        %3774 = vmatpush1.bf16.msra.mxu0 0
        %3775 = vmatprep.subr.bf16.mxu0 0
        %3776 = vmatpush1.bf16.msra.mxu0 0
        %3777 = vmatprep.subr.bf16.mxu0 0
        %3778 = vmatpush1.bf16.msra.mxu0 0
        %3779 = vmatprep.subr.bf16.mxu0 0
        %3780 = vmatpush1.bf16.msra.mxu0 0
        %3781 = vmatprep.subr.bf16.mxu0 0
        %3782 = vmatpush1.bf16.msra.mxu0 0
        %3783 = vmatprep.mubr.bf16.mxu0 0
        %3784 = vmatmul.mubr.bf16.gmra.mrb[0].mxu0 %v2520
        %v3785 = vpop.f32.mrb[0].mxu0
        %v3786 = vadd.f32 0.0, %v3785
        %v3787 = vpop.f32.mrb[0].mxu0
        %v3788 = vadd.f32 0.0, %v3787
        %v3789 = vpop.f32.mrb[0].mxu0
        %v3790 = vadd.f32 0.0, %v3789
        %v3791 = vpop.f32.mrb[0].mxu0
        %v3792 = vadd.f32 0.0, %v3791
        %3793 = vmatprep.mubr.bf16.mxu0 0
        %3794 = vmatmul.mubr.bf16.gmra.mrb[0].mxu0 %v2521
        %v3795 = vpop.f32.mrb[0].mxu0
        %v3796 = vadd.f32 0.0, %v3795
        %v3797 = vpop.f32.mrb[0].mxu0
        %v3798 = vadd.f32 0.0, %v3797
        %v3799 = vpop.f32.mrb[0].mxu0
        %v3800 = vadd.f32 0.0, %v3799
        %v3801 = vpop.f32.mrb[0].mxu0
        %v3802 = vadd.f32 0.0, %v3801
        %3803 = vmatprep.mubr.bf16.mxu0 0
        %3804 = vmatmul.mubr.bf16.gmra.mrb[0].mxu0 %v2522
        %v3805 = vpop.f32.mrb[0].mxu0
        %v3806 = vadd.f32 0.0, %v3805
        %v3807 = vpop.f32.mrb[0].mxu0
        %v3808 = vadd.f32 0.0, %v3807
        %v3809 = vpop.f32.mrb[0].mxu0
        %v3810 = vadd.f32 0.0, %v3809
        %v3811 = vpop.f32.mrb[0].mxu0
        %v3812 = vadd.f32 0.0, %v3811
        %3813 = vmatprep.mubr.bf16.mxu0 0
        %3814 = vmatmul.mubr.bf16.gmra.mrb[0].mxu0 %v2523
        %v3815 = vpop.f32.mrb[0].mxu0
        %v3816 = vadd.f32 0.0, %v3815
        %v3817 = vpop.f32.mrb[0].mxu0
        %v3818 = vadd.f32 0.0, %v3817
        %v3819 = vpop.f32.mrb[0].mxu0
        %v3820 = vadd.f32 0.0, %v3819
        %v3821 = vpop.f32.mrb[0].mxu0
        %v3822 = vadd.f32 0.0, %v3821
        %3823 = vdwg.mxu0
        %s3824 = scalar_lea.vmem [#allocation4], 768
        %3825 = vst [vmem:[%s3824] sm:$0xff] %v3786
        %3826 = vst [vmem:[%s3824 + $0x8] sm:$0xff] %v3788
        %3827 = vst [vmem:[%s3824 + $0x10] sm:$0xff] %v3790
        %3828 = vst [vmem:[%s3824 + $0x18] sm:$0xff] %v3792
        %3829 = vst [vmem:[%s3824 + $0x20] sm:$0xff] %v3796
        %3830 = vst [vmem:[%s3824 + $0x28] sm:$0xff] %v3798
        %3831 = vst [vmem:[%s3824 + $0x30] sm:$0xff] %v3800
        %3832 = vst [vmem:[%s3824 + $0x38] sm:$0xff] %v3802
        %3833 = vst [vmem:[%s3824 + $0x40] sm:$0xff] %v3806
        %3834 = vst [vmem:[%s3824 + $0x48] sm:$0xff] %v3808
        %3835 = vst [vmem:[%s3824 + $0x50] sm:$0xff] %v3810
        %3836 = vst [vmem:[%s3824 + $0x58] sm:$0xff] %v3812
        %3837 = vst [vmem:[%s3824 + $0x60] sm:$0xff] %v3816
        %3838 = vst [vmem:[%s3824 + $0x68] sm:$0xff] %v3818
        %3839 = vst [vmem:[%s3824 + $0x70] sm:$0xff] %v3820
        %3840 = vst [vmem:[%s3824 + $0x78] sm:$0xff] %v3822
        %v3841 = vld [vmem:[%s3654] sm:$0xff]
        %v3842 = vld [vmem:[%s3654 + $0x8] sm:$0xff]
        %v3843 = vld [vmem:[%s3654 + $0x10] sm:$0xff]
        %v3844 = vld [vmem:[%s3654 + $0x18] sm:$0xff]
        %v3845 = vld [vmem:[%s3654 + $0x20] sm:$0xff]
        %v3846 = vld [vmem:[%s3654 + $0x28] sm:$0xff]
        %v3847 = vld [vmem:[%s3654 + $0x30] sm:$0xff]
        %v3848 = vld [vmem:[%s3654 + $0x38] sm:$0xff]
        %v3849 = vld [vmem:[%s3654 + $0x40] sm:$0xff]
        %v3850 = vld [vmem:[%s3654 + $0x48] sm:$0xff]
        %v3851 = vld [vmem:[%s3654 + $0x50] sm:$0xff]
        %v3852 = vld [vmem:[%s3654 + $0x58] sm:$0xff]
        %v3853 = vld [vmem:[%s3654 + $0x60] sm:$0xff]
        %v3854 = vld [vmem:[%s3654 + $0x68] sm:$0xff]
        %v3855 = vld [vmem:[%s3654 + $0x70] sm:$0xff]
        %v3856 = vld [vmem:[%s3654 + $0x78] sm:$0xff]
        %v3873 = vunpack.c.l.b16 %v3841
        %v3874 = vunpack.c.h.b16 %v3841
        %v3875 = vunpack.c.l.b16 %v3842
        %v3876 = vunpack.c.h.b16 %v3842
        %v3877 = vunpack.c.l.b16 %v3843
        %v3878 = vunpack.c.h.b16 %v3843
        %v3879 = vunpack.c.l.b16 %v3844
        %v3880 = vunpack.c.h.b16 %v3844
        %v3881 = vunpack.c.l.b16 %v3845
        %v3882 = vunpack.c.h.b16 %v3845
        %v3883 = vunpack.c.l.b16 %v3846
        %v3884 = vunpack.c.h.b16 %v3846
        %v3885 = vunpack.c.l.b16 %v3847
        %v3886 = vunpack.c.h.b16 %v3847
        %v3887 = vunpack.c.l.b16 %v3848
        %v3888 = vunpack.c.h.b16 %v3848
        %v3889 = vunpack.c.l.b16 %v3849
        %v3890 = vunpack.c.h.b16 %v3849
        %v3891 = vunpack.c.l.b16 %v3850
        %v3892 = vunpack.c.h.b16 %v3850
        %v3893 = vunpack.c.l.b16 %v3851
        %v3894 = vunpack.c.h.b16 %v3851
        %v3895 = vunpack.c.l.b16 %v3852
        %v3896 = vunpack.c.h.b16 %v3852
        %v3897 = vunpack.c.l.b16 %v3853
        %v3898 = vunpack.c.h.b16 %v3853
        %v3899 = vunpack.c.l.b16 %v3854
        %v3900 = vunpack.c.h.b16 %v3854
        %v3901 = vunpack.c.l.b16 %v3855
        %v3902 = vunpack.c.h.b16 %v3855
        %v3903 = vunpack.c.l.b16 %v3856
        %v3904 = vunpack.c.h.b16 %v3856
        %v3905 = vpack.c.b16 %v3875, %v3873
        %v3906 = vpack.c.b16 %v3876, %v3874
        %v3907 = vpack.c.b16 %v3879, %v3877
        %v3908 = vpack.c.b16 %v3880, %v3878
        %v3909 = vpack.c.b16 %v3883, %v3881
        %v3910 = vpack.c.b16 %v3884, %v3882
        %v3911 = vpack.c.b16 %v3887, %v3885
        %v3912 = vpack.c.b16 %v3888, %v3886
        %v3913 = vpack.c.b16 %v3891, %v3889
        %v3914 = vpack.c.b16 %v3892, %v3890
        %v3915 = vpack.c.b16 %v3895, %v3893
        %v3916 = vpack.c.b16 %v3896, %v3894
        %v3917 = vpack.c.b16 %v3899, %v3897
        %v3918 = vpack.c.b16 %v3900, %v3898
        %v3919 = vpack.c.b16 %v3903, %v3901
        %v3920 = vpack.c.b16 %v3904, %v3902
        %3937 = vmatprep.subr.bf16.mxu0 %v3906
        %3938 = vmatpush1.bf16.msra.mxu0 %v3905
        %3939 = vmatprep.subr.bf16.mxu0 %v3908
        %3940 = vmatpush1.bf16.msra.mxu0 %v3907
        %3941 = vmatprep.subr.bf16.mxu0 %v3910
        %3942 = vmatpush1.bf16.msra.mxu0 %v3909
        %3943 = vmatprep.subr.bf16.mxu0 %v3912
        %3944 = vmatpush1.bf16.msra.mxu0 %v3911
        %3945 = vmatprep.subr.bf16.mxu0 %v3914
        %3946 = vmatpush1.bf16.msra.mxu0 %v3913
        %3947 = vmatprep.subr.bf16.mxu0 %v3916
        %3948 = vmatpush1.bf16.msra.mxu0 %v3915
        %3949 = vmatprep.subr.bf16.mxu0 %v3918
        %3950 = vmatpush1.bf16.msra.mxu0 %v3917
        %3951 = vmatprep.subr.bf16.mxu0 %v3920
        %3952 = vmatpush1.bf16.msra.mxu0 %v3919
        %3953 = vmatprep.subr.bf16.mxu0 0
        %3954 = vmatpush1.bf16.msra.mxu0 0
        %3955 = vmatprep.subr.bf16.mxu0 0
        %3956 = vmatpush1.bf16.msra.mxu0 0
        %3957 = vmatprep.subr.bf16.mxu0 0
        %3958 = vmatpush1.bf16.msra.mxu0 0
        %3959 = vmatprep.subr.bf16.mxu0 0
        %3960 = vmatpush1.bf16.msra.mxu0 0
        %3961 = vmatprep.subr.bf16.mxu0 0
        %3962 = vmatpush1.bf16.msra.mxu0 0
        %3963 = vmatprep.subr.bf16.mxu0 0
        %3964 = vmatpush1.bf16.msra.mxu0 0
        %3965 = vmatprep.subr.bf16.mxu0 0
        %3966 = vmatpush1.bf16.msra.mxu0 0
        %3967 = vmatprep.subr.bf16.mxu0 0
        %3968 = vmatpush1.bf16.msra.mxu0 0
        %3969 = vmatprep.mubr.bf16.mxu0 0
        %3970 = vmatmul.mubr.bf16.gmra.mrb[0].mxu0 %v2533
        %v3971 = vpop.f32.mrb[0].mxu0
        %v3972 = vadd.f32 0.0, %v3971
        %v3973 = vpop.f32.mrb[0].mxu0
        %v3974 = vadd.f32 0.0, %v3973
        %v3975 = vpop.f32.mrb[0].mxu0
        %v3976 = vadd.f32 0.0, %v3975
        %v3977 = vpop.f32.mrb[0].mxu0
        %v3978 = vadd.f32 0.0, %v3977
        %3979 = vmatprep.mubr.bf16.mxu0 0
        %3980 = vmatmul.mubr.bf16.gmra.mrb[0].mxu0 %v2534
        %v3981 = vpop.f32.mrb[0].mxu0
        %v3982 = vadd.f32 0.0, %v3981
        %v3983 = vpop.f32.mrb[0].mxu0
        %v3984 = vadd.f32 0.0, %v3983
        %v3985 = vpop.f32.mrb[0].mxu0
        %v3986 = vadd.f32 0.0, %v3985
        %v3987 = vpop.f32.mrb[0].mxu0
        %v3988 = vadd.f32 0.0, %v3987
        %3989 = vmatprep.mubr.bf16.mxu0 0
        %3990 = vmatmul.mubr.bf16.gmra.mrb[0].mxu0 %v2535
        %v3991 = vpop.f32.mrb[0].mxu0
        %v3992 = vadd.f32 0.0, %v3991
        %v3993 = vpop.f32.mrb[0].mxu0
        %v3994 = vadd.f32 0.0, %v3993
        %v3995 = vpop.f32.mrb[0].mxu0
        %v3996 = vadd.f32 0.0, %v3995
        %v3997 = vpop.f32.mrb[0].mxu0
        %v3998 = vadd.f32 0.0, %v3997
        %3999 = vmatprep.mubr.bf16.mxu0 0
        %4000 = vmatmul.mubr.bf16.gmra.mrb[0].mxu0 %v2536
        %v4001 = vpop.f32.mrb[0].mxu0
        %v4002 = vadd.f32 0.0, %v4001
        %v4003 = vpop.f32.mrb[0].mxu0
        %v4004 = vadd.f32 0.0, %v4003
        %v4005 = vpop.f32.mrb[0].mxu0
        %v4006 = vadd.f32 0.0, %v4005
        %v4007 = vpop.f32.mrb[0].mxu0
        %v4008 = vadd.f32 0.0, %v4007
        %4009 = vdwg.mxu0
        %s4010 = scalar_lea.vmem [#allocation4], 896
        %4011 = vst [vmem:[%s4010] sm:$0xff] %v3972
        %4012 = vst [vmem:[%s4010 + $0x8] sm:$0xff] %v3974
        %4013 = vst [vmem:[%s4010 + $0x10] sm:$0xff] %v3976
        %4014 = vst [vmem:[%s4010 + $0x18] sm:$0xff] %v3978
        %4015 = vst [vmem:[%s4010 + $0x20] sm:$0xff] %v3982
        %4016 = vst [vmem:[%s4010 + $0x28] sm:$0xff] %v3984
        %4017 = vst [vmem:[%s4010 + $0x30] sm:$0xff] %v3986
        %4018 = vst [vmem:[%s4010 + $0x38] sm:$0xff] %v3988
        %4019 = vst [vmem:[%s4010 + $0x40] sm:$0xff] %v3992
        %4020 = vst [vmem:[%s4010 + $0x48] sm:$0xff] %v3994
        %4021 = vst [vmem:[%s4010 + $0x50] sm:$0xff] %v3996
        %4022 = vst [vmem:[%s4010 + $0x58] sm:$0xff] %v3998
        %4023 = vst [vmem:[%s4010 + $0x60] sm:$0xff] %v4002
        %4024 = vst [vmem:[%s4010 + $0x68] sm:$0xff] %v4004
        %4025 = vst [vmem:[%s4010 + $0x70] sm:$0xff] %v4006
        %4026 = vst [vmem:[%s4010 + $0x78] sm:$0xff] %v4008
        %s4027 = scalar_lea.vmem %s3, 512
        %v4028 = vld [vmem:[%s4027] sm:$0xff]
        %v4029 = vld [vmem:[%s4027 + $0x8] sm:$0xff]
        %v4030 = vld [vmem:[%s4027 + $0x10] sm:$0xff]
        %v4031 = vld [vmem:[%s4027 + $0x18] sm:$0xff]
        %v4032 = vld [vmem:[%s4027 + $0x20] sm:$0xff]
        %v4033 = vld [vmem:[%s4027 + $0x28] sm:$0xff]
        %v4034 = vld [vmem:[%s4027 + $0x30] sm:$0xff]
        %v4035 = vld [vmem:[%s4027 + $0x38] sm:$0xff]
        %v4036 = vld [vmem:[%s4027 + $0x40] sm:$0xff]
        %v4037 = vld [vmem:[%s4027 + $0x48] sm:$0xff]
        %v4038 = vld [vmem:[%s4027 + $0x50] sm:$0xff]
        %v4039 = vld [vmem:[%s4027 + $0x58] sm:$0xff]
        %v4040 = vld [vmem:[%s4027 + $0x60] sm:$0xff]
        %v4041 = vld [vmem:[%s4027 + $0x68] sm:$0xff]
        %v4042 = vld [vmem:[%s4027 + $0x70] sm:$0xff]
        %v4043 = vld [vmem:[%s4027 + $0x78] sm:$0xff]
        %v4060 = vunpack.c.l.b16 %v4028
        %v4061 = vunpack.c.h.b16 %v4028
        %v4062 = vunpack.c.l.b16 %v4029
        %v4063 = vunpack.c.h.b16 %v4029
        %v4064 = vunpack.c.l.b16 %v4030
        %v4065 = vunpack.c.h.b16 %v4030
        %v4066 = vunpack.c.l.b16 %v4031
        %v4067 = vunpack.c.h.b16 %v4031
        %v4068 = vunpack.c.l.b16 %v4032
        %v4069 = vunpack.c.h.b16 %v4032
        %v4070 = vunpack.c.l.b16 %v4033
        %v4071 = vunpack.c.h.b16 %v4033
        %v4072 = vunpack.c.l.b16 %v4034
        %v4073 = vunpack.c.h.b16 %v4034
        %v4074 = vunpack.c.l.b16 %v4035
        %v4075 = vunpack.c.h.b16 %v4035
        %v4076 = vunpack.c.l.b16 %v4036
        %v4077 = vunpack.c.h.b16 %v4036
        %v4078 = vunpack.c.l.b16 %v4037
        %v4079 = vunpack.c.h.b16 %v4037
        %v4080 = vunpack.c.l.b16 %v4038
        %v4081 = vunpack.c.h.b16 %v4038
        %v4082 = vunpack.c.l.b16 %v4039
        %v4083 = vunpack.c.h.b16 %v4039
        %v4084 = vunpack.c.l.b16 %v4040
        %v4085 = vunpack.c.h.b16 %v4040
        %v4086 = vunpack.c.l.b16 %v4041
        %v4087 = vunpack.c.h.b16 %v4041
        %v4088 = vunpack.c.l.b16 %v4042
        %v4089 = vunpack.c.h.b16 %v4042
        %v4090 = vunpack.c.l.b16 %v4043
        %v4091 = vunpack.c.h.b16 %v4043
        %v4092 = vpack.c.b16 %v4062, %v4060
        %v4093 = vpack.c.b16 %v4063, %v4061
        %v4094 = vpack.c.b16 %v4066, %v4064
        %v4095 = vpack.c.b16 %v4067, %v4065
        %v4096 = vpack.c.b16 %v4070, %v4068
        %v4097 = vpack.c.b16 %v4071, %v4069
        %v4098 = vpack.c.b16 %v4074, %v4072
        %v4099 = vpack.c.b16 %v4075, %v4073
        %v4100 = vpack.c.b16 %v4078, %v4076
        %v4101 = vpack.c.b16 %v4079, %v4077
        %v4102 = vpack.c.b16 %v4082, %v4080
        %v4103 = vpack.c.b16 %v4083, %v4081
        %v4104 = vpack.c.b16 %v4086, %v4084
        %v4105 = vpack.c.b16 %v4087, %v4085
        %v4106 = vpack.c.b16 %v4090, %v4088
        %v4107 = vpack.c.b16 %v4091, %v4089
        %4124 = vmatprep.subr.bf16.mxu0 %v4093
        %4125 = vmatpush1.bf16.msra.mxu0 %v4092
        %4126 = vmatprep.subr.bf16.mxu0 %v4095
        %4127 = vmatpush1.bf16.msra.mxu0 %v4094
        %4128 = vmatprep.subr.bf16.mxu0 %v4097
        %4129 = vmatpush1.bf16.msra.mxu0 %v4096
        %4130 = vmatprep.subr.bf16.mxu0 %v4099
        %4131 = vmatpush1.bf16.msra.mxu0 %v4098
        %4132 = vmatprep.subr.bf16.mxu0 %v4101
        %4133 = vmatpush1.bf16.msra.mxu0 %v4100
        %4134 = vmatprep.subr.bf16.mxu0 %v4103
        %4135 = vmatpush1.bf16.msra.mxu0 %v4102
        %4136 = vmatprep.subr.bf16.mxu0 %v4105
        %4137 = vmatpush1.bf16.msra.mxu0 %v4104
        %4138 = vmatprep.subr.bf16.mxu0 %v4107
        %4139 = vmatpush1.bf16.msra.mxu0 %v4106
        %4140 = vmatprep.subr.bf16.mxu0 0
        %4141 = vmatpush1.bf16.msra.mxu0 0
        %4142 = vmatprep.subr.bf16.mxu0 0
        %4143 = vmatpush1.bf16.msra.mxu0 0
        %4144 = vmatprep.subr.bf16.mxu0 0
        %4145 = vmatpush1.bf16.msra.mxu0 0
        %4146 = vmatprep.subr.bf16.mxu0 0
        %4147 = vmatpush1.bf16.msra.mxu0 0
        %4148 = vmatprep.subr.bf16.mxu0 0
        %4149 = vmatpush1.bf16.msra.mxu0 0
        %4150 = vmatprep.subr.bf16.mxu0 0
        %4151 = vmatpush1.bf16.msra.mxu0 0
        %4152 = vmatprep.subr.bf16.mxu0 0
        %4153 = vmatpush1.bf16.msra.mxu0 0
        %4154 = vmatprep.subr.bf16.mxu0 0
        %4155 = vmatpush1.bf16.msra.mxu0 0
        %4156 = vmatprep.mubr.bf16.mxu0 0
        %4157 = vmatmul.mubr.bf16.gmra.mrb[0].mxu0 %v2520
        %v4158 = vpop.f32.mrb[0].mxu0
        %v4159 = vadd.f32 0.0, %v4158
        %v4160 = vpop.f32.mrb[0].mxu0
        %v4161 = vadd.f32 0.0, %v4160
        %v4162 = vpop.f32.mrb[0].mxu0
        %v4163 = vadd.f32 0.0, %v4162
        %v4164 = vpop.f32.mrb[0].mxu0
        %v4165 = vadd.f32 0.0, %v4164
        %4166 = vmatprep.mubr.bf16.mxu0 0
        %4167 = vmatmul.mubr.bf16.gmra.mrb[0].mxu0 %v2521
        %v4168 = vpop.f32.mrb[0].mxu0
        %v4169 = vadd.f32 0.0, %v4168
        %v4170 = vpop.f32.mrb[0].mxu0
        %v4171 = vadd.f32 0.0, %v4170
        %v4172 = vpop.f32.mrb[0].mxu0
        %v4173 = vadd.f32 0.0, %v4172
        %v4174 = vpop.f32.mrb[0].mxu0
        %v4175 = vadd.f32 0.0, %v4174
        %4176 = vmatprep.mubr.bf16.mxu0 0
        %4177 = vmatmul.mubr.bf16.gmra.mrb[0].mxu0 %v2522
        %v4178 = vpop.f32.mrb[0].mxu0
        %v4179 = vadd.f32 0.0, %v4178
        %v4180 = vpop.f32.mrb[0].mxu0
        %v4181 = vadd.f32 0.0, %v4180
        %v4182 = vpop.f32.mrb[0].mxu0
        %v4183 = vadd.f32 0.0, %v4182
        %v4184 = vpop.f32.mrb[0].mxu0
        %v4185 = vadd.f32 0.0, %v4184
        %4186 = vmatprep.mubr.bf16.mxu0 0
        %4187 = vmatmul.mubr.bf16.gmra.mrb[0].mxu0 %v2523
        %v4188 = vpop.f32.mrb[0].mxu0
        %v4189 = vadd.f32 0.0, %v4188
        %v4190 = vpop.f32.mrb[0].mxu0
        %v4191 = vadd.f32 0.0, %v4190
        %v4192 = vpop.f32.mrb[0].mxu0
        %v4193 = vadd.f32 0.0, %v4192
        %v4194 = vpop.f32.mrb[0].mxu0
        %v4195 = vadd.f32 0.0, %v4194
        %4196 = vdwg.mxu0
        %s4197 = scalar_lea.vmem [#allocation4], 1024
        %4198 = vst [vmem:[%s4197] sm:$0xff] %v4159
        %4199 = vst [vmem:[%s4197 + $0x8] sm:$0xff] %v4161
        %4200 = vst [vmem:[%s4197 + $0x10] sm:$0xff] %v4163
        %4201 = vst [vmem:[%s4197 + $0x18] sm:$0xff] %v4165
        %4202 = vst [vmem:[%s4197 + $0x20] sm:$0xff] %v4169
        %4203 = vst [vmem:[%s4197 + $0x28] sm:$0xff] %v4171
        %4204 = vst [vmem:[%s4197 + $0x30] sm:$0xff] %v4173
        %4205 = vst [vmem:[%s4197 + $0x38] sm:$0xff] %v4175
        %4206 = vst [vmem:[%s4197 + $0x40] sm:$0xff] %v4179
        %4207 = vst [vmem:[%s4197 + $0x48] sm:$0xff] %v4181
        %4208 = vst [vmem:[%s4197 + $0x50] sm:$0xff] %v4183
        %4209 = vst [vmem:[%s4197 + $0x58] sm:$0xff] %v4185
        %4210 = vst [vmem:[%s4197 + $0x60] sm:$0xff] %v4189
        %4211 = vst [vmem:[%s4197 + $0x68] sm:$0xff] %v4191
        %4212 = vst [vmem:[%s4197 + $0x70] sm:$0xff] %v4193
        %4213 = vst [vmem:[%s4197 + $0x78] sm:$0xff] %v4195
        %v4214 = vld [vmem:[%s4027] sm:$0xff]
        %v4215 = vld [vmem:[%s4027 + $0x8] sm:$0xff]
        %v4216 = vld [vmem:[%s4027 + $0x10] sm:$0xff]
        %v4217 = vld [vmem:[%s4027 + $0x18] sm:$0xff]
        %v4218 = vld [vmem:[%s4027 + $0x20] sm:$0xff]
        %v4219 = vld [vmem:[%s4027 + $0x28] sm:$0xff]
        %v4220 = vld [vmem:[%s4027 + $0x30] sm:$0xff]
        %v4221 = vld [vmem:[%s4027 + $0x38] sm:$0xff]
        %v4222 = vld [vmem:[%s4027 + $0x40] sm:$0xff]
        %v4223 = vld [vmem:[%s4027 + $0x48] sm:$0xff]
        %v4224 = vld [vmem:[%s4027 + $0x50] sm:$0xff]
        %v4225 = vld [vmem:[%s4027 + $0x58] sm:$0xff]
        %v4226 = vld [vmem:[%s4027 + $0x60] sm:$0xff]
        %v4227 = vld [vmem:[%s4027 + $0x68] sm:$0xff]
        %v4228 = vld [vmem:[%s4027 + $0x70] sm:$0xff]
        %v4229 = vld [vmem:[%s4027 + $0x78] sm:$0xff]
        %v4246 = vunpack.c.l.b16 %v4214
        %v4247 = vunpack.c.h.b16 %v4214
        %v4248 = vunpack.c.l.b16 %v4215
        %v4249 = vunpack.c.h.b16 %v4215
        %v4250 = vunpack.c.l.b16 %v4216
        %v4251 = vunpack.c.h.b16 %v4216
        %v4252 = vunpack.c.l.b16 %v4217
        %v4253 = vunpack.c.h.b16 %v4217
        %v4254 = vunpack.c.l.b16 %v4218
        %v4255 = vunpack.c.h.b16 %v4218
        %v4256 = vunpack.c.l.b16 %v4219
        %v4257 = vunpack.c.h.b16 %v4219
        %v4258 = vunpack.c.l.b16 %v4220
        %v4259 = vunpack.c.h.b16 %v4220
        %v4260 = vunpack.c.l.b16 %v4221
        %v4261 = vunpack.c.h.b16 %v4221
        %v4262 = vunpack.c.l.b16 %v4222
        %v4263 = vunpack.c.h.b16 %v4222
        %v4264 = vunpack.c.l.b16 %v4223
        %v4265 = vunpack.c.h.b16 %v4223
        %v4266 = vunpack.c.l.b16 %v4224
        %v4267 = vunpack.c.h.b16 %v4224
        %v4268 = vunpack.c.l.b16 %v4225
        %v4269 = vunpack.c.h.b16 %v4225
        %v4270 = vunpack.c.l.b16 %v4226
        %v4271 = vunpack.c.h.b16 %v4226
        %v4272 = vunpack.c.l.b16 %v4227
        %v4273 = vunpack.c.h.b16 %v4227
        %v4274 = vunpack.c.l.b16 %v4228
        %v4275 = vunpack.c.h.b16 %v4228
        %v4276 = vunpack.c.l.b16 %v4229
        %v4277 = vunpack.c.h.b16 %v4229
        %v4278 = vpack.c.b16 %v4248, %v4246
        %v4279 = vpack.c.b16 %v4249, %v4247
        %v4280 = vpack.c.b16 %v4252, %v4250
        %v4281 = vpack.c.b16 %v4253, %v4251
        %v4282 = vpack.c.b16 %v4256, %v4254
        %v4283 = vpack.c.b16 %v4257, %v4255
        %v4284 = vpack.c.b16 %v4260, %v4258
        %v4285 = vpack.c.b16 %v4261, %v4259
        %v4286 = vpack.c.b16 %v4264, %v4262
        %v4287 = vpack.c.b16 %v4265, %v4263
        %v4288 = vpack.c.b16 %v4268, %v4266
        %v4289 = vpack.c.b16 %v4269, %v4267
        %v4290 = vpack.c.b16 %v4272, %v4270
        %v4291 = vpack.c.b16 %v4273, %v4271
        %v4292 = vpack.c.b16 %v4276, %v4274
        %v4293 = vpack.c.b16 %v4277, %v4275
        %4310 = vmatprep.subr.bf16.mxu0 %v4279
        %4311 = vmatpush1.bf16.msra.mxu0 %v4278
        %4312 = vmatprep.subr.bf16.mxu0 %v4281
        %4313 = vmatpush1.bf16.msra.mxu0 %v4280
        %4314 = vmatprep.subr.bf16.mxu0 %v4283
        %4315 = vmatpush1.bf16.msra.mxu0 %v4282
        %4316 = vmatprep.subr.bf16.mxu0 %v4285
        %4317 = vmatpush1.bf16.msra.mxu0 %v4284
        %4318 = vmatprep.subr.bf16.mxu0 %v4287
        %4319 = vmatpush1.bf16.msra.mxu0 %v4286
        %4320 = vmatprep.subr.bf16.mxu0 %v4289
        %4321 = vmatpush1.bf16.msra.mxu0 %v4288
        %4322 = vmatprep.subr.bf16.mxu0 %v4291
        %4323 = vmatpush1.bf16.msra.mxu0 %v4290
        %4324 = vmatprep.subr.bf16.mxu0 %v4293
        %4325 = vmatpush1.bf16.msra.mxu0 %v4292
        %4326 = vmatprep.subr.bf16.mxu0 0
        %4327 = vmatpush1.bf16.msra.mxu0 0
        %4328 = vmatprep.subr.bf16.mxu0 0
        %4329 = vmatpush1.bf16.msra.mxu0 0
        %4330 = vmatprep.subr.bf16.mxu0 0
        %4331 = vmatpush1.bf16.msra.mxu0 0
        %4332 = vmatprep.subr.bf16.mxu0 0
        %4333 = vmatpush1.bf16.msra.mxu0 0
        %4334 = vmatprep.subr.bf16.mxu0 0
        %4335 = vmatpush1.bf16.msra.mxu0 0
        %4336 = vmatprep.subr.bf16.mxu0 0
        %4337 = vmatpush1.bf16.msra.mxu0 0
        %4338 = vmatprep.subr.bf16.mxu0 0
        %4339 = vmatpush1.bf16.msra.mxu0 0
        %4340 = vmatprep.subr.bf16.mxu0 0
        %4341 = vmatpush1.bf16.msra.mxu0 0
        %4342 = vmatprep.mubr.bf16.mxu0 0
        %4343 = vmatmul.mubr.bf16.gmra.mrb[0].mxu0 %v2533
        %v4344 = vpop.f32.mrb[0].mxu0
        %v4345 = vadd.f32 0.0, %v4344
        %v4346 = vpop.f32.mrb[0].mxu0
        %v4347 = vadd.f32 0.0, %v4346
        %v4348 = vpop.f32.mrb[0].mxu0
        %v4349 = vadd.f32 0.0, %v4348
        %v4350 = vpop.f32.mrb[0].mxu0
        %v4351 = vadd.f32 0.0, %v4350
        %4352 = vmatprep.mubr.bf16.mxu0 0
        %4353 = vmatmul.mubr.bf16.gmra.mrb[0].mxu0 %v2534
        %v4354 = vpop.f32.mrb[0].mxu0
        %v4355 = vadd.f32 0.0, %v4354
        %v4356 = vpop.f32.mrb[0].mxu0
        %v4357 = vadd.f32 0.0, %v4356
        %v4358 = vpop.f32.mrb[0].mxu0
        %v4359 = vadd.f32 0.0, %v4358
        %v4360 = vpop.f32.mrb[0].mxu0
        %v4361 = vadd.f32 0.0, %v4360
        %4362 = vmatprep.mubr.bf16.mxu0 0
        %4363 = vmatmul.mubr.bf16.gmra.mrb[0].mxu0 %v2535
        %v4364 = vpop.f32.mrb[0].mxu0
        %v4365 = vadd.f32 0.0, %v4364
        %v4366 = vpop.f32.mrb[0].mxu0
        %v4367 = vadd.f32 0.0, %v4366
        %v4368 = vpop.f32.mrb[0].mxu0
        %v4369 = vadd.f32 0.0, %v4368
        %v4370 = vpop.f32.mrb[0].mxu0
        %v4371 = vadd.f32 0.0, %v4370
        %4372 = vmatprep.mubr.bf16.mxu0 0
        %4373 = vmatmul.mubr.bf16.gmra.mrb[0].mxu0 %v2536
        %v4374 = vpop.f32.mrb[0].mxu0
        %v4375 = vadd.f32 0.0, %v4374
        %v4376 = vpop.f32.mrb[0].mxu0
        %v4377 = vadd.f32 0.0, %v4376
        %v4378 = vpop.f32.mrb[0].mxu0
        %v4379 = vadd.f32 0.0, %v4378
        %v4380 = vpop.f32.mrb[0].mxu0
        %v4381 = vadd.f32 0.0, %v4380
        %4382 = vdwg.mxu0
        %s4383 = scalar_lea.vmem [#allocation4], 1152
        %4384 = vst [vmem:[%s4383] sm:$0xff] %v4345
        %4385 = vst [vmem:[%s4383 + $0x8] sm:$0xff] %v4347
        %4386 = vst [vmem:[%s4383 + $0x10] sm:$0xff] %v4349
        %4387 = vst [vmem:[%s4383 + $0x18] sm:$0xff] %v4351
        %4388 = vst [vmem:[%s4383 + $0x20] sm:$0xff] %v4355
        %4389 = vst [vmem:[%s4383 + $0x28] sm:$0xff] %v4357
        %4390 = vst [vmem:[%s4383 + $0x30] sm:$0xff] %v4359
        %4391 = vst [vmem:[%s4383 + $0x38] sm:$0xff] %v4361
        %4392 = vst [vmem:[%s4383 + $0x40] sm:$0xff] %v4365
        %4393 = vst [vmem:[%s4383 + $0x48] sm:$0xff] %v4367
        %4394 = vst [vmem:[%s4383 + $0x50] sm:$0xff] %v4369
        %4395 = vst [vmem:[%s4383 + $0x58] sm:$0xff] %v4371
        %4396 = vst [vmem:[%s4383 + $0x60] sm:$0xff] %v4375
        %4397 = vst [vmem:[%s4383 + $0x68] sm:$0xff] %v4377
        %4398 = vst [vmem:[%s4383 + $0x70] sm:$0xff] %v4379
        %4399 = vst [vmem:[%s4383 + $0x78] sm:$0xff] %v4381
        %v4400 = vld [vmem:[%s4] sm:$0x3]
        loop: start=0, step=1, limit=8
        $region72: #{net_forward.1} parent=63 // loop_pre_header
          _
        $region73: #{net_forward.1} parent=63 // loop_header
          %s4402 = sphi 0, %s4406
          %p4403 = scmp.ge.s32.totalorder %s4402, 8
        $region74: #{net_forward.1} parent=63 // loop_header_branch
          %4405 = sbr.rel (%p4403) target = $region78
        $region75: #{net_forward.1} parent=63 // loop_body
          %s4407 = smul.u32 %s4402, 8
          %s4408 = sshra.s32 %s4407, 3
          %s4409 = sand.u32 %s4407, 7
          %s4410 = smul.u32 %s4408, 2
          %s4411 = smul.addr %s4410, 8
          %s4412 = scalar_lea.vmem [#allocation4], %s4411
          %v4413 = vld [vmem:[%s4412] sm:$0xff]
          %v4414 = vld [vmem:[%s4412 + $0x8] sm:$0xff]
          %s4415 = sadd.s32 %s4410, 16
          %s4416 = smul.addr %s4415, 8
          %s4417 = scalar_lea.vmem [#allocation4], %s4416
          %v4418 = vld [vmem:[%s4417] sm:$0xff]
          %v4419 = vld [vmem:[%s4417 + $0x8] sm:$0xff]
          %v4420 = vadd.f32 %v4413, 0.0
          %v4421 = vadd.f32 %v4414, 0.0
          %v4422 = vadd.f32 %v4418, 0.0
          %v4423 = vadd.f32 %v4419, 0.0
          %s4424 = sadd.s32 %s4410, 32
          %s4425 = smul.addr %s4424, 8
          %s4426 = scalar_lea.vmem [#allocation4], %s4425
          %v4427 = vld [vmem:[%s4426] sm:$0xff]
          %v4428 = vld [vmem:[%s4426 + $0x8] sm:$0xff]
          %s4429 = sadd.s32 %s4415, 32
          %s4430 = smul.addr %s4429, 8
          %s4431 = scalar_lea.vmem [#allocation4], %s4430
          %v4432 = vld [vmem:[%s4431] sm:$0xff]
          %v4433 = vld [vmem:[%s4431 + $0x8] sm:$0xff]
          %v4434 = vadd.f32 %v4420, %v4432
          %v4435 = vadd.f32 %v4421, %v4433
          %v4438 = vrot.slane %v4427, 1
          %v4439 = vrot.slane %v4428, 1
          %v4442 = vadd.f32 %v4422, %v4438
          %v4443 = vadd.f32 %v4423, %v4439
          %s4444 = sadd.s32 %s4410, 64
          %s4445 = smul.addr %s4444, 8
          %s4446 = scalar_lea.vmem [#allocation4], %s4445
          %v4447 = vld [vmem:[%s4446] sm:$0xff]
          %v4448 = vld [vmem:[%s4446 + $0x8] sm:$0xff]
          %s4449 = sadd.s32 %s4415, 64
          %s4450 = smul.addr %s4449, 8
          %s4451 = scalar_lea.vmem [#allocation4], %s4450
          %v4452 = vld [vmem:[%s4451] sm:$0xff]
          %v4453 = vld [vmem:[%s4451 + $0x8] sm:$0xff]
          %v4456 = vrot.slane %v4447, 1
          %v4457 = vrot.slane %v4448, 1
          %v4460 = vadd.f32 %v4434, %v4456
          %v4461 = vadd.f32 %v4435, %v4457
          %v4464 = vrot.slane %v4452, 1
          %v4465 = vrot.slane %v4453, 1
          %v4468 = vadd.f32 %v4442, %v4464
          %v4469 = vadd.f32 %v4443, %v4465
          %s4470 = sadd.s32 %s4410, 96
          %s4471 = smul.addr %s4470, 8
          %s4472 = scalar_lea.vmem [#allocation4], %s4471
          %v4473 = vld [vmem:[%s4472] sm:$0xff]
          %v4474 = vld [vmem:[%s4472 + $0x8] sm:$0xff]
          %s4475 = sadd.s32 %s4415, 96
          %s4476 = smul.addr %s4475, 8
          %s4477 = scalar_lea.vmem [#allocation4], %s4476
          %v4478 = vld [vmem:[%s4477] sm:$0xff]
          %v4479 = vld [vmem:[%s4477 + $0x8] sm:$0xff]
          %v4482 = vrot.slane %v4478, 1
          %v4483 = vrot.slane %v4479, 1
          %v4486 = vadd.f32 %v4460, %v4482
          %v4487 = vadd.f32 %v4461, %v4483
          %v4490 = vrot.slane %v4473, 2
          %v4491 = vrot.slane %v4474, 2
          %v4494 = vadd.f32 %v4468, %v4490
          %v4495 = vadd.f32 %v4469, %v4491
          %s4496 = sadd.s32 %s4410, 128
          %s4497 = smul.addr %s4496, 8
          %s4498 = scalar_lea.vmem [#allocation4], %s4497
          %v4499 = vld [vmem:[%s4498] sm:$0xff]
          %v4500 = vld [vmem:[%s4498 + $0x8] sm:$0xff]
          %s4501 = sadd.s32 %s4415, 128
          %s4502 = smul.addr %s4501, 8
          %s4503 = scalar_lea.vmem [#allocation4], %s4502
          %v4504 = vld [vmem:[%s4503] sm:$0xff]
          %v4505 = vld [vmem:[%s4503 + $0x8] sm:$0xff]
          %v4508 = vrot.slane %v4499, 2
          %v4509 = vrot.slane %v4500, 2
          %v4512 = vadd.f32 %v4486, %v4508
          %v4513 = vadd.f32 %v4487, %v4509
          %v4516 = vrot.slane %v4504, 2
          %v4517 = vrot.slane %v4505, 2
          %v4520 = vadd.f32 %v4494, %v4516
          %v4521 = vadd.f32 %v4495, %v4517
          %v4523 = vlaneseq
          %v4524 = vshrl.u32 %v4523, 7
          %v4525 = vsub.s32 0, %v4524
          %v4526 = vrot.slane %v4400, %v4525
          %v4527 = vlaneseq
          %v4528 = vshrl.u32 %v4527, 7
          %v4529 = vsub.s32 1, %v4528
          %v4530 = vrot.slane %v4400, %v4529
          %v4533 = vadd.f32 %v4512, %v4526
          %v4534 = vadd.f32 %v4513, %v4530
          %v4535 = vmax.f32 %v4533, 0.0
          %v4536 = vmax.f32 %v4534, 0.0
          %v4537 = vadd.f32 %v4520, %v4526
          %v4538 = vadd.f32 %v4521, %v4530
          %v4539 = vmax.f32 %v4537, 0.0
          %v4540 = vmax.f32 %v4538, 0.0
          %v4541 = vmax.f32 %v4535, %v4539
          %v4542 = vmax.f32 %v4536, %v4540
          %v4543 = vmax.f32 %v4541, %v4542
          %s4544 = scalar_lea.vmem [#allocation5], %s4407
          %4545 = vst [vmem:[%s4544] sm:$0x1f] %v4543
        $region76: #{net_forward.1} parent=63 // loop_footer
          %s4406 = sadd.s32 1, %s4402
        $region77: #{net_forward.1} parent=63 // loop_footer_branch
          %4401 = sbr.rel target = $region73
        $region78: #{net_forward.1} parent=63 // loop_exit
          _
        %v4546 = vld [vmem:[#allocation5] sm:$0xff]
        %v4547 = vld [vmem:[#allocation5 + $0x8] sm:$0xff]
        %v4548 = vld [vmem:[#allocation5 + $0x10] sm:$0xff]
        %v4549 = vld [vmem:[#allocation5 + $0x18] sm:$0xff]
        %v4550 = vld [vmem:[#allocation5 + $0x20] sm:$0xff]
        %v4551 = vld [vmem:[#allocation5 + $0x28] sm:$0xff]
        %v4552 = vld [vmem:[#allocation5 + $0x30] sm:$0xff]
        %v4553 = vld [vmem:[#allocation5 + $0x38] sm:$0xff]
        %v4554 = vpack.c.bf16 %v4546, %v4546
        %v4555 = vpack.c.bf16 %v4547, %v4547
        %v4556 = vpack.c.bf16 %v4548, %v4548
        %v4557 = vpack.c.bf16 %v4549, %v4549
        %v4558 = vpack.c.bf16 %v4550, %v4550
        %v4559 = vpack.c.bf16 %v4551, %v4551
        %v4560 = vpack.c.bf16 %v4552, %v4552
        %v4561 = vpack.c.bf16 %v4553, %v4553
        %v4562 = vld [vmem:[%s5] sm:$0xf]
        %v4563 = vld [vmem:[%s5 + $0x4] sm:$0xf]
        %v4564 = vld [vmem:[%s5 + $0x8] sm:$0xf]
        %v4565 = vld [vmem:[%s5 + $0xc] sm:$0xf]
        %v4566 = vld [vmem:[%s5 + $0x10] sm:$0xf]
        %v4567 = vld [vmem:[%s5 + $0x14] sm:$0xf]
        %v4568 = vld [vmem:[%s5 + $0x18] sm:$0xf]
        %v4569 = vld [vmem:[%s5 + $0x1c] sm:$0xf]
        %v4570 = vld [vmem:[%s5 + $0x20] sm:$0xf]
        %v4571 = vld [vmem:[%s5 + $0x24] sm:$0xf]
        %v4572 = vld [vmem:[%s5 + $0x28] sm:$0xf]
        %v4573 = vld [vmem:[%s5 + $0x2c] sm:$0xf]
        %v4574 = vld [vmem:[%s5 + $0x30] sm:$0xf]
        %v4575 = vld [vmem:[%s5 + $0x34] sm:$0xf]
        %v4576 = vld [vmem:[%s5 + $0x38] sm:$0xf]
        %v4577 = vld [vmem:[%s5 + $0x3c] sm:$0xf]
        %s4578 = scalar_lea.vmem %s5, 64
        %v4579 = vld [vmem:[%s4578] sm:$0xf]
        %v4580 = vld [vmem:[%s4578 + $0x4] sm:$0xf]
        %v4581 = vld [vmem:[%s4578 + $0x8] sm:$0xf]
        %v4582 = vld [vmem:[%s4578 + $0xc] sm:$0xf]
        %v4583 = vld [vmem:[%s4578 + $0x10] sm:$0xf]
        %v4584 = vld [vmem:[%s4578 + $0x14] sm:$0xf]
        %v4585 = vld [vmem:[%s4578 + $0x18] sm:$0xf]
        %v4586 = vld [vmem:[%s4578 + $0x1c] sm:$0xf]
        %v4587 = vld [vmem:[%s4578 + $0x20] sm:$0xf]
        %v4588 = vld [vmem:[%s4578 + $0x24] sm:$0xf]
        %v4589 = vld [vmem:[%s4578 + $0x28] sm:$0xf]
        %v4590 = vld [vmem:[%s4578 + $0x2c] sm:$0xf]
        %v4591 = vld [vmem:[%s4578 + $0x30] sm:$0xf]
        %v4592 = vld [vmem:[%s4578 + $0x34] sm:$0xf]
        %v4593 = vld [vmem:[%s4578 + $0x38] sm:$0xf]
        %v4594 = vld [vmem:[%s4578 + $0x3c] sm:$0xf]
        %v4603 = vunpack.c.l.b16 %v4554
        %v4604 = vunpack.c.l.b16 %v4555
        %v4605 = vunpack.c.l.b16 %v4556
        %v4606 = vunpack.c.l.b16 %v4557
        %v4607 = vunpack.c.l.b16 %v4558
        %v4608 = vunpack.c.l.b16 %v4559
        %v4609 = vunpack.c.l.b16 %v4560
        %v4610 = vunpack.c.l.b16 %v4561
        %v4611 = vrot.slane %v4603, 1
        %vm4612 = vcmask 1041409
        %v4613 = vsel %vm4612, %v4604, %v4611
        %v4614 = vrot.slane %v4605, 7
        %vm4615 = vcmask 1042434
        %v4616 = vsel %vm4615, %v4614, %v4613
        %v4617 = vrot.slane %v4606, 6
        %vm4618 = vcmask 1043459
        %v4619 = vsel %vm4618, %v4617, %v4616
        %v4620 = vrot.slane %v4607, 5
        %vm4621 = vcmask 1044484
        %v4622 = vsel %vm4621, %v4620, %v4619
        %v4623 = vrot.slane %v4608, 4
        %vm4624 = vcmask 1045509
        %v4625 = vsel %vm4624, %v4623, %v4622
        %v4626 = vrot.slane %v4609, 3
        %vm4627 = vcmask 1046534
        %v4628 = vsel %vm4627, %v4626, %v4625
        %v4629 = vrot.slane %v4610, 2
        %vm4630 = vcmask 1047559
        %v4631 = vsel %vm4630, %v4629, %v4628
        %v4632 = vpack.c.b16 %v4631, %v4631
        %v4650 = vunpack.c.l.b16 %v4579
        %v4651 = vunpack.c.l.b16 %v4580
        %v4652 = vunpack.c.l.b16 %v4581
        %v4653 = vunpack.c.l.b16 %v4582
        %v4654 = vunpack.c.l.b16 %v4583
        %v4655 = vunpack.c.l.b16 %v4584
        %v4656 = vunpack.c.l.b16 %v4585
        %v4657 = vunpack.c.l.b16 %v4586
        %v4658 = vunpack.c.l.b16 %v4587
        %v4659 = vunpack.c.l.b16 %v4588
        %v4660 = vunpack.c.l.b16 %v4589
        %v4661 = vunpack.c.l.b16 %v4590
        %v4662 = vunpack.c.l.b16 %v4591
        %v4663 = vunpack.c.l.b16 %v4592
        %v4664 = vunpack.c.l.b16 %v4593
        %v4665 = vunpack.c.l.b16 %v4594
        %v4666 = vpack.c.b16 %v4651, %v4650
        %v4667 = vpack.c.b16 %v4653, %v4652
        %v4668 = vpack.c.b16 %v4655, %v4654
        %v4669 = vpack.c.b16 %v4657, %v4656
        %v4670 = vpack.c.b16 %v4659, %v4658
        %v4671 = vpack.c.b16 %v4661, %v4660
        %v4672 = vpack.c.b16 %v4663, %v4662
        %v4673 = vpack.c.b16 %v4665, %v4664
        %4682 = vmatprep.subr.bf16.mxu0 0
        %4683 = vmatpush1.bf16.msra.mxu0 %v4666
        %4684 = vmatprep.subr.bf16.mxu0 0
        %4685 = vmatpush1.bf16.msra.mxu0 %v4667
        %4686 = vmatprep.subr.bf16.mxu0 0
        %4687 = vmatpush1.bf16.msra.mxu0 %v4668
        %4688 = vmatprep.subr.bf16.mxu0 0
        %4689 = vmatpush1.bf16.msra.mxu0 %v4669
        %4690 = vmatprep.subr.bf16.mxu0 0
        %4691 = vmatpush1.bf16.msra.mxu0 %v4670
        %4692 = vmatprep.subr.bf16.mxu0 0
        %4693 = vmatpush1.bf16.msra.mxu0 %v4671
        %4694 = vmatprep.subr.bf16.mxu0 0
        %4695 = vmatpush1.bf16.msra.mxu0 %v4672
        %4696 = vmatprep.subr.bf16.mxu0 0
        %4697 = vmatpush1.bf16.msra.mxu0 %v4673
        %4698 = vmatprep.subr.bf16.mxu0 0
        %4699 = vmatpush1.bf16.msra.mxu0 0
        %4700 = vmatprep.subr.bf16.mxu0 0
        %4701 = vmatpush1.bf16.msra.mxu0 0
        %4702 = vmatprep.subr.bf16.mxu0 0
        %4703 = vmatpush1.bf16.msra.mxu0 0
        %4704 = vmatprep.subr.bf16.mxu0 0
        %4705 = vmatpush1.bf16.msra.mxu0 0
        %4706 = vmatprep.subr.bf16.mxu0 0
        %4707 = vmatpush1.bf16.msra.mxu0 0
        %4708 = vmatprep.subr.bf16.mxu0 0
        %4709 = vmatpush1.bf16.msra.mxu0 0
        %4710 = vmatprep.subr.bf16.mxu0 0
        %4711 = vmatpush1.bf16.msra.mxu0 0
        %4712 = vmatprep.subr.bf16.mxu0 0
        %4713 = vmatpush1.bf16.msra.mxu0 0
        %4714 = vmatprep.mubr.bf16.mxu0 0
        %4715 = vmatmul.mubr.bf16.gmra.mrb[0].mxu0 %v4632
        %v4716 = vpop.f32.mrb[0].mxu0
        %v4717 = vadd.f32 0.0, %v4716
        %v4718 = vpop.f32.mrb[0].mxu0
        %v4719 = vpop.f32.mrb[0].mxu0
        %v4720 = vpop.f32.mrb[0].mxu0
        %4721 = vdwg.mxu0
        %v4722 = vrot.slane %v4604, 7
        %v4723 = vsel %vm4612, %v4722, %v4603
        %v4724 = vrot.slane %v4605, 6
        %v4725 = vsel %vm4615, %v4724, %v4723
        %v4726 = vrot.slane %v4606, 5
        %v4727 = vsel %vm4618, %v4726, %v4725
        %v4728 = vrot.slane %v4607, 4
        %v4729 = vsel %vm4621, %v4728, %v4727
        %v4730 = vrot.slane %v4608, 3
        %v4731 = vsel %vm4624, %v4730, %v4729
        %v4732 = vrot.slane %v4609, 2
        %v4733 = vsel %vm4627, %v4732, %v4731
        %v4734 = vrot.slane %v4610, 1
        %v4735 = vsel %vm4630, %v4734, %v4733
        %v4736 = vpack.c.b16 %v4735, %v4735
        %v4754 = vunpack.c.l.b16 %v4562
        %v4755 = vunpack.c.l.b16 %v4563
        %v4756 = vunpack.c.l.b16 %v4564
        %v4757 = vunpack.c.l.b16 %v4565
        %v4758 = vunpack.c.l.b16 %v4566
        %v4759 = vunpack.c.l.b16 %v4567
        %v4760 = vunpack.c.l.b16 %v4568
        %v4761 = vunpack.c.l.b16 %v4569
        %v4762 = vunpack.c.l.b16 %v4570
        %v4763 = vunpack.c.l.b16 %v4571
        %v4764 = vunpack.c.l.b16 %v4572
        %v4765 = vunpack.c.l.b16 %v4573
        %v4766 = vunpack.c.l.b16 %v4574
        %v4767 = vunpack.c.l.b16 %v4575
        %v4768 = vunpack.c.l.b16 %v4576
        %v4769 = vunpack.c.l.b16 %v4577
        %v4770 = vpack.c.b16 %v4755, %v4754
        %v4771 = vpack.c.b16 %v4757, %v4756
        %v4772 = vpack.c.b16 %v4759, %v4758
        %v4773 = vpack.c.b16 %v4761, %v4760
        %v4774 = vpack.c.b16 %v4763, %v4762
        %v4775 = vpack.c.b16 %v4765, %v4764
        %v4776 = vpack.c.b16 %v4767, %v4766
        %v4777 = vpack.c.b16 %v4769, %v4768
        %4786 = vmatprep.subr.bf16.mxu0 0
        %4787 = vmatpush1.bf16.msra.mxu0 %v4770
        %4788 = vmatprep.subr.bf16.mxu0 0
        %4789 = vmatpush1.bf16.msra.mxu0 %v4771
        %4790 = vmatprep.subr.bf16.mxu0 0
        %4791 = vmatpush1.bf16.msra.mxu0 %v4772
        %4792 = vmatprep.subr.bf16.mxu0 0
        %4793 = vmatpush1.bf16.msra.mxu0 %v4773
        %4794 = vmatprep.subr.bf16.mxu0 0
        %4795 = vmatpush1.bf16.msra.mxu0 %v4774
        %4796 = vmatprep.subr.bf16.mxu0 0
        %4797 = vmatpush1.bf16.msra.mxu0 %v4775
        %4798 = vmatprep.subr.bf16.mxu0 0
        %4799 = vmatpush1.bf16.msra.mxu0 %v4776
        %4800 = vmatprep.subr.bf16.mxu0 0
        %4801 = vmatpush1.bf16.msra.mxu0 %v4777
        %4802 = vmatprep.subr.bf16.mxu0 0
        %4803 = vmatpush1.bf16.msra.mxu0 0
        %4804 = vmatprep.subr.bf16.mxu0 0
        %4805 = vmatpush1.bf16.msra.mxu0 0
        %4806 = vmatprep.subr.bf16.mxu0 0
        %4807 = vmatpush1.bf16.msra.mxu0 0
        %4808 = vmatprep.subr.bf16.mxu0 0
        %4809 = vmatpush1.bf16.msra.mxu0 0
        %4810 = vmatprep.subr.bf16.mxu0 0
        %4811 = vmatpush1.bf16.msra.mxu0 0
        %4812 = vmatprep.subr.bf16.mxu0 0
        %4813 = vmatpush1.bf16.msra.mxu0 0
        %4814 = vmatprep.subr.bf16.mxu0 0
        %4815 = vmatpush1.bf16.msra.mxu0 0
        %4816 = vmatprep.subr.bf16.mxu0 0
        %4817 = vmatpush1.bf16.msra.mxu0 0
        %4818 = vmatprep.mubr.bf16.mxu0 0
        %4819 = vmatmul.mubr.bf16.gmra.mrb[0].mxu0 %v4736
        %v4820 = vpop.f32.mrb[0].mxu0
        %v4821 = vadd.f32 %v4717, %v4820
        %v4822 = vpop.f32.mrb[0].mxu0
        %v4823 = vpop.f32.mrb[0].mxu0
        %v4824 = vpop.f32.mrb[0].mxu0
        %4825 = vdwg.mxu0
        %s4826 = scalar_lea.vmem %s5, 128
        %v4827 = vld [vmem:[%s4826] sm:$0xf]
        %v4828 = vld [vmem:[%s4826 + $0x4] sm:$0xf]
        %v4829 = vld [vmem:[%s4826 + $0x8] sm:$0xf]
        %v4830 = vld [vmem:[%s4826 + $0xc] sm:$0xf]
        %v4831 = vld [vmem:[%s4826 + $0x10] sm:$0xf]
        %v4832 = vld [vmem:[%s4826 + $0x14] sm:$0xf]
        %v4833 = vld [vmem:[%s4826 + $0x18] sm:$0xf]
        %v4834 = vld [vmem:[%s4826 + $0x1c] sm:$0xf]
        %v4835 = vld [vmem:[%s4826 + $0x20] sm:$0xf]
        %v4836 = vld [vmem:[%s4826 + $0x24] sm:$0xf]
        %v4837 = vld [vmem:[%s4826 + $0x28] sm:$0xf]
        %v4838 = vld [vmem:[%s4826 + $0x2c] sm:$0xf]
        %v4839 = vld [vmem:[%s4826 + $0x30] sm:$0xf]
        %v4840 = vld [vmem:[%s4826 + $0x34] sm:$0xf]
        %v4841 = vld [vmem:[%s4826 + $0x38] sm:$0xf]
        %v4842 = vld [vmem:[%s4826 + $0x3c] sm:$0xf]
        %v4843 = vrot.slane %v4603, 2
        %v4844 = vrot.slane %v4604, 1
        %v4845 = vsel %vm4612, %v4844, %v4843
        %v4846 = vsel %vm4615, %v4605, %v4845
        %v4847 = vrot.slane %v4606, 7
        %v4848 = vsel %vm4618, %v4847, %v4846
        %v4849 = vrot.slane %v4607, 6
        %v4850 = vsel %vm4621, %v4849, %v4848
        %v4851 = vrot.slane %v4608, 5
        %v4852 = vsel %vm4624, %v4851, %v4850
        %v4853 = vrot.slane %v4609, 4
        %v4854 = vsel %vm4627, %v4853, %v4852
        %v4855 = vrot.slane %v4610, 3
        %v4856 = vsel %vm4630, %v4855, %v4854
        %v4857 = vpack.c.b16 %v4856, %v4856
        %v4875 = vunpack.c.l.b16 %v4827
        %v4876 = vunpack.c.l.b16 %v4828
        %v4877 = vunpack.c.l.b16 %v4829
        %v4878 = vunpack.c.l.b16 %v4830
        %v4879 = vunpack.c.l.b16 %v4831
        %v4880 = vunpack.c.l.b16 %v4832
        %v4881 = vunpack.c.l.b16 %v4833
        %v4882 = vunpack.c.l.b16 %v4834
        %v4883 = vunpack.c.l.b16 %v4835
        %v4884 = vunpack.c.l.b16 %v4836
        %v4885 = vunpack.c.l.b16 %v4837
        %v4886 = vunpack.c.l.b16 %v4838
        %v4887 = vunpack.c.l.b16 %v4839
        %v4888 = vunpack.c.l.b16 %v4840
        %v4889 = vunpack.c.l.b16 %v4841
        %v4890 = vunpack.c.l.b16 %v4842
        %v4891 = vpack.c.b16 %v4876, %v4875
        %v4892 = vpack.c.b16 %v4878, %v4877
        %v4893 = vpack.c.b16 %v4880, %v4879
        %v4894 = vpack.c.b16 %v4882, %v4881
        %v4895 = vpack.c.b16 %v4884, %v4883
        %v4896 = vpack.c.b16 %v4886, %v4885
        %v4897 = vpack.c.b16 %v4888, %v4887
        %v4898 = vpack.c.b16 %v4890, %v4889
        %4907 = vmatprep.subr.bf16.mxu0 0
        %4908 = vmatpush1.bf16.msra.mxu0 %v4891
        %4909 = vmatprep.subr.bf16.mxu0 0
        %4910 = vmatpush1.bf16.msra.mxu0 %v4892
        %4911 = vmatprep.subr.bf16.mxu0 0
        %4912 = vmatpush1.bf16.msra.mxu0 %v4893
        %4913 = vmatprep.subr.bf16.mxu0 0
        %4914 = vmatpush1.bf16.msra.mxu0 %v4894
        %4915 = vmatprep.subr.bf16.mxu0 0
        %4916 = vmatpush1.bf16.msra.mxu0 %v4895
        %4917 = vmatprep.subr.bf16.mxu0 0
        %4918 = vmatpush1.bf16.msra.mxu0 %v4896
        %4919 = vmatprep.subr.bf16.mxu0 0
        %4920 = vmatpush1.bf16.msra.mxu0 %v4897
        %4921 = vmatprep.subr.bf16.mxu0 0
        %4922 = vmatpush1.bf16.msra.mxu0 %v4898
        %4923 = vmatprep.subr.bf16.mxu0 0
        %4924 = vmatpush1.bf16.msra.mxu0 0
        %4925 = vmatprep.subr.bf16.mxu0 0
        %4926 = vmatpush1.bf16.msra.mxu0 0
        %4927 = vmatprep.subr.bf16.mxu0 0
        %4928 = vmatpush1.bf16.msra.mxu0 0
        %4929 = vmatprep.subr.bf16.mxu0 0
        %4930 = vmatpush1.bf16.msra.mxu0 0
        %4931 = vmatprep.subr.bf16.mxu0 0
        %4932 = vmatpush1.bf16.msra.mxu0 0
        %4933 = vmatprep.subr.bf16.mxu0 0
        %4934 = vmatpush1.bf16.msra.mxu0 0
        %4935 = vmatprep.subr.bf16.mxu0 0
        %4936 = vmatpush1.bf16.msra.mxu0 0
        %4937 = vmatprep.subr.bf16.mxu0 0
        %4938 = vmatpush1.bf16.msra.mxu0 0
        %4939 = vmatprep.mubr.bf16.mxu0 0
        %4940 = vmatmul.mubr.bf16.gmra.mrb[0].mxu0 %v4857
        %v4941 = vpop.f32.mrb[0].mxu0
        %v4942 = vadd.f32 0.0, %v4941
        %v4943 = vpop.f32.mrb[0].mxu0
        %v4944 = vpop.f32.mrb[0].mxu0
        %v4945 = vpop.f32.mrb[0].mxu0
        %4946 = vdwg.mxu0
        %v4947 = vadd.f32 %v4821, %v4942
        %s4948 = scalar_lea.vmem %s5, 192
        %v4949 = vld [vmem:[%s4948] sm:$0xf]
        %v4950 = vld [vmem:[%s4948 + $0x4] sm:$0xf]
        %v4951 = vld [vmem:[%s4948 + $0x8] sm:$0xf]
        %v4952 = vld [vmem:[%s4948 + $0xc] sm:$0xf]
        %v4953 = vld [vmem:[%s4948 + $0x10] sm:$0xf]
        %v4954 = vld [vmem:[%s4948 + $0x14] sm:$0xf]
        %v4955 = vld [vmem:[%s4948 + $0x18] sm:$0xf]
        %v4956 = vld [vmem:[%s4948 + $0x1c] sm:$0xf]
        %v4957 = vld [vmem:[%s4948 + $0x20] sm:$0xf]
        %v4958 = vld [vmem:[%s4948 + $0x24] sm:$0xf]
        %v4959 = vld [vmem:[%s4948 + $0x28] sm:$0xf]
        %v4960 = vld [vmem:[%s4948 + $0x2c] sm:$0xf]
        %v4961 = vld [vmem:[%s4948 + $0x30] sm:$0xf]
        %v4962 = vld [vmem:[%s4948 + $0x34] sm:$0xf]
        %v4963 = vld [vmem:[%s4948 + $0x38] sm:$0xf]
        %v4964 = vld [vmem:[%s4948 + $0x3c] sm:$0xf]
        %v4965 = vrot.slane %v4603, 3
        %v4966 = vrot.slane %v4604, 2
        %v4967 = vsel %vm4612, %v4966, %v4965
        %v4968 = vrot.slane %v4605, 1
        %v4969 = vsel %vm4615, %v4968, %v4967
        %v4970 = vsel %vm4618, %v4606, %v4969
        %v4971 = vrot.slane %v4607, 7
        %v4972 = vsel %vm4621, %v4971, %v4970
        %v4973 = vrot.slane %v4608, 6
        %v4974 = vsel %vm4624, %v4973, %v4972
        %v4975 = vrot.slane %v4609, 5
        %v4976 = vsel %vm4627, %v4975, %v4974
        %v4977 = vrot.slane %v4610, 4
        %v4978 = vsel %vm4630, %v4977, %v4976
        %v4979 = vpack.c.b16 %v4978, %v4978
        %v4997 = vunpack.c.l.b16 %v4949
        %v4998 = vunpack.c.l.b16 %v4950
        %v4999 = vunpack.c.l.b16 %v4951
        %v5000 = vunpack.c.l.b16 %v4952
        %v5001 = vunpack.c.l.b16 %v4953
        %v5002 = vunpack.c.l.b16 %v4954
        %v5003 = vunpack.c.l.b16 %v4955
        %v5004 = vunpack.c.l.b16 %v4956
        %v5005 = vunpack.c.l.b16 %v4957
        %v5006 = vunpack.c.l.b16 %v4958
        %v5007 = vunpack.c.l.b16 %v4959
        %v5008 = vunpack.c.l.b16 %v4960
        %v5009 = vunpack.c.l.b16 %v4961
        %v5010 = vunpack.c.l.b16 %v4962
        %v5011 = vunpack.c.l.b16 %v4963
        %v5012 = vunpack.c.l.b16 %v4964
        %v5013 = vpack.c.b16 %v4998, %v4997
        %v5014 = vpack.c.b16 %v5000, %v4999
        %v5015 = vpack.c.b16 %v5002, %v5001
        %v5016 = vpack.c.b16 %v5004, %v5003
        %v5017 = vpack.c.b16 %v5006, %v5005
        %v5018 = vpack.c.b16 %v5008, %v5007
        %v5019 = vpack.c.b16 %v5010, %v5009
        %v5020 = vpack.c.b16 %v5012, %v5011
        %5029 = vmatprep.subr.bf16.mxu0 0
        %5030 = vmatpush1.bf16.msra.mxu0 %v5013
        %5031 = vmatprep.subr.bf16.mxu0 0
        %5032 = vmatpush1.bf16.msra.mxu0 %v5014
        %5033 = vmatprep.subr.bf16.mxu0 0
        %5034 = vmatpush1.bf16.msra.mxu0 %v5015
        %5035 = vmatprep.subr.bf16.mxu0 0
        %5036 = vmatpush1.bf16.msra.mxu0 %v5016
        %5037 = vmatprep.subr.bf16.mxu0 0
        %5038 = vmatpush1.bf16.msra.mxu0 %v5017
        %5039 = vmatprep.subr.bf16.mxu0 0
        %5040 = vmatpush1.bf16.msra.mxu0 %v5018
        %5041 = vmatprep.subr.bf16.mxu0 0
        %5042 = vmatpush1.bf16.msra.mxu0 %v5019
        %5043 = vmatprep.subr.bf16.mxu0 0
        %5044 = vmatpush1.bf16.msra.mxu0 %v5020
        %5045 = vmatprep.subr.bf16.mxu0 0
        %5046 = vmatpush1.bf16.msra.mxu0 0
        %5047 = vmatprep.subr.bf16.mxu0 0
        %5048 = vmatpush1.bf16.msra.mxu0 0
        %5049 = vmatprep.subr.bf16.mxu0 0
        %5050 = vmatpush1.bf16.msra.mxu0 0
        %5051 = vmatprep.subr.bf16.mxu0 0
        %5052 = vmatpush1.bf16.msra.mxu0 0
        %5053 = vmatprep.subr.bf16.mxu0 0
        %5054 = vmatpush1.bf16.msra.mxu0 0
        %5055 = vmatprep.subr.bf16.mxu0 0
        %5056 = vmatpush1.bf16.msra.mxu0 0
        %5057 = vmatprep.subr.bf16.mxu0 0
        %5058 = vmatpush1.bf16.msra.mxu0 0
        %5059 = vmatprep.subr.bf16.mxu0 0
        %5060 = vmatpush1.bf16.msra.mxu0 0
        %5061 = vmatprep.mubr.bf16.mxu0 0
        %5062 = vmatmul.mubr.bf16.gmra.mrb[0].mxu0 %v4979
        %v5063 = vpop.f32.mrb[0].mxu0
        %v5064 = vadd.f32 0.0, %v5063
        %v5065 = vpop.f32.mrb[0].mxu0
        %v5066 = vpop.f32.mrb[0].mxu0
        %v5067 = vpop.f32.mrb[0].mxu0
        %5068 = vdwg.mxu0
        %v5069 = vadd.f32 %v4947, %v5064
        %s5070 = scalar_lea.vmem %s5, 256
        %v5071 = vld [vmem:[%s5070] sm:$0xf]
        %v5072 = vld [vmem:[%s5070 + $0x4] sm:$0xf]
        %v5073 = vld [vmem:[%s5070 + $0x8] sm:$0xf]
        %v5074 = vld [vmem:[%s5070 + $0xc] sm:$0xf]
        %v5075 = vld [vmem:[%s5070 + $0x10] sm:$0xf]
        %v5076 = vld [vmem:[%s5070 + $0x14] sm:$0xf]
        %v5077 = vld [vmem:[%s5070 + $0x18] sm:$0xf]
        %v5078 = vld [vmem:[%s5070 + $0x1c] sm:$0xf]
        %v5079 = vld [vmem:[%s5070 + $0x20] sm:$0xf]
        %v5080 = vld [vmem:[%s5070 + $0x24] sm:$0xf]
        %v5081 = vld [vmem:[%s5070 + $0x28] sm:$0xf]
        %v5082 = vld [vmem:[%s5070 + $0x2c] sm:$0xf]
        %v5083 = vld [vmem:[%s5070 + $0x30] sm:$0xf]
        %v5084 = vld [vmem:[%s5070 + $0x34] sm:$0xf]
        %v5085 = vld [vmem:[%s5070 + $0x38] sm:$0xf]
        %v5086 = vld [vmem:[%s5070 + $0x3c] sm:$0xf]
        %v5087 = vrot.slane %v4603, 4
        %v5088 = vrot.slane %v4604, 3
        %v5089 = vsel %vm4612, %v5088, %v5087
        %v5090 = vrot.slane %v4605, 2
        %v5091 = vsel %vm4615, %v5090, %v5089
        %v5092 = vrot.slane %v4606, 1
        %v5093 = vsel %vm4618, %v5092, %v5091
        %v5094 = vsel %vm4621, %v4607, %v5093
        %v5095 = vrot.slane %v4608, 7
        %v5096 = vsel %vm4624, %v5095, %v5094
        %v5097 = vrot.slane %v4609, 6
        %v5098 = vsel %vm4627, %v5097, %v5096
        %v5099 = vrot.slane %v4610, 5
        %v5100 = vsel %vm4630, %v5099, %v5098
        %v5101 = vpack.c.b16 %v5100, %v5100
        %v5119 = vunpack.c.l.b16 %v5071
        %v5120 = vunpack.c.l.b16 %v5072
        %v5121 = vunpack.c.l.b16 %v5073
        %v5122 = vunpack.c.l.b16 %v5074
        %v5123 = vunpack.c.l.b16 %v5075
        %v5124 = vunpack.c.l.b16 %v5076
        %v5125 = vunpack.c.l.b16 %v5077
        %v5126 = vunpack.c.l.b16 %v5078
        %v5127 = vunpack.c.l.b16 %v5079
        %v5128 = vunpack.c.l.b16 %v5080
        %v5129 = vunpack.c.l.b16 %v5081
        %v5130 = vunpack.c.l.b16 %v5082
        %v5131 = vunpack.c.l.b16 %v5083
        %v5132 = vunpack.c.l.b16 %v5084
        %v5133 = vunpack.c.l.b16 %v5085
        %v5134 = vunpack.c.l.b16 %v5086
        %v5135 = vpack.c.b16 %v5120, %v5119
        %v5136 = vpack.c.b16 %v5122, %v5121
        %v5137 = vpack.c.b16 %v5124, %v5123
        %v5138 = vpack.c.b16 %v5126, %v5125
        %v5139 = vpack.c.b16 %v5128, %v5127
        %v5140 = vpack.c.b16 %v5130, %v5129
        %v5141 = vpack.c.b16 %v5132, %v5131
        %v5142 = vpack.c.b16 %v5134, %v5133
        %5151 = vmatprep.subr.bf16.mxu0 0
        %5152 = vmatpush1.bf16.msra.mxu0 %v5135
        %5153 = vmatprep.subr.bf16.mxu0 0
        %5154 = vmatpush1.bf16.msra.mxu0 %v5136
        %5155 = vmatprep.subr.bf16.mxu0 0
        %5156 = vmatpush1.bf16.msra.mxu0 %v5137
        %5157 = vmatprep.subr.bf16.mxu0 0
        %5158 = vmatpush1.bf16.msra.mxu0 %v5138
        %5159 = vmatprep.subr.bf16.mxu0 0
        %5160 = vmatpush1.bf16.msra.mxu0 %v5139
        %5161 = vmatprep.subr.bf16.mxu0 0
        %5162 = vmatpush1.bf16.msra.mxu0 %v5140
        %5163 = vmatprep.subr.bf16.mxu0 0
        %5164 = vmatpush1.bf16.msra.mxu0 %v5141
        %5165 = vmatprep.subr.bf16.mxu0 0
        %5166 = vmatpush1.bf16.msra.mxu0 %v5142
        %5167 = vmatprep.subr.bf16.mxu0 0
        %5168 = vmatpush1.bf16.msra.mxu0 0
        %5169 = vmatprep.subr.bf16.mxu0 0
        %5170 = vmatpush1.bf16.msra.mxu0 0
        %5171 = vmatprep.subr.bf16.mxu0 0
        %5172 = vmatpush1.bf16.msra.mxu0 0
        %5173 = vmatprep.subr.bf16.mxu0 0
        %5174 = vmatpush1.bf16.msra.mxu0 0
        %5175 = vmatprep.subr.bf16.mxu0 0
        %5176 = vmatpush1.bf16.msra.mxu0 0
        %5177 = vmatprep.subr.bf16.mxu0 0
        %5178 = vmatpush1.bf16.msra.mxu0 0
        %5179 = vmatprep.subr.bf16.mxu0 0
        %5180 = vmatpush1.bf16.msra.mxu0 0
        %5181 = vmatprep.subr.bf16.mxu0 0
        %5182 = vmatpush1.bf16.msra.mxu0 0
        %5183 = vmatprep.mubr.bf16.mxu0 0
        %5184 = vmatmul.mubr.bf16.gmra.mrb[0].mxu0 %v5101
        %v5185 = vpop.f32.mrb[0].mxu0
        %v5186 = vadd.f32 0.0, %v5185
        %v5187 = vpop.f32.mrb[0].mxu0
        %v5188 = vpop.f32.mrb[0].mxu0
        %v5189 = vpop.f32.mrb[0].mxu0
        %5190 = vdwg.mxu0
        %v5191 = vadd.f32 %v5069, %v5186
        %v5192 = vld [vmem:[%s6] sm:$0x1]
        %v5194 = vlaneseq
        %v5195 = vshrl.u32 %v5194, 7
        %v5196 = vsub.s32 0, %v5195
        %v5197 = vrot.slane %v5192, %v5196
        %v5199 = vadd.f32 %v5191, %v5197
        %v5200 = vmax.f32 %v5199, 0.0
        %v5201 = vpack.c.bf16 %v5200, %v5200
        %v5202 = vld [vmem:[%s7] sm:$0xf]
        %v5203 = vld [vmem:[%s7 + $0x4] sm:$0xf]
        %v5204 = vld [vmem:[%s7 + $0x8] sm:$0xf]
        %v5205 = vld [vmem:[%s7 + $0xc] sm:$0xf]
        %v5206 = vld [vmem:[%s7 + $0x10] sm:$0xf]
        %v5207 = vld [vmem:[%s7 + $0x14] sm:$0xf]
        %v5208 = vld [vmem:[%s7 + $0x18] sm:$0xf]
        %v5209 = vld [vmem:[%s7 + $0x1c] sm:$0xf]
        %v5210 = vld [vmem:[%s7 + $0x20] sm:$0xf]
        %v5211 = vld [vmem:[%s7 + $0x24] sm:$0xf]
        %v5212 = vld [vmem:[%s7 + $0x28] sm:$0xf]
        %v5213 = vld [vmem:[%s7 + $0x2c] sm:$0xf]
        %v5214 = vld [vmem:[%s7 + $0x30] sm:$0xf]
        %v5215 = vld [vmem:[%s7 + $0x34] sm:$0xf]
        %v5216 = vld [vmem:[%s7 + $0x38] sm:$0xf]
        %v5217 = vld [vmem:[%s7 + $0x3c] sm:$0xf]
        %v5218 = vld [vmem:[%s8] sm:$0x1]
        %v5220 = vlaneseq
        %v5221 = vshrl.u32 %v5220, 7
        %v5222 = vsub.s32 0, %v5221
        %v5223 = vrot.slane %v5218, %v5222
        %v5241 = vunpack.c.l.b16 %v5202
        %v5242 = vunpack.c.l.b16 %v5203
        %v5243 = vunpack.c.l.b16 %v5204
        %v5244 = vunpack.c.l.b16 %v5205
        %v5245 = vunpack.c.l.b16 %v5206
        %v5246 = vunpack.c.l.b16 %v5207
        %v5247 = vunpack.c.l.b16 %v5208
        %v5248 = vunpack.c.l.b16 %v5209
        %v5249 = vunpack.c.l.b16 %v5210
        %v5250 = vunpack.c.l.b16 %v5211
        %v5251 = vunpack.c.l.b16 %v5212
        %v5252 = vunpack.c.l.b16 %v5213
        %v5253 = vunpack.c.l.b16 %v5214
        %v5254 = vunpack.c.l.b16 %v5215
        %v5255 = vunpack.c.l.b16 %v5216
        %v5256 = vunpack.c.l.b16 %v5217
        %v5257 = vpack.c.b16 %v5242, %v5241
        %v5258 = vpack.c.b16 %v5244, %v5243
        %v5259 = vpack.c.b16 %v5246, %v5245
        %v5260 = vpack.c.b16 %v5248, %v5247
        %v5261 = vpack.c.b16 %v5250, %v5249
        %v5262 = vpack.c.b16 %v5252, %v5251
        %v5263 = vpack.c.b16 %v5254, %v5253
        %v5264 = vpack.c.b16 %v5256, %v5255
        %5273 = vmatprep.subr.bf16.mxu0 0
        %5274 = vmatpush1.bf16.msra.mxu0 %v5257
        %5275 = vmatprep.subr.bf16.mxu0 0
        %5276 = vmatpush1.bf16.msra.mxu0 %v5258
        %5277 = vmatprep.subr.bf16.mxu0 0
        %5278 = vmatpush1.bf16.msra.mxu0 %v5259
        %5279 = vmatprep.subr.bf16.mxu0 0
        %5280 = vmatpush1.bf16.msra.mxu0 %v5260
        %5281 = vmatprep.subr.bf16.mxu0 0
        %5282 = vmatpush1.bf16.msra.mxu0 %v5261
        %5283 = vmatprep.subr.bf16.mxu0 0
        %5284 = vmatpush1.bf16.msra.mxu0 %v5262
        %5285 = vmatprep.subr.bf16.mxu0 0
        %5286 = vmatpush1.bf16.msra.mxu0 %v5263
        %5287 = vmatprep.subr.bf16.mxu0 0
        %5288 = vmatpush1.bf16.msra.mxu0 %v5264
        %5289 = vmatprep.subr.bf16.mxu0 0
        %5290 = vmatpush1.bf16.msra.mxu0 0
        %5291 = vmatprep.subr.bf16.mxu0 0
        %5292 = vmatpush1.bf16.msra.mxu0 0
        %5293 = vmatprep.subr.bf16.mxu0 0
        %5294 = vmatpush1.bf16.msra.mxu0 0
        %5295 = vmatprep.subr.bf16.mxu0 0
        %5296 = vmatpush1.bf16.msra.mxu0 0
        %5297 = vmatprep.subr.bf16.mxu0 0
        %5298 = vmatpush1.bf16.msra.mxu0 0
        %5299 = vmatprep.subr.bf16.mxu0 0
        %5300 = vmatpush1.bf16.msra.mxu0 0
        %5301 = vmatprep.subr.bf16.mxu0 0
        %5302 = vmatpush1.bf16.msra.mxu0 0
        %5303 = vmatprep.subr.bf16.mxu0 0
        %5304 = vmatpush1.bf16.msra.mxu0 0
        %5305 = vmatprep.mubr.bf16.mxu0 0
        %5306 = vmatmul.mubr.bf16.gmra.mrb[0].mxu0 %v5201
        %v5307 = vpop.f32.mrb[0].mxu0
        %v5308 = vadd.f32 %v5223, %v5307
        %v5309 = vpop.f32.mrb[0].mxu0
        %v5310 = vpop.f32.mrb[0].mxu0
        %v5311 = vpop.f32.mrb[0].mxu0
        %5312 = vdwg.mxu0
        %v5313 = vmax.f32 %v5308, 0.0
        %v5314 = vpack.c.bf16 %v5313, %v5313
        %v5315 = vld [vmem:[%s9] sm:$0xf]
        %v5316 = vld [vmem:[%s9 + $0x4] sm:$0xf]
        %v5317 = vld [vmem:[%s9 + $0x8] sm:$0xf]
        %v5318 = vld [vmem:[%s9 + $0xc] sm:$0xf]
        %v5319 = vld [vmem:[%s9 + $0x10] sm:$0xf]
        %v5320 = vld [vmem:[%s9 + $0x14] sm:$0xf]
        %v5321 = vld [vmem:[%s9 + $0x18] sm:$0xf]
        %v5322 = vld [vmem:[%s9 + $0x1c] sm:$0xf]
        %v5323 = vld [vmem:[%s9 + $0x20] sm:$0xf]
        %v5324 = vld [vmem:[%s9 + $0x24] sm:$0xf]
        %v5325 = vld [vmem:[%s9 + $0x28] sm:$0xf]
        %v5326 = vld [vmem:[%s9 + $0x2c] sm:$0xf]
        %v5327 = vld [vmem:[%s9 + $0x30] sm:$0xf]
        %v5328 = vld [vmem:[%s9 + $0x34] sm:$0xf]
        %v5329 = vld [vmem:[%s9 + $0x38] sm:$0xf]
        %v5330 = vld [vmem:[%s9 + $0x3c] sm:$0xf]
        %v5331 = vld [vmem:[%s10] sm:$0x1]
        %v5333 = vlaneseq
        %v5334 = vshrl.u32 %v5333, 7
        %v5335 = vsub.s32 0, %v5334
        %v5336 = vrot.slane %v5331, %v5335
        %v5354 = vunpack.c.l.b16 %v5315
        %v5355 = vunpack.c.l.b16 %v5316
        %v5356 = vunpack.c.l.b16 %v5317
        %v5357 = vunpack.c.l.b16 %v5318
        %v5358 = vunpack.c.l.b16 %v5319
        %v5359 = vunpack.c.l.b16 %v5320
        %v5360 = vunpack.c.l.b16 %v5321
        %v5361 = vunpack.c.l.b16 %v5322
        %v5362 = vunpack.c.l.b16 %v5323
        %v5363 = vunpack.c.l.b16 %v5324
        %v5364 = vunpack.c.l.b16 %v5325
        %v5365 = vunpack.c.l.b16 %v5326
        %v5366 = vunpack.c.l.b16 %v5327
        %v5367 = vunpack.c.l.b16 %v5328
        %v5368 = vunpack.c.l.b16 %v5329
        %v5369 = vunpack.c.l.b16 %v5330
        %v5370 = vpack.c.b16 %v5355, %v5354
        %v5371 = vpack.c.b16 %v5357, %v5356
        %v5372 = vpack.c.b16 %v5359, %v5358
        %v5373 = vpack.c.b16 %v5361, %v5360
        %v5374 = vpack.c.b16 %v5363, %v5362
        %v5375 = vpack.c.b16 %v5365, %v5364
        %v5376 = vpack.c.b16 %v5367, %v5366
        %v5377 = vpack.c.b16 %v5369, %v5368
        %5386 = vmatprep.subr.bf16.mxu0 0
        %5387 = vmatpush1.bf16.msra.mxu0 %v5370
        %5388 = vmatprep.subr.bf16.mxu0 0
        %5389 = vmatpush1.bf16.msra.mxu0 %v5371
        %5390 = vmatprep.subr.bf16.mxu0 0
        %5391 = vmatpush1.bf16.msra.mxu0 %v5372
        %5392 = vmatprep.subr.bf16.mxu0 0
        %5393 = vmatpush1.bf16.msra.mxu0 %v5373
        %5394 = vmatprep.subr.bf16.mxu0 0
        %5395 = vmatpush1.bf16.msra.mxu0 %v5374
        %5396 = vmatprep.subr.bf16.mxu0 0
        %5397 = vmatpush1.bf16.msra.mxu0 %v5375
        %5398 = vmatprep.subr.bf16.mxu0 0
        %5399 = vmatpush1.bf16.msra.mxu0 %v5376
        %5400 = vmatprep.subr.bf16.mxu0 0
        %5401 = vmatpush1.bf16.msra.mxu0 %v5377
        %5402 = vmatprep.subr.bf16.mxu0 0
        %5403 = vmatpush1.bf16.msra.mxu0 0
        %5404 = vmatprep.subr.bf16.mxu0 0
        %5405 = vmatpush1.bf16.msra.mxu0 0
        %5406 = vmatprep.subr.bf16.mxu0 0
        %5407 = vmatpush1.bf16.msra.mxu0 0
        %5408 = vmatprep.subr.bf16.mxu0 0
        %5409 = vmatpush1.bf16.msra.mxu0 0
        %5410 = vmatprep.subr.bf16.mxu0 0
        %5411 = vmatpush1.bf16.msra.mxu0 0
        %5412 = vmatprep.subr.bf16.mxu0 0
        %5413 = vmatpush1.bf16.msra.mxu0 0
        %5414 = vmatprep.subr.bf16.mxu0 0
        %5415 = vmatpush1.bf16.msra.mxu0 0
        %5416 = vmatprep.subr.bf16.mxu0 0
        %5417 = vmatpush1.bf16.msra.mxu0 0
        %5418 = vmatprep.mubr.bf16.mxu0 0
        %5419 = vmatmul.mubr.bf16.gmra.mrb[0].mxu0 %v5314
        %v5420 = vpop.f32.mrb[0].mxu0
        %v5421 = vadd.f32 %v5336, %v5420
        %v5422 = vpop.f32.mrb[0].mxu0
        %v5423 = vpop.f32.mrb[0].mxu0
        %v5424 = vpop.f32.mrb[0].mxu0
        %5425 = vdwg.mxu0
        %5426 = vst [vmem:[%s382] sm:$0xff] %v5421
        %s5427 = sand.u32 %s269, 1
        %s5428 = scalar_lea.sflag [#allocation7], %s5427
        %s5429 = sand.u32 %s269, 1
        %s5430 = smul.addr %s5429, 8
        %s5431 = scalar_lea.vmem [#allocation6], %s5430
        // Predicated region
        $region79: #{net_forward.1} parent=63 // pred_check
          %p5432 = pneg %p279
        $region80: #{net_forward.1} parent=63 // pred_check_branch
          %5434 = sbr.rel (%p5432) target = $region82
        $region81: #{net_forward.1} parent=63 // pred_region
          %s5436 = ssub.s32 128, 128
          %5437 = vsyncadd %s5428, %s5436
          %s5438 = smul.addr %s25, 128
          %s5439 = scalar_lea.hbm %s11, %s5438
          %s5441 = sshll.u32 %s5431, 4
          %s5442 = int_to_ptr.vmem [resolvable:$true] %s5441
          %5444 = dma.vmem_to_hbm [thread:$0]  %s5442, 128, %s5439, %s5428
        $region82: #{net_forward.1} parent=63 // pred_fallthru
          _
      $region64: #{net_forward.1} parent=5 // pred_fallthru
        _
      %p5445 = scmp.le.s32.totalorder 2, %s20
      // Predicated region
      $region83: #{net_forward.1} parent=5 // pred_check
        %p5446 = pneg %p5445
      $region84: #{net_forward.1} parent=5 // pred_check_branch
        %5448 = sbr.rel (%p5446) target = $region86
      $region85: #{net_forward.1} parent=5 // pred_region
        %s5449 = ssub.s32 %s20, 2
        // Predicated region
        $region87: #{net_forward.1} parent=85 // pred_check
          %p5450 = pneg %p285
        $region88: #{net_forward.1} parent=85 // pred_check_branch
          %5452 = sbr.rel (%p5450) target = $region90
        $region89: #{net_forward.1} parent=85 // pred_region
          %s5453 = sand.u32 %s270, 1
          %s5454 = scalar_lea.sflag [#allocation7], %s5453
          %s5455 = sand.u32 %s270, 1
          %s5456 = smul.addr %s5455, 8
          %s5457 = scalar_lea.vmem [#allocation6], %s5456
          %5458 = dma.done %s5454, 128
        $region90: #{net_forward.1} parent=85 // pred_fallthru
          _
      $region86: #{net_forward.1} parent=5 // pred_fallthru
        _
    $region6: #{net_forward.1} parent=1 // loop_footer
      %s24 = sadd.s32 1, %s20
    $region7: #{net_forward.1} parent=1 // loop_footer_branch
      %19 = sbr.rel target = $region3
    $region8: #{net_forward.1} parent=1 // loop_exit
      _
    %5459 = vsyncpa [#allocation7], 1
    %s5460 = scalar_lea.sflag [#allocation7], 1
    %5461 = vsyncpa %s5460, 1

</llo_original>
